<compile_context>
chip_gen: v6e
topology: v6e:2x2x1
jax: 0.10.0
libtpu: 0.0.40
codegen_flags: <defaults>
</compile_context>

<pallas_src>
import functools

import jax
import jax.numpy as jnp
from jax import lax
from jax.experimental import pallas as pl
from jax.experimental.pallas import tpu as pltpu

NEG_SLOPE = 0.01
BN_EPS = 1e-5

# 3x3 tap offsets, t = (dy+1)*3 + (dx+1)  (matches OIHW -> (kh,kw,cin,cout) flatten)
_TAPS = tuple((dy, dx) for dy in (-1, 0, 1) for dx in (-1, 0, 1))


# ---------------------------------------------------------------------------
# Fused Pallas kernel: whole critic forward for B_TILE images per grid step.
# Activations are (M, C) with M = B_TILE * P_pad rows laid out on the padded
# (H+2)x(W+2) grid (zero border rows == SAME padding), P_pad = P rounded to 8.
# ---------------------------------------------------------------------------
def _critic_fused_kernel(x_ref, w1_ref, s1_ref, w2_ref, s2_ref, w3_ref, s3_ref,
                         g_ref, bf_ref, mask_ref, o_ref, *,
                         p_pad, b_tile, wp, rowpad, dot_dtype):
    m = b_tile * p_pad
    mask = mask_ref[...]                              # (m, 1) f32: 1 interior, 0 border

    def act(acc, s_ref):
        y = acc + s_ref[...]                          # folded conv-bias + BN shift
        y = jnp.maximum(y, NEG_SLOPE * y)             # LeakyReLU: one VALU op
        return y * mask                               # re-zero border rows (next layer's pad)

    # ---- layer 1: host-side im2col (K = 9*Cin), one MXU dot ----
    a = act(jnp.dot(x_ref[...], w1_ref[...], preferred_element_type=jnp.float32), s1_ref)

    zpad = jnp.zeros((rowpad, a.shape[1]), jnp.float32)   # hoisted row halo

    def conv_block(a, w_ref, s_ref):
        # Build the (m, 9*C) im2col slab from static shifted slices of a
        # row-halo-padded copy; zero border rows already encode SAME padding,
        # so no per-tap boundary masks are needed.  (Cross-image bleed at the
        # B_TILE seams only lands on border rows, which get re-zeroed.)
        ap = jnp.concatenate([zpad, a, zpad], axis=0)     # (m + 2*rowpad, C)
        taps = [ap[rowpad + dy * wp + dx: rowpad + dy * wp + dx + m, :]
                for dy, dx in _TAPS]
        slab = jnp.concatenate(taps, axis=1).astype(dot_dtype)   # (m, 9*C)
        acc = jnp.dot(slab, w_ref[...], preferred_element_type=jnp.float32)
        return act(acc, s_ref)

    a = conv_block(a, w2_ref, s2_ref)
    a = conv_block(a, w3_ref, s3_ref)

    # ---- final 32->1 conv fused with global average pool ----
    # mean_p conv(a)[p]  ==  sum_q a[q,:] * g[q,:]  + bf   (g precomputed, / (H*W))
    weighted = a * g_ref[...]                          # (m, C) f32
    outs = []
    for b in range(b_tile):
        col = jnp.sum(weighted[b * p_pad:(b + 1) * p_pad, :], axis=0, keepdims=True)
        outs.append(jnp.sum(col, axis=1, keepdims=True))          # (1, 1)
    per_img = outs[0] if b_tile == 1 else jnp.concatenate(outs, axis=0)
    o_ref[...] = per_img + bf_ref[...]


# ---------------------------------------------------------------------------
# Host-side parameter folding / im2col / epilogue-weight precompute
# ---------------------------------------------------------------------------
def _fold_block(w, b, gamma, beta, mean, var):
    """Fold conv bias + eval-mode BN into ((9*Cin, Cout) weight, (1, Cout) shift)."""
    scale = gamma / jnp.sqrt(var + BN_EPS)                         # (Cout,)
    wk = jnp.transpose(w, (2, 3, 1, 0)) * scale                    # (3,3,Cin,Cout)
    wk = wk.reshape(-1, w.shape[0])                                # K index = t*Cin + cin
    shift = ((b - mean) * scale + beta)[None, :]                   # (1, Cout)
    return wk, shift


def _im2col_layer1(x_nhwc, h, w, p_pad):
    """im2col of the input onto the padded (H+2)x(W+2) grid -> (n, p_pad, 9*Cin)."""
    n, _, _, c = x_nhwc.shape
    hp, wp = h + 2, w + 2
    xp = jnp.pad(x_nhwc, ((0, 0), (2, 2), (2, 2), (0, 0)))
    taps = [xp[:, 1 + dy:1 + dy + hp, 1 + dx:1 + dx + wp, :] for dy, dx in _TAPS]
    slab = jnp.concatenate(taps, axis=-1).reshape(n, hp * wp, 9 * c)
    return jnp.pad(slab, ((0, 0), (0, p_pad - hp * wp), (0, 0)))


def _mask_and_final_weights(wf_oihw, h, w, p_pad):
    """Interior-row mask (p_pad,1) and pooled final-conv weights g (p_pad,Cin)."""
    hp, wp = h + 2, w + 2
    p = hp * wp
    q = jnp.arange(p_pad)
    y, x = q // wp, q % wp
    valid = q < p
    interior = valid & (y >= 1) & (y <= h) & (x >= 1) & (x <= w)
    mask = interior.astype(jnp.float32)[:, None]

    wf_t = jnp.transpose(wf_oihw, (2, 3, 1, 0)).reshape(9, wf_oihw.shape[1])  # (9, Cin)
    g = jnp.zeros((p_pad, wf_oihw.shape[1]), jnp.float32)
    for t, (dy, dx) in enumerate(_TAPS):
        # output pixel p = q - (dy,dx) must be a real (interior) pixel
        ok = valid & (y - dy >= 1) & (y - dy <= h) & (x - dx >= 1) & (x - dx <= w)
        g = g + ok.astype(jnp.float32)[:, None] * wf_t[t][None, :]
    return mask, g / float(h * w)


def _pick_b_tile(n):
    # Amortize the ~0.35us/grid-step overhead, but keep >= 2 parallel grid
    # steps so v7x's two TensorCores both get work (v5e/v6e unaffected).
    for bt in (8, 4, 2):
        if n % bt == 0 and n // bt >= 2:
            return bt
    return 1


def basic_critic_pallas(x_nchw, params, use_bf16=True):
    n, c, h, w = x_nchw.shape
    hp, wp = h + 2, w + 2
    p = hp * wp
    p_pad = ((p + 7) // 8) * 8                  # sublane-align per-image row count
    rowpad = ((wp + 1 + 7) // 8) * 8            # row halo covering the largest tap shift
    b_tile = _pick_b_tile(n)
    steps = n // b_tile
    m = b_tile * p_pad
    dot_dtype = jnp.bfloat16 if use_bf16 else jnp.float32

    x_nhwc = jnp.transpose(x_nchw, (0, 2, 3, 1)).astype(jnp.float32)
    slab1 = _im2col_layer1(x_nhwc, h, w, p_pad).reshape(steps, m, 9 * c).astype(dot_dtype)

    (w1, s1), (w2, s2), (w3, s3) = [_fold_block(*blk) for blk in params["blocks"]]
    w1, w2, w3 = (wk.astype(dot_dtype) for wk in (w1, w2, w3))

    wf_oihw, bf = params["final"]
    mask, g = _mask_and_final_weights(wf_oihw, h, w, p_pad)
    mask = jnp.tile(mask, (b_tile, 1))
    g = jnp.tile(g, (b_tile, 1))
    bfm = bf.reshape(1, 1).astype(jnp.float32)

    kernel = functools.partial(_critic_fused_kernel, p_pad=p_pad, b_tile=b_tile,
                               wp=wp, rowpad=rowpad, dot_dtype=dot_dtype)
    out = pl.pallas_call(
        kernel,
        out_shape=jax.ShapeDtypeStruct((steps, b_tile, 1), jnp.float32),
        grid=(steps,),
        in_specs=[
            pl.BlockSpec((None, m, 9 * c), lambda i: (i, 0, 0)),
            pl.BlockSpec(w1.shape, lambda i: (0, 0)),
            pl.BlockSpec(s1.shape, lambda i: (0, 0)),
            pl.BlockSpec(w2.shape, lambda i: (0, 0)),
            pl.BlockSpec(s2.shape, lambda i: (0, 0)),
            pl.BlockSpec(w3.shape, lambda i: (0, 0)),
            pl.BlockSpec(s3.shape, lambda i: (0, 0)),
            pl.BlockSpec(g.shape, lambda i: (0, 0)),
            pl.BlockSpec(bfm.shape, lambda i: (0, 0)),
            pl.BlockSpec(mask.shape, lambda i: (0, 0)),
        ],
        out_specs=pl.BlockSpec((None, b_tile, 1), lambda i: (i, 0, 0)),
        compiler_params=pltpu.CompilerParams(
            dimension_semantics=("parallel",),
            vmem_limit_bytes=32 * 1024 * 1024),   # fits v5e/v6e/v7x; kernel uses << 1 MiB/step
    )(slab1, w1, s1, w2, s2, w3, s3, g, bfm, mask)
    return out.reshape(n, 1, 1, 1)                # matches adaptive_avg_pool2d((1,1))


# ---------------------------------------------------------------------------
# Parameters (deterministic, synthetic, with *general* BN running stats)
# ---------------------------------------------------------------------------
def init_params(key):
    def conv_init(k, cin, cout):
        kw, kb = jax.random.split(k)
        bound = 1.0 / jnp.sqrt(jnp.float32(cin * 9))
        wgt = jax.random.uniform(kw, (cout, cin, 3, 3), jnp.float32, -bound, bound)
        bias = jax.random.uniform(kb, (cout,), jnp.float32, -bound, bound)
        return wgt, bias

    keys = jax.random.split(key, 7)
    chans = [(3, 32), (32, 32), (32, 32)]
    blocks = []
    for i, (cin, cout) in enumerate(chans):
        wgt, bias = conv_init(keys[2 * i], cin, cout)
        kg, kbeta, km, kv = jax.random.split(keys[2 * i + 1], 4)
        gamma = 1.0 + 0.1 * jax.random.normal(kg, (cout,), jnp.float32)
        beta = 0.1 * jax.random.normal(kbeta, (cout,), jnp.float32)
        mean = 0.1 * jax.random.normal(km, (cout,), jnp.float32)
        var = jax.random.uniform(kv, (cout,), jnp.float32, 0.5, 1.5)
        blocks.append((wgt, bias, gamma, beta, mean, var))
    wf, bf = conv_init(keys[6], 32, 1)
    return {"blocks": blocks, "final": (wf, bf)}


# ---------------------------------------------------------------------------
# Pure-JAX reference (NCHW, lax.conv) for correctness checking
# ---------------------------------------------------------------------------
def basic_critic_reference(x_nchw, params):
    dn = ("NCHW", "OIHW", "NCHW")
    x = x_nchw.astype(jnp.float32)
    for (wgt, bias, gamma, beta, mean, var) in params["blocks"]:
        x = lax.conv_general_dilated(x, wgt, (1, 1), "SAME", dimension_numbers=dn)
        x = x + bias[None, :, None, None]
        x = (x - mean[None, :, None, None]) / jnp.sqrt(var[None, :, None, None] + BN_EPS)
        x = x * gamma[None, :, None, None] + beta[None, :, None, None]
        x = jnp.where(x >= 0.0, x, NEG_SLOPE * x)
    wf, bf = params["final"]
    x = lax.conv_general_dilated(x, wf, (1, 1), "SAME", dimension_numbers=dn)
    x = x + bf[None, :, None, None]
    return jnp.mean(x, axis=(2, 3), keepdims=True)   # adaptive_avg_pool2d((1,1))


# ---------------------------------------------------------------------------
if __name__ == "__main__":
    key = jax.random.PRNGKey(0)
    kx, kp = jax.random.split(key)
    x = jax.random.normal(kx, (2, 3, 16, 16), dtype=jnp.float32)   # NCHW like PyTorch
    params = init_params(kp)

    ref = jax.block_until_ready(basic_critic_reference(x, params))

    # f32 MXU debug path: tight check that the kernel math/layout is exact.
    out_f32 = jax.block_until_ready(
        jax.jit(lambda xx: basic_critic_pallas(xx, params, use_bf16=False))(x))
    assert out_f32.shape == (2, 1, 1, 1), out_f32.shape
    assert jnp.allclose(out_f32, ref, rtol=1e-4, atol=1e-4), (out_f32, ref)

    # bf16 MXU fast path (the production configuration): looser tolerance.
    out = jax.block_until_ready(
        jax.jit(lambda xx: basic_critic_pallas(xx, params, use_bf16=True))(x))
    assert out.shape == (2, 1, 1, 1), out.shape
    assert jnp.allclose(out, ref, rtol=2e-2, atol=2e-2), (out, ref)

    print("KERNEL_OK")
</pallas_src>

<mosaic_0001>
module attributes {stable_mosaic.version = 11 : i64} {
  func.func @_critic_fused_kernel(%arg0: i32, %arg1: memref<1x328x27xf32, #tpu.memory_space<vmem>>, %arg2: memref<27x32xf32, #tpu.memory_space<vmem>>, %arg3: memref<1x32xf32, #tpu.memory_space<vmem>>, %arg4: memref<288x32xf32, #tpu.memory_space<vmem>>, %arg5: memref<1x32xf32, #tpu.memory_space<vmem>>, %arg6: memref<288x32xf32, #tpu.memory_space<vmem>>, %arg7: memref<1x32xf32, #tpu.memory_space<vmem>>, %arg8: memref<328x32xf32, #tpu.memory_space<vmem>>, %arg9: memref<1x1xf32, #tpu.memory_space<vmem>>, %arg10: memref<328x1xf32, #tpu.memory_space<vmem>>, %arg11: memref<1x1x1xf32, #tpu.memory_space<vmem>>) attributes {dimension_semantics = [#tpu.dimension_semantics<parallel>], iteration_bounds = array<i64: 2>, scalar_prefetch = 0 : i64, scratch_operands = 0 : i64, tpu.core_type = #tpu.core_type<tc>, window_params = [{transform_indices = @transform_0, window_bounds = array<i64: 1, 328, 27>}, {pipeline_mode = #tpu.pipeline_mode<synchronous>, transform_indices = @transform_1, window_bounds = array<i64: 27, 32>}, {pipeline_mode = #tpu.pipeline_mode<synchronous>, transform_indices = @transform_2, window_bounds = array<i64: 1, 32>}, {pipeline_mode = #tpu.pipeline_mode<synchronous>, transform_indices = @transform_3, window_bounds = array<i64: 288, 32>}, {pipeline_mode = #tpu.pipeline_mode<synchronous>, transform_indices = @transform_4, window_bounds = array<i64: 1, 32>}, {pipeline_mode = #tpu.pipeline_mode<synchronous>, transform_indices = @transform_5, window_bounds = array<i64: 288, 32>}, {pipeline_mode = #tpu.pipeline_mode<synchronous>, transform_indices = @transform_6, window_bounds = array<i64: 1, 32>}, {pipeline_mode = #tpu.pipeline_mode<synchronous>, transform_indices = @transform_7, window_bounds = array<i64: 328, 32>}, {pipeline_mode = #tpu.pipeline_mode<synchronous>, transform_indices = @transform_8, window_bounds = array<i64: 1, 1>}, {pipeline_mode = #tpu.pipeline_mode<synchronous>, transform_indices = @transform_9, window_bounds = array<i64: 328, 1>}, {transform_indices = @transform_10, window_bounds = array<i64: 1, 1, 1>}]} {
    %c0 = arith.constant 0 : index
    %c0_0 = arith.constant 0 : index
    %0 = vector.load %arg10[%c0, %c0_0] : memref<328x1xf32, #tpu.memory_space<vmem>>, vector<328x1xf32>
    %c0_1 = arith.constant 0 : index
    %c0_2 = arith.constant 0 : index
    %c0_3 = arith.constant 0 : index
    %1 = vector.load %arg1[%c0_1, %c0_2, %c0_3] : memref<1x328x27xf32, #tpu.memory_space<vmem>>, vector<1x328x27xf32>
    %2 = vector.shape_cast %1 : vector<1x328x27xf32> to vector<328x27xf32>
    %c0_4 = arith.constant 0 : index
    %c0_5 = arith.constant 0 : index
    %3 = vector.load %arg2[%c0_4, %c0_5] : memref<27x32xf32, #tpu.memory_space<vmem>>, vector<27x32xf32>
    %cst = arith.constant dense<0.000000e+00> : vector<328x32xf32>
    %4 = tpu.matmul %2, %3, %cst {dimension_numbers = #tpu.dot_dimension_numbers<[1], [0], [0], [1], [0, 0, 1, 1], [], []>} : vector<328x27xf32>, vector<27x32xf32>, vector<328x32xf32> -> vector<328x32xf32>
    %c0_6 = arith.constant 0 : index
    %c0_7 = arith.constant 0 : index
    %5 = vector.load %arg3[%c0_6, %c0_7] : memref<1x32xf32, #tpu.memory_space<vmem>>, vector<1x32xf32>
    %6 = vector.broadcast %5 : vector<1x32xf32> to vector<328x32xf32>
    %7 = arith.addf %4, %6 : vector<328x32xf32>
    %cst_8 = arith.constant 0.00999999977 : f32
    %8 = vector.broadcast %cst_8 : f32 to vector<328x32xf32>
    %9 = arith.mulf %8, %7 : vector<328x32xf32>
    %10 = arith.maximumf %7, %9 : vector<328x32xf32>
    %11 = vector.broadcast %0 : vector<328x1xf32> to vector<328x32xf32>
    %12 = arith.mulf %10, %11 : vector<328x32xf32>
    %cst_9 = arith.constant 0.000000e+00 : f32
    %13 = vector.broadcast %cst_9 : f32 to vector<24x32xf32>
    %14 = tpu.concatenate %13, %12, %13 in 0 : vector<24x32xf32>, vector<328x32xf32>, vector<24x32xf32> -> vector<376x32xf32>
    %15 = vector.extract_strided_slice %14 {offsets = [5, 0], sizes = [328, 32], strides = [1, 1]} : vector<376x32xf32> to vector<328x32xf32>
    %16 = vector.extract_strided_slice %14 {offsets = [6, 0], sizes = [328, 32], strides = [1, 1]} : vector<376x32xf32> to vector<328x32xf32>
    %17 = vector.extract_strided_slice %14 {offsets = [7, 0], sizes = [328, 32], strides = [1, 1]} : vector<376x32xf32> to vector<328x32xf32>
    %18 = vector.extract_strided_slice %14 {offsets = [23, 0], sizes = [328, 32], strides = [1, 1]} : vector<376x32xf32> to vector<328x32xf32>
    %19 = vector.extract_strided_slice %14 {offsets = [24, 0], sizes = [328, 32], strides = [1, 1]} : vector<376x32xf32> to vector<328x32xf32>
    %20 = vector.extract_strided_slice %14 {offsets = [25, 0], sizes = [328, 32], strides = [1, 1]} : vector<376x32xf32> to vector<328x32xf32>
    %21 = vector.extract_strided_slice %14 {offsets = [41, 0], sizes = [328, 32], strides = [1, 1]} : vector<376x32xf32> to vector<328x32xf32>
    %22 = vector.extract_strided_slice %14 {offsets = [42, 0], sizes = [328, 32], strides = [1, 1]} : vector<376x32xf32> to vector<328x32xf32>
    %23 = vector.extract_strided_slice %14 {offsets = [43, 0], sizes = [328, 32], strides = [1, 1]} : vector<376x32xf32> to vector<328x32xf32>
    %24 = tpu.concatenate %15, %16, %17, %18, %19, %20, %21, %22, %23 in 1 : vector<328x32xf32>, vector<328x32xf32>, vector<328x32xf32>, vector<328x32xf32>, vector<328x32xf32>, vector<328x32xf32>, vector<328x32xf32>, vector<328x32xf32>, vector<328x32xf32> -> vector<328x288xf32>
    %c0_10 = arith.constant 0 : index
    %c0_11 = arith.constant 0 : index
    %25 = vector.load %arg4[%c0_10, %c0_11] : memref<288x32xf32, #tpu.memory_space<vmem>>, vector<288x32xf32>
    %cst_12 = arith.constant dense<0.000000e+00> : vector<328x32xf32>
    %26 = tpu.matmul %24, %25, %cst_12 {dimension_numbers = #tpu.dot_dimension_numbers<[1], [0], [0], [1], [0, 0, 1, 1], [], []>} : vector<328x288xf32>, vector<288x32xf32>, vector<328x32xf32> -> vector<328x32xf32>
    %c0_13 = arith.constant 0 : index
    %c0_14 = arith.constant 0 : index
    %27 = vector.load %arg5[%c0_13, %c0_14] : memref<1x32xf32, #tpu.memory_space<vmem>>, vector<1x32xf32>
    %28 = vector.broadcast %27 : vector<1x32xf32> to vector<328x32xf32>
    %29 = arith.addf %26, %28 : vector<328x32xf32>
    %cst_15 = arith.constant 0.00999999977 : f32
    %30 = vector.broadcast %cst_15 : f32 to vector<328x32xf32>
    %31 = arith.mulf %30, %29 : vector<328x32xf32>
    %32 = arith.maximumf %29, %31 : vector<328x32xf32>
    %33 = vector.broadcast %0 : vector<328x1xf32> to vector<328x32xf32>
    %34 = arith.mulf %32, %33 : vector<328x32xf32>
    %35 = tpu.concatenate %13, %34, %13 in 0 : vector<24x32xf32>, vector<328x32xf32>, vector<24x32xf32> -> vector<376x32xf32>
    %36 = vector.extract_strided_slice %35 {offsets = [5, 0], sizes = [328, 32], strides = [1, 1]} : vector<376x32xf32> to vector<328x32xf32>
    %37 = vector.extract_strided_slice %35 {offsets = [6, 0], sizes = [328, 32], strides = [1, 1]} : vector<376x32xf32> to vector<328x32xf32>
    %38 = vector.extract_strided_slice %35 {offsets = [7, 0], sizes = [328, 32], strides = [1, 1]} : vector<376x32xf32> to vector<328x32xf32>
    %39 = vector.extract_strided_slice %35 {offsets = [23, 0], sizes = [328, 32], strides = [1, 1]} : vector<376x32xf32> to vector<328x32xf32>
    %40 = vector.extract_strided_slice %35 {offsets = [24, 0], sizes = [328, 32], strides = [1, 1]} : vector<376x32xf32> to vector<328x32xf32>
    %41 = vector.extract_strided_slice %35 {offsets = [25, 0], sizes = [328, 32], strides = [1, 1]} : vector<376x32xf32> to vector<328x32xf32>
    %42 = vector.extract_strided_slice %35 {offsets = [41, 0], sizes = [328, 32], strides = [1, 1]} : vector<376x32xf32> to vector<328x32xf32>
    %43 = vector.extract_strided_slice %35 {offsets = [42, 0], sizes = [328, 32], strides = [1, 1]} : vector<376x32xf32> to vector<328x32xf32>
    %44 = vector.extract_strided_slice %35 {offsets = [43, 0], sizes = [328, 32], strides = [1, 1]} : vector<376x32xf32> to vector<328x32xf32>
    %45 = tpu.concatenate %36, %37, %38, %39, %40, %41, %42, %43, %44 in 1 : vector<328x32xf32>, vector<328x32xf32>, vector<328x32xf32>, vector<328x32xf32>, vector<328x32xf32>, vector<328x32xf32>, vector<328x32xf32>, vector<328x32xf32>, vector<328x32xf32> -> vector<328x288xf32>
    %c0_16 = arith.constant 0 : index
    %c0_17 = arith.constant 0 : index
    %46 = vector.load %arg6[%c0_16, %c0_17] : memref<288x32xf32, #tpu.memory_space<vmem>>, vector<288x32xf32>
    %cst_18 = arith.constant dense<0.000000e+00> : vector<328x32xf32>
    %47 = tpu.matmul %45, %46, %cst_18 {dimension_numbers = #tpu.dot_dimension_numbers<[1], [0], [0], [1], [0, 0, 1, 1], [], []>} : vector<328x288xf32>, vector<288x32xf32>, vector<328x32xf32> -> vector<328x32xf32>
    %c0_19 = arith.constant 0 : index
    %c0_20 = arith.constant 0 : index
    %48 = vector.load %arg7[%c0_19, %c0_20] : memref<1x32xf32, #tpu.memory_space<vmem>>, vector<1x32xf32>
    %49 = vector.broadcast %48 : vector<1x32xf32> to vector<328x32xf32>
    %50 = arith.addf %47, %49 : vector<328x32xf32>
    %cst_21 = arith.constant 0.00999999977 : f32
    %51 = vector.broadcast %cst_21 : f32 to vector<328x32xf32>
    %52 = arith.mulf %51, %50 : vector<328x32xf32>
    %53 = arith.maximumf %50, %52 : vector<328x32xf32>
    %54 = vector.broadcast %0 : vector<328x1xf32> to vector<328x32xf32>
    %55 = arith.mulf %53, %54 : vector<328x32xf32>
    %c0_22 = arith.constant 0 : index
    %c0_23 = arith.constant 0 : index
    %56 = vector.load %arg8[%c0_22, %c0_23] : memref<328x32xf32, #tpu.memory_space<vmem>>, vector<328x32xf32>
    %57 = arith.mulf %55, %56 : vector<328x32xf32>
    %cst_24 = arith.constant dense<0.000000e+00> : vector<32xf32>
    %58 = vector.multi_reduction <add>, %57, %cst_24 [0] : vector<328x32xf32> to vector<32xf32>
    %59 = vector.shape_cast %58 : vector<32xf32> to vector<1x32xf32>
    %cst_25 = arith.constant dense<0.000000e+00> : vector<1xf32>
    %60 = vector.multi_reduction <add>, %59, %cst_25 [1] : vector<1x32xf32> to vector<1xf32>
    %61 = vector.shape_cast %60 : vector<1xf32> to vector<1x1xf32>
    %c0_26 = arith.constant 0 : index
    %c0_27 = arith.constant 0 : index
    %62 = vector.load %arg9[%c0_26, %c0_27] : memref<1x1xf32, #tpu.memory_space<vmem>>, vector<1x1xf32>
    %63 = arith.addf %61, %62 : vector<1x1xf32>
    %c0_28 = arith.constant 0 : index
    %c0_29 = arith.constant 0 : index
    %c0_30 = arith.constant 0 : index
    %64 = vector.load %arg11[%c0_28, %c0_29, %c0_30] : memref<1x1x1xf32, #tpu.memory_space<vmem>>, vector<1x1x1xf32>
    %65 = vector.shape_cast %64 : vector<1x1x1xf32> to vector<1x1xf32>
    %66 = vector.shape_cast %63 : vector<1x1xf32> to vector<1x1x1xf32>
    tpu.vector_store %arg11[%c0_28, %c0_29, %c0_30], %66 {strides = array<i32>} : memref<1x1x1xf32, #tpu.memory_space<vmem>>, vector<1x1x1xf32>,
    return
  }
  func.func @transform_0(%arg0: i32) -> (i32, i32, i32) {
    %c0_i32 = arith.constant 0 : i32
    %c0_i32_0 = arith.constant 0 : i32
    %c0_i32_1 = arith.constant 0 : i32
    return %arg0, %c0_i32, %c0_i32_0 : i32, i32, i32
  }
  func.func @transform_1(%arg0: i32) -> (i32, i32) {
    %c0_i32 = arith.constant 0 : i32
    %c0_i32_0 = arith.constant 0 : i32
    %c0_i32_1 = arith.constant 0 : i32
    return %c0_i32, %c0_i32_0 : i32, i32
  }
  func.func @transform_2(%arg0: i32) -> (i32, i32) {
    %c0_i32 = arith.constant 0 : i32
    %c0_i32_0 = arith.constant 0 : i32
    %c0_i32_1 = arith.constant 0 : i32
    return %c0_i32, %c0_i32_0 : i32, i32
  }
  func.func @transform_3(%arg0: i32) -> (i32, i32) {
    %c0_i32 = arith.constant 0 : i32
    %c0_i32_0 = arith.constant 0 : i32
    %c0_i32_1 = arith.constant 0 : i32
    return %c0_i32, %c0_i32_0 : i32, i32
  }
  func.func @transform_4(%arg0: i32) -> (i32, i32) {
    %c0_i32 = arith.constant 0 : i32
    %c0_i32_0 = arith.constant 0 : i32
    %c0_i32_1 = arith.constant 0 : i32
    return %c0_i32, %c0_i32_0 : i32, i32
  }
  func.func @transform_5(%arg0: i32) -> (i32, i32) {
    %c0_i32 = arith.constant 0 : i32
    %c0_i32_0 = arith.constant 0 : i32
    %c0_i32_1 = arith.constant 0 : i32
    return %c0_i32, %c0_i32_0 : i32, i32
  }
  func.func @transform_6(%arg0: i32) -> (i32, i32) {
    %c0_i32 = arith.constant 0 : i32
    %c0_i32_0 = arith.constant 0 : i32
    %c0_i32_1 = arith.constant 0 : i32
    return %c0_i32, %c0_i32_0 : i32, i32
  }
  func.func @transform_7(%arg0: i32) -> (i32, i32) {
    %c0_i32 = arith.constant 0 : i32
    %c0_i32_0 = arith.constant 0 : i32
    %c0_i32_1 = arith.constant 0 : i32
    return %c0_i32, %c0_i32_0 : i32, i32
  }
  func.func @transform_8(%arg0: i32) -> (i32, i32) {
    %c0_i32 = arith.constant 0 : i32
    %c0_i32_0 = arith.constant 0 : i32
    %c0_i32_1 = arith.constant 0 : i32
    return %c0_i32, %c0_i32_0 : i32, i32
  }
  func.func @transform_9(%arg0: i32) -> (i32, i32) {
    %c0_i32 = arith.constant 0 : i32
    %c0_i32_0 = arith.constant 0 : i32
    %c0_i32_1 = arith.constant 0 : i32
    return %c0_i32, %c0_i32_0 : i32, i32
  }
  func.func @transform_10(%arg0: i32) -> (i32, i32, i32) {
    %c0_i32 = arith.constant 0 : i32
    %c0_i32_0 = arith.constant 0 : i32
    %c0_i32_1 = arith.constant 0 : i32
    return %arg0, %c0_i32, %c0_i32_0 : i32, i32, i32
  }
}

</mosaic_0001>

<llo_original>
// kernel: _lambda_.1
$region0: #{_lambda_.1}
  #allocation0 [shape = 'u32[]', space=smem, size = 0x4, offset = 0x4, fixed_abs, tag = 'smem constant byte address 0x4 - core index']
  #allocation1 [shape = 'u32[144,128]{1,0:T(1,128)}', space=vmem, size = 0x12000, scoped, tag = 'internal scratch']
  #allocation2 [shape = 'f32[1,1]{1,0:T(1,128)S(1)}', space=vmem, size = 0x200, scoped, tag = 'scoped memory for _lambda_.1']
  %s0 = inlined_call_operand.vmem [shape: f32[2,328,27], index: 0, kind: input, shape index: {}]
  %s1 = inlined_call_operand.vmem [shape: f32[27,32], index: 1, kind: input, shape index: {}]
  %s2 = inlined_call_operand.vmem [shape: f32[1,32], index: 2, kind: input, shape index: {}]
  %s3 = inlined_call_operand.vmem [shape: f32[288,32], index: 3, kind: input, shape index: {}]
  %s4 = inlined_call_operand.vmem [shape: f32[1,32], index: 4, kind: input, shape index: {}]
  %s5 = inlined_call_operand.vmem [shape: f32[288,32], index: 5, kind: input, shape index: {}]
  %s6 = inlined_call_operand.vmem [shape: f32[1,32], index: 6, kind: input, shape index: {}]
  %s7 = inlined_call_operand.vmem [shape: f32[328,32], index: 7, kind: input, shape index: {}]
  %s8 = inlined_call_operand.<no memory space> [shape: f32[1,1], index: 8, kind: input, shape index: {}]
  %s9 = inlined_call_operand.vmem [shape: f32[328,1], index: 9, kind: input, shape index: {}]
  %s10 = inlined_call_operand.vmem [shape: f32[2,1,1], index: 10, kind: output, shape index: {}]
  %s11 = sld [smem:[#allocation0]]
  $region73: #{_lambda_.1} parent=0
    _
  %s13 = ssub.s32 1, %s11
  %s14 = scalar_select 0, %s13, %s11
  %v15 = vstv %s8
  %16 = vst [vmem:[#allocation2] sm:$0x1] %v15
  loop: start=0, step=1, limit=4
  $region2: #{_lambda_.1} parent=0 // loop_pre_header
    _
  $region3: #{_lambda_.1} parent=0 // loop_header
    %s18 = sphi 0, %s22
    %p19 = scmp.ge.s32.totalorder %s18, 4
    %s28 = sphi 0, %s30
    %s31 = sphi 0, %s28
    %s32 = sphi 0, %s31
    %s48 = sphi 0, %s32
    %s52 = sphi 0, %s52
    %s54 = sphi 0, %s52
    %s55 = sphi 0, %s54
    %s69 = sphi 0, %s55
    %s73 = sphi 0, %s73
    %s75 = sphi 0, %s73
    %s76 = sphi 0, %s75
    %s90 = sphi 0, %s76
    %s94 = sphi 0, %s94
    %s96 = sphi 0, %s94
    %s97 = sphi 0, %s96
    %s111 = sphi 0, %s97
    %s115 = sphi 0, %s115
    %s117 = sphi 0, %s115
    %s118 = sphi 0, %s117
    %s132 = sphi 0, %s118
    %s136 = sphi 0, %s136
    %s138 = sphi 0, %s136
    %s139 = sphi 0, %s138
    %s153 = sphi 0, %s139
    %s157 = sphi 0, %s157
    %s159 = sphi 0, %s157
    %s160 = sphi 0, %s159
    %s174 = sphi 0, %s160
    %s178 = sphi 0, %s178
    %s180 = sphi 0, %s178
    %s181 = sphi 0, %s180
    %s195 = sphi 0, %s181
    %s199 = sphi 0, %s199
    %s201 = sphi 0, %s199
    %s202 = sphi 0, %s201
    %s216 = sphi 0, %s202
    %s220 = sphi 0, %s220
    %s222 = sphi 0, %s220
    %s223 = sphi 0, %s222
    %s237 = sphi 0, %s223
    %s243 = sphi 0, %s245
    %s246 = sphi 0, %s243
    %s247 = sphi 0, %s246
    %s263 = sphi 0, %s247
  $region4: #{_lambda_.1} parent=0 // loop_header_branch
    %21 = sbr.rel (%p19) target = $region8
  $region5: #{_lambda_.1} parent=0 // loop_body
    %s23 = ssub.s32 %s18, 1
    %s24 = ssub.s32 %s18, 2
    %s25 = sadd.s32 %s18, 1
    %s26 = ssub.s32 %s18, %s25
    %p27 = scmp.eq.s32.totalorder %s26, 0
    %s29 = sadd.s32 %s28, 1
    %s30 = scalar_select %p27, %s28, %s29
    %p33 = pneg %p27
    %p34 = scmp.eq.s32.totalorder %s18, 1
    %p35 = por %p33, %p34
    %p36 = scmp.ne.s32.totalorder %s28, %s31
    %p37 = scmp.eq.s32.totalorder %s18, 0
    %p38 = por %p36, %p37
    %p39 = scmp.ne.s32.totalorder %s28, %s31
    %p40 = scmp.eq.s32.totalorder %s23, 1
    %p41 = por %p39, %p40
    %p42 = scmp.ne.s32.totalorder %s31, %s32
    %p43 = scmp.eq.s32.totalorder %s23, 0
    %p44 = por %p42, %p43
    %p45 = scmp.ne.s32.totalorder %s31, %s32
    %p46 = scmp.eq.s32.totalorder %s24, 1
    %p47 = por %p45, %p46
    %p49 = scmp.ne.s32.totalorder %s32, %s48
    %p50 = scmp.eq.s32.totalorder %s24, 0
    %p51 = por %p49, %p50
    %s53 = sadd.s32 %s52, 1
    %p56 = scmp.eq.s32.totalorder %s18, 1
    %p57 = scmp.ne.s32.totalorder %s52, %s54
    %p58 = scmp.eq.s32.totalorder %s18, 0
    %p59 = por %p57, %p58
    %p60 = scmp.ne.s32.totalorder %s52, %s54
    %p61 = scmp.eq.s32.totalorder %s23, 1
    %p62 = por %p60, %p61
    %p63 = scmp.ne.s32.totalorder %s54, %s55
    %p64 = scmp.eq.s32.totalorder %s23, 0
    %p65 = por %p63, %p64
    %p66 = scmp.ne.s32.totalorder %s54, %s55
    %p67 = scmp.eq.s32.totalorder %s24, 1
    %p68 = por %p66, %p67
    %p70 = scmp.ne.s32.totalorder %s55, %s69
    %p71 = scmp.eq.s32.totalorder %s24, 0
    %p72 = por %p70, %p71
    %s74 = sadd.s32 %s73, 1
    %p77 = scmp.eq.s32.totalorder %s18, 1
    %p78 = scmp.ne.s32.totalorder %s73, %s75
    %p79 = scmp.eq.s32.totalorder %s18, 0
    %p80 = por %p78, %p79
    %p81 = scmp.ne.s32.totalorder %s73, %s75
    %p82 = scmp.eq.s32.totalorder %s23, 1
    %p83 = por %p81, %p82
    %p84 = scmp.ne.s32.totalorder %s75, %s76
    %p85 = scmp.eq.s32.totalorder %s23, 0
    %p86 = por %p84, %p85
    %p87 = scmp.ne.s32.totalorder %s75, %s76
    %p88 = scmp.eq.s32.totalorder %s24, 1
    %p89 = por %p87, %p88
    %p91 = scmp.ne.s32.totalorder %s76, %s90
    %p92 = scmp.eq.s32.totalorder %s24, 0
    %p93 = por %p91, %p92
    %s95 = sadd.s32 %s94, 1
    %p98 = scmp.eq.s32.totalorder %s18, 1
    %p99 = scmp.ne.s32.totalorder %s94, %s96
    %p100 = scmp.eq.s32.totalorder %s18, 0
    %p101 = por %p99, %p100
    %p102 = scmp.ne.s32.totalorder %s94, %s96
    %p103 = scmp.eq.s32.totalorder %s23, 1
    %p104 = por %p102, %p103
    %p105 = scmp.ne.s32.totalorder %s96, %s97
    %p106 = scmp.eq.s32.totalorder %s23, 0
    %p107 = por %p105, %p106
    %p108 = scmp.ne.s32.totalorder %s96, %s97
    %p109 = scmp.eq.s32.totalorder %s24, 1
    %p110 = por %p108, %p109
    %p112 = scmp.ne.s32.totalorder %s97, %s111
    %p113 = scmp.eq.s32.totalorder %s24, 0
    %p114 = por %p112, %p113
    %s116 = sadd.s32 %s115, 1
    %p119 = scmp.eq.s32.totalorder %s18, 1
    %p120 = scmp.ne.s32.totalorder %s115, %s117
    %p121 = scmp.eq.s32.totalorder %s18, 0
    %p122 = por %p120, %p121
    %p123 = scmp.ne.s32.totalorder %s115, %s117
    %p124 = scmp.eq.s32.totalorder %s23, 1
    %p125 = por %p123, %p124
    %p126 = scmp.ne.s32.totalorder %s117, %s118
    %p127 = scmp.eq.s32.totalorder %s23, 0
    %p128 = por %p126, %p127
    %p129 = scmp.ne.s32.totalorder %s117, %s118
    %p130 = scmp.eq.s32.totalorder %s24, 1
    %p131 = por %p129, %p130
    %p133 = scmp.ne.s32.totalorder %s118, %s132
    %p134 = scmp.eq.s32.totalorder %s24, 0
    %p135 = por %p133, %p134
    %s137 = sadd.s32 %s136, 1
    %p140 = scmp.eq.s32.totalorder %s18, 1
    %p141 = scmp.ne.s32.totalorder %s136, %s138
    %p142 = scmp.eq.s32.totalorder %s18, 0
    %p143 = por %p141, %p142
    %p144 = scmp.ne.s32.totalorder %s136, %s138
    %p145 = scmp.eq.s32.totalorder %s23, 1
    %p146 = por %p144, %p145
    %p147 = scmp.ne.s32.totalorder %s138, %s139
    %p148 = scmp.eq.s32.totalorder %s23, 0
    %p149 = por %p147, %p148
    %p150 = scmp.ne.s32.totalorder %s138, %s139
    %p151 = scmp.eq.s32.totalorder %s24, 1
    %p152 = por %p150, %p151
    %p154 = scmp.ne.s32.totalorder %s139, %s153
    %p155 = scmp.eq.s32.totalorder %s24, 0
    %p156 = por %p154, %p155
    %s158 = sadd.s32 %s157, 1
    %p161 = scmp.eq.s32.totalorder %s18, 1
    %p162 = scmp.ne.s32.totalorder %s157, %s159
    %p163 = scmp.eq.s32.totalorder %s18, 0
    %p164 = por %p162, %p163
    %p165 = scmp.ne.s32.totalorder %s157, %s159
    %p166 = scmp.eq.s32.totalorder %s23, 1
    %p167 = por %p165, %p166
    %p168 = scmp.ne.s32.totalorder %s159, %s160
    %p169 = scmp.eq.s32.totalorder %s23, 0
    %p170 = por %p168, %p169
    %p171 = scmp.ne.s32.totalorder %s159, %s160
    %p172 = scmp.eq.s32.totalorder %s24, 1
    %p173 = por %p171, %p172
    %p175 = scmp.ne.s32.totalorder %s160, %s174
    %p176 = scmp.eq.s32.totalorder %s24, 0
    %p177 = por %p175, %p176
    %s179 = sadd.s32 %s178, 1
    %p182 = scmp.eq.s32.totalorder %s18, 1
    %p183 = scmp.ne.s32.totalorder %s178, %s180
    %p184 = scmp.eq.s32.totalorder %s18, 0
    %p185 = por %p183, %p184
    %p186 = scmp.ne.s32.totalorder %s178, %s180
    %p187 = scmp.eq.s32.totalorder %s23, 1
    %p188 = por %p186, %p187
    %p189 = scmp.ne.s32.totalorder %s180, %s181
    %p190 = scmp.eq.s32.totalorder %s23, 0
    %p191 = por %p189, %p190
    %p192 = scmp.ne.s32.totalorder %s180, %s181
    %p193 = scmp.eq.s32.totalorder %s24, 1
    %p194 = por %p192, %p193
    %p196 = scmp.ne.s32.totalorder %s181, %s195
    %p197 = scmp.eq.s32.totalorder %s24, 0
    %p198 = por %p196, %p197
    %s200 = sadd.s32 %s199, 1
    %p203 = scmp.eq.s32.totalorder %s18, 1
    %p204 = scmp.ne.s32.totalorder %s199, %s201
    %p205 = scmp.eq.s32.totalorder %s18, 0
    %p206 = por %p204, %p205
    %p207 = scmp.ne.s32.totalorder %s199, %s201
    %p208 = scmp.eq.s32.totalorder %s23, 1
    %p209 = por %p207, %p208
    %p210 = scmp.ne.s32.totalorder %s201, %s202
    %p211 = scmp.eq.s32.totalorder %s23, 0
    %p212 = por %p210, %p211
    %p213 = scmp.ne.s32.totalorder %s201, %s202
    %p214 = scmp.eq.s32.totalorder %s24, 1
    %p215 = por %p213, %p214
    %p217 = scmp.ne.s32.totalorder %s202, %s216
    %p218 = scmp.eq.s32.totalorder %s24, 0
    %p219 = por %p217, %p218
    %s221 = sadd.s32 %s220, 1
    %p224 = scmp.eq.s32.totalorder %s18, 1
    %p225 = scmp.ne.s32.totalorder %s220, %s222
    %p226 = scmp.eq.s32.totalorder %s18, 0
    %p227 = por %p225, %p226
    %p228 = scmp.ne.s32.totalorder %s220, %s222
    %p229 = scmp.eq.s32.totalorder %s23, 1
    %p230 = por %p228, %p229
    %p231 = scmp.ne.s32.totalorder %s222, %s223
    %p232 = scmp.eq.s32.totalorder %s23, 0
    %p233 = por %p231, %p232
    %p234 = scmp.ne.s32.totalorder %s222, %s223
    %p235 = scmp.eq.s32.totalorder %s24, 1
    %p236 = por %p234, %p235
    %p238 = scmp.ne.s32.totalorder %s223, %s237
    %p239 = scmp.eq.s32.totalorder %s24, 0
    %p240 = por %p238, %p239
    %s241 = ssub.s32 %s18, %s25
    %p242 = scmp.eq.s32.totalorder %s241, 0
    %s244 = sadd.s32 %s243, 1
    %s245 = scalar_select %p242, %s243, %s244
    %p248 = pneg %p242
    %p249 = scmp.eq.s32.totalorder %s18, 1
    %p250 = por %p248, %p249
    %p251 = scmp.ne.s32.totalorder %s243, %s246
    %p252 = scmp.eq.s32.totalorder %s18, 0
    %p253 = por %p251, %p252
    %p254 = scmp.ne.s32.totalorder %s243, %s246
    %p255 = scmp.eq.s32.totalorder %s23, 1
    %p256 = por %p254, %p255
    %p257 = scmp.ne.s32.totalorder %s246, %s247
    %p258 = scmp.eq.s32.totalorder %s23, 0
    %p259 = por %p257, %p258
    %p260 = scmp.ne.s32.totalorder %s246, %s247
    %p261 = scmp.eq.s32.totalorder %s24, 1
    %p262 = por %p260, %p261
    %p264 = scmp.ne.s32.totalorder %s247, %s263
    %p265 = scmp.eq.s32.totalorder %s24, 0
    %p266 = por %p264, %p265
    %p267 = scmp.le.s32.totalorder 1, %s18
    %p268 = scmp.lt.s32.totalorder %s18, 3
    %p269 = pnand %p267, %p268
    %p270 = pneg %p269
    // Predicated region
    $region9: #{_lambda_.1} parent=5 // pred_check
      _
    $region10: #{_lambda_.1} parent=5 // pred_check_branch
      %272 = sbr.rel (%p269) target = $region12
    $region11: #{_lambda_.1} parent=5 // pred_region
      %s273 = ssub.s32 %s18, 1
      // Predicated region
      $region13: #{_lambda_.1} parent=11 // pred_check
        %p274 = pneg %p65
      $region14: #{_lambda_.1} parent=11 // pred_check_branch
        %276 = sbr.rel (%p274) target = $region16
      $region15: #{_lambda_.1} parent=11 // pred_region
        _
      $region16: #{_lambda_.1} parent=11 // pred_fallthru
        _
      // Predicated region
      $region17: #{_lambda_.1} parent=11 // pred_check
        %p277 = pneg %p86
      $region18: #{_lambda_.1} parent=11 // pred_check_branch
        %279 = sbr.rel (%p277) target = $region20
      $region19: #{_lambda_.1} parent=11 // pred_region
        _
      $region20: #{_lambda_.1} parent=11 // pred_fallthru
        _
      // Predicated region
      $region21: #{_lambda_.1} parent=11 // pred_check
        %p280 = pneg %p107
      $region22: #{_lambda_.1} parent=11 // pred_check_branch
        %282 = sbr.rel (%p280) target = $region24
      $region23: #{_lambda_.1} parent=11 // pred_region
        _
      $region24: #{_lambda_.1} parent=11 // pred_fallthru
        _
      // Predicated region
      $region25: #{_lambda_.1} parent=11 // pred_check
        %p283 = pneg %p128
      $region26: #{_lambda_.1} parent=11 // pred_check_branch
        %285 = sbr.rel (%p283) target = $region28
      $region27: #{_lambda_.1} parent=11 // pred_region
        _
      $region28: #{_lambda_.1} parent=11 // pred_fallthru
        _
      // Predicated region
      $region29: #{_lambda_.1} parent=11 // pred_check
        %p286 = pneg %p149
      $region30: #{_lambda_.1} parent=11 // pred_check_branch
        %288 = sbr.rel (%p286) target = $region32
      $region31: #{_lambda_.1} parent=11 // pred_region
        _
      $region32: #{_lambda_.1} parent=11 // pred_fallthru
        _
      // Predicated region
      $region33: #{_lambda_.1} parent=11 // pred_check
        %p289 = pneg %p170
      $region34: #{_lambda_.1} parent=11 // pred_check_branch
        %291 = sbr.rel (%p289) target = $region36
      $region35: #{_lambda_.1} parent=11 // pred_region
        _
      $region36: #{_lambda_.1} parent=11 // pred_fallthru
        _
      // Predicated region
      $region37: #{_lambda_.1} parent=11 // pred_check
        %p292 = pneg %p191
      $region38: #{_lambda_.1} parent=11 // pred_check_branch
        %294 = sbr.rel (%p292) target = $region40
      $region39: #{_lambda_.1} parent=11 // pred_region
        _
      $region40: #{_lambda_.1} parent=11 // pred_fallthru
        _
      // Predicated region
      $region41: #{_lambda_.1} parent=11 // pred_check
        %p295 = pneg %p212
      $region42: #{_lambda_.1} parent=11 // pred_check_branch
        %297 = sbr.rel (%p295) target = $region44
      $region43: #{_lambda_.1} parent=11 // pred_region
        _
      $region44: #{_lambda_.1} parent=11 // pred_fallthru
        _
      // Predicated region
      $region45: #{_lambda_.1} parent=11 // pred_check
        %p298 = pneg %p233
      $region46: #{_lambda_.1} parent=11 // pred_check_branch
        %300 = sbr.rel (%p298) target = $region48
      $region47: #{_lambda_.1} parent=11 // pred_region
        _
      $region48: #{_lambda_.1} parent=11 // pred_fallthru
        _
    $region12: #{_lambda_.1} parent=5 // pred_fallthru
      _
    %p301 = scmp.lt.s32.totalorder %s18, 2
    // Predicated region
    $region49: #{_lambda_.1} parent=5 // pred_check
      %p302 = pneg %p301
    $region50: #{_lambda_.1} parent=5 // pred_check_branch
      %304 = sbr.rel (%p302) target = $region52
    $region51: #{_lambda_.1} parent=5 // pred_region
      // Predicated region
      $region53: #{_lambda_.1} parent=51 // pred_check
        %p305 = pneg %p38
      $region54: #{_lambda_.1} parent=51 // pred_check_branch
        %307 = sbr.rel (%p305) target = $region56
      $region55: #{_lambda_.1} parent=51 // pred_region
        %p308 = scmp.lt.s32.totalorder %s18, 1
        %s309 = scalar_select %p308, %s18, 1
        %s310 = smul.addr %s309, 41
        %s311 = smul.addr %s310, 8
        %s312 = scalar_lea.vmem %s0, %s311
      $region56: #{_lambda_.1} parent=51 // pred_fallthru
        _
    $region52: #{_lambda_.1} parent=5 // pred_fallthru
      _
    %p313 = scmp.le.s32.totalorder 1, %s18
    %p314 = scmp.lt.s32.totalorder %s18, 3
    %p315 = pnand %p313, %p314
    %p316 = pneg %p315
    // Predicated region
    $region57: #{_lambda_.1} parent=5 // pred_check
      _
    $region58: #{_lambda_.1} parent=5 // pred_check_branch
      %318 = sbr.rel (%p315) target = $region60
    $region59: #{_lambda_.1} parent=5 // pred_region
      %s319 = ssub.s32 %s18, 1
      %p320 = scmp.lt.s32.totalorder %s23, 1
      %s321 = scalar_select %p320, %s23, 1
      %s322 = smul.addr %s321, 41
      %s323 = smul.addr %s322, 8
      %s324 = scalar_lea.vmem %s0, %s323
      %p325 = pneg %p44
      %p326 = pneg %p41
      %p327 = pneg %p65
      %p328 = pneg %p62
      %p329 = pneg %p86
      %p330 = pneg %p83
      %p331 = pneg %p107
      %p332 = pneg %p104
      %p333 = pneg %p128
      %p334 = pneg %p125
      %p335 = pneg %p149
      %p336 = pneg %p146
      %p337 = pneg %p170
      %p338 = pneg %p167
      %p339 = pneg %p191
      %p340 = pneg %p188
      %p341 = pneg %p212
      %p342 = pneg %p209
      %p343 = pneg %p233
      %p344 = pneg %p230
      %p345 = pneg %p259
      %p346 = pneg %p256
      %p347 = scmp.lt.s32.totalorder %s23, 1
      %s348 = scalar_select %p347, %s23, 1
      %s349 = scalar_lea.vmem %s10, %s348
      %p350 = scmp.lt.s32.totalorder %s23, 1
      %s351 = scalar_select %p350, %s23, 1
      %s352 = smul.addr %s351, 41
      %s353 = smul.addr %s352, 8
      %s354 = scalar_lea.vmem %s0, %s353
      %p355 = scmp.lt.s32.totalorder %s23, 1
      %s356 = scalar_select %p355, %s23, 1
      %s357 = scalar_lea.vmem %s10, %s356
      %v358 = vld [vmem:[%s9] sm:$0xff]
      %v359 = vld [vmem:[%s9 + $0x8] sm:$0xff]
      %v360 = vld [vmem:[%s9 + $0x10] sm:$0xff]
      %v361 = vld [vmem:[%s9 + $0x18] sm:$0xff]
      %v362 = vld [vmem:[%s9 + $0x20] sm:$0xff]
      %v363 = vld [vmem:[%s9 + $0x28] sm:$0xff]
      %v364 = vld [vmem:[%s9 + $0x30] sm:$0xff]
      %v365 = vld [vmem:[%s9 + $0x38] sm:$0xff]
      %v366 = vld [vmem:[%s9 + $0x40] sm:$0xff]
      %v367 = vld [vmem:[%s9 + $0x48] sm:$0xff]
      %v368 = vld [vmem:[%s9 + $0x50] sm:$0xff]
      %v369 = vld [vmem:[%s9 + $0x58] sm:$0xff]
      %v370 = vld [vmem:[%s9 + $0x60] sm:$0xff]
      %v371 = vld [vmem:[%s9 + $0x68] sm:$0xff]
      %v372 = vld [vmem:[%s9 + $0x70] sm:$0xff]
      %v373 = vld [vmem:[%s9 + $0x78] sm:$0xff]
      %v374 = vld [vmem:[%s9 + $0x80] sm:$0xff]
      %v375 = vld [vmem:[%s9 + $0x88] sm:$0xff]
      %v376 = vld [vmem:[%s9 + $0x90] sm:$0xff]
      %v377 = vld [vmem:[%s9 + $0x98] sm:$0xff]
      %v378 = vld [vmem:[%s9 + $0xa0] sm:$0xff]
      %v379 = vld [vmem:[%s9 + $0xa8] sm:$0xff]
      %v380 = vld [vmem:[%s9 + $0xb0] sm:$0xff]
      %v381 = vld [vmem:[%s9 + $0xb8] sm:$0xff]
      %v382 = vld [vmem:[%s9 + $0xc0] sm:$0xff]
      %v383 = vld [vmem:[%s9 + $0xc8] sm:$0xff]
      %v384 = vld [vmem:[%s9 + $0xd0] sm:$0xff]
      %v385 = vld [vmem:[%s9 + $0xd8] sm:$0xff]
      %v386 = vld [vmem:[%s9 + $0xe0] sm:$0xff]
      %v387 = vld [vmem:[%s9 + $0xe8] sm:$0xff]
      %v388 = vld [vmem:[%s9 + $0xf0] sm:$0xff]
      %v389 = vld [vmem:[%s9 + $0xf8] sm:$0xff]
      %v390 = vld [vmem:[%s9 + $0x100] sm:$0xff]
      %v391 = vld [vmem:[%s9 + $0x108] sm:$0xff]
      %v392 = vld [vmem:[%s9 + $0x110] sm:$0xff]
      %v393 = vld [vmem:[%s9 + $0x118] sm:$0xff]
      %v394 = vld [vmem:[%s9 + $0x120] sm:$0xff]
      %v395 = vld [vmem:[%s9 + $0x128] sm:$0xff]
      %v396 = vld [vmem:[%s9 + $0x130] sm:$0xff]
      %v397 = vld [vmem:[%s9 + $0x138] sm:$0xff]
      %v398 = vld [vmem:[%s9 + $0x140] sm:$0xff]
      %v399 = vld [vmem:[%s354] sm:$0xff]
      %v400 = vld [vmem:[%s354 + $0x8] sm:$0xff]
      %v401 = vld [vmem:[%s354 + $0x10] sm:$0xff]
      %v402 = vld [vmem:[%s354 + $0x18] sm:$0xff]
      %v403 = vld [vmem:[%s354 + $0x20] sm:$0xff]
      %v404 = vld [vmem:[%s354 + $0x28] sm:$0xff]
      %v405 = vld [vmem:[%s354 + $0x30] sm:$0xff]
      %v406 = vld [vmem:[%s354 + $0x38] sm:$0xff]
      %v407 = vld [vmem:[%s354 + $0x40] sm:$0xff]
      %v408 = vld [vmem:[%s354 + $0x48] sm:$0xff]
      %v409 = vld [vmem:[%s354 + $0x50] sm:$0xff]
      %v410 = vld [vmem:[%s354 + $0x58] sm:$0xff]
      %v411 = vld [vmem:[%s354 + $0x60] sm:$0xff]
      %v412 = vld [vmem:[%s354 + $0x68] sm:$0xff]
      %v413 = vld [vmem:[%s354 + $0x70] sm:$0xff]
      %v414 = vld [vmem:[%s354 + $0x78] sm:$0xff]
      %v415 = vld [vmem:[%s354 + $0x80] sm:$0xff]
      %v416 = vld [vmem:[%s354 + $0x88] sm:$0xff]
      %v417 = vld [vmem:[%s354 + $0x90] sm:$0xff]
      %v418 = vld [vmem:[%s354 + $0x98] sm:$0xff]
      %v419 = vld [vmem:[%s354 + $0xa0] sm:$0xff]
      %v420 = vld [vmem:[%s354 + $0xa8] sm:$0xff]
      %v421 = vld [vmem:[%s354 + $0xb0] sm:$0xff]
      %v422 = vld [vmem:[%s354 + $0xb8] sm:$0xff]
      %v423 = vld [vmem:[%s354 + $0xc0] sm:$0xff]
      %v424 = vld [vmem:[%s354 + $0xc8] sm:$0xff]
      %v425 = vld [vmem:[%s354 + $0xd0] sm:$0xff]
      %v426 = vld [vmem:[%s354 + $0xd8] sm:$0xff]
      %v427 = vld [vmem:[%s354 + $0xe0] sm:$0xff]
      %v428 = vld [vmem:[%s354 + $0xe8] sm:$0xff]
      %v429 = vld [vmem:[%s354 + $0xf0] sm:$0xff]
      %v430 = vld [vmem:[%s354 + $0xf8] sm:$0xff]
      %v431 = vld [vmem:[%s354 + $0x100] sm:$0xff]
      %v432 = vld [vmem:[%s354 + $0x108] sm:$0xff]
      %v433 = vld [vmem:[%s354 + $0x110] sm:$0xff]
      %v434 = vld [vmem:[%s354 + $0x118] sm:$0xff]
      %v435 = vld [vmem:[%s354 + $0x120] sm:$0xff]
      %v436 = vld [vmem:[%s354 + $0x128] sm:$0xff]
      %v437 = vld [vmem:[%s354 + $0x130] sm:$0xff]
      %v438 = vld [vmem:[%s354 + $0x138] sm:$0xff]
      %v439 = vld [vmem:[%s354 + $0x140] sm:$0xff]
      %v440 = vld [vmem:[%s1] sm:$0xff]
      %v441 = vld [vmem:[%s1 + $0x8] sm:$0xff]
      %v442 = vld [vmem:[%s1 + $0x10] sm:$0xff]
      %v443 = vld [vmem:[%s1 + $0x18] sm:$0x7]
      %v444 = vld [vmem:[%s2] sm:$0x1]
      %v446 = vlaneseq
      %v447 = vshrl.u32 %v446, 7
      %v448 = vsub.s32 0, %v447
      %v449 = vrot.slane %v444, %v448
      %vm451 = vcmask 220160
      %v453 = vsel %vm451, %v399, 0
      %v456 = vsel %vm451, %v400, 0
      %v459 = vsel %vm451, %v401, 0
      %v462 = vsel %vm451, %v402, 0
      %v465 = vsel %vm451, %v403, 0
      %v468 = vsel %vm451, %v404, 0
      %v471 = vsel %vm451, %v405, 0
      %v474 = vsel %vm451, %v406, 0
      %v477 = vsel %vm451, %v407, 0
      %v480 = vsel %vm451, %v408, 0
      %v483 = vsel %vm451, %v409, 0
      %v486 = vsel %vm451, %v410, 0
      %v489 = vsel %vm451, %v411, 0
      %v492 = vsel %vm451, %v412, 0
      %v495 = vsel %vm451, %v413, 0
      %v498 = vsel %vm451, %v414, 0
      %v501 = vsel %vm451, %v415, 0
      %v504 = vsel %vm451, %v416, 0
      %v507 = vsel %vm451, %v417, 0
      %v510 = vsel %vm451, %v418, 0
      %v513 = vsel %vm451, %v419, 0
      %v516 = vsel %vm451, %v420, 0
      %v519 = vsel %vm451, %v421, 0
      %v522 = vsel %vm451, %v422, 0
      %v525 = vsel %vm451, %v423, 0
      %v528 = vsel %vm451, %v424, 0
      %v531 = vsel %vm451, %v425, 0
      %v534 = vsel %vm451, %v426, 0
      %v537 = vsel %vm451, %v427, 0
      %v540 = vsel %vm451, %v428, 0
      %v543 = vsel %vm451, %v429, 0
      %v546 = vsel %vm451, %v430, 0
      %v549 = vsel %vm451, %v431, 0
      %v552 = vsel %vm451, %v432, 0
      %v555 = vsel %vm451, %v433, 0
      %v558 = vsel %vm451, %v434, 0
      %v561 = vsel %vm451, %v435, 0
      %v564 = vsel %vm451, %v436, 0
      %v567 = vsel %vm451, %v437, 0
      %v570 = vsel %vm451, %v438, 0
      %v573 = vsel %vm451, %v439, 0
      %vm575 = vcmask 1042432
      %v577 = vsel %vm575, %v443, 0
      %579 = vmatprep.subr.mxu0 0.0
      %580 = vmatpush1.msra.mxu0 0.0
      %581 = vmatprep.subr.mxu0 0.0
      %582 = vmatpush1.msra.mxu0 0.0
      %583 = vmatprep.subr.mxu0 0.0
      %584 = vmatpush1.msra.mxu0 0.0
      %585 = vmatprep.subr.mxu0 0.0
      %586 = vmatpush1.msra.mxu0 0.0
      %587 = vmatprep.subr.mxu0 0.0
      %588 = vmatpush1.msra.mxu0 0.0
      %589 = vmatprep.subr.mxu0 0.0
      %590 = vmatpush1.msra.mxu0 0.0
      %591 = vmatprep.subr.mxu0 0.0
      %592 = vmatpush1.msra.mxu0 0.0
      %593 = vmatprep.subr.mxu0 0.0
      %594 = vmatpush1.msra.mxu0 0.0
      %595 = vmatprep.subr.mxu0 0.0
      %596 = vmatpush1.msra.mxu0 0.0
      %597 = vmatprep.subr.mxu0 0.0
      %598 = vmatpush1.msra.mxu0 0.0
      %599 = vmatprep.subr.mxu0 0.0
      %600 = vmatpush1.msra.mxu0 0.0
      %601 = vmatprep.subr.mxu0 0.0
      %602 = vmatpush1.msra.mxu0 0.0
      %603 = vmatprep.subr.mxu0 0.0
      %604 = vmatpush1.msra.mxu0 %v577
      %605 = vmatprep.subr.mxu0 0.0
      %606 = vmatpush1.msra.mxu0 %v442
      %607 = vmatprep.subr.mxu0 0.0
      %608 = vmatpush1.msra.mxu0 %v441
      %609 = vmatprep.subr.mxu0 0.0
      %610 = vmatpush1.msra.mxu0 %v440
      %611 = vmatprep.subr.mxu0 0.0
      %612 = vmatpush2.msra.mxu0 0.0
      %613 = vmatprep.subr.mxu0 0.0
      %614 = vmatpush2.msra.mxu0 0.0
      %615 = vmatprep.subr.mxu0 0.0
      %616 = vmatpush2.msra.mxu0 0.0
      %617 = vmatprep.subr.mxu0 0.0
      %618 = vmatpush2.msra.mxu0 0.0
      %619 = vmatprep.subr.mxu0 0.0
      %620 = vmatpush2.msra.mxu0 0.0
      %621 = vmatprep.subr.mxu0 0.0
      %622 = vmatpush2.msra.mxu0 0.0
      %623 = vmatprep.subr.mxu0 0.0
      %624 = vmatpush2.msra.mxu0 0.0
      %625 = vmatprep.subr.mxu0 0.0
      %626 = vmatpush2.msra.mxu0 0.0
      %627 = vmatprep.subr.mxu0 0.0
      %628 = vmatpush2.msra.mxu0 0.0
      %629 = vmatprep.subr.mxu0 0.0
      %630 = vmatpush2.msra.mxu0 0.0
      %631 = vmatprep.subr.mxu0 0.0
      %632 = vmatpush2.msra.mxu0 0.0
      %633 = vmatprep.subr.mxu0 0.0
      %634 = vmatpush2.msra.mxu0 0.0
      %635 = vmatprep.subr.mxu0 0.0
      %636 = vmatpush2.msra.mxu0 0.0
      %637 = vmatprep.subr.mxu0 0.0
      %638 = vmatpush2.msra.mxu0 0.0
      %639 = vmatprep.subr.mxu0 0.0
      %640 = vmatpush2.msra.mxu0 0.0
      %641 = vmatprep.subr.mxu0 0.0
      %642 = vmatpush2.msra.mxu0 0.0
      %643 = vmatprep.mubr.f32.mxu0 0.0
      %644 = vmatmul.mubr.f32.gmra.mxu0 %v453
      %v645 = vpop.f32.mrf.mxu0
      %v646 = vadd.f32 %v449, %v645
      %v647 = vpop.f32.mrf.mxu0
      %648 = vmatprep.mubr.f32.mxu0 0.0
      %649 = vmatmul.mubr.f32.gmra.mxu0 %v456
      %v650 = vpop.f32.mrf.mxu0
      %v651 = vadd.f32 %v449, %v650
      %v652 = vpop.f32.mrf.mxu0
      %653 = vmatprep.mubr.f32.mxu0 0.0
      %654 = vmatmul.mubr.f32.gmra.mxu0 %v459
      %v655 = vpop.f32.mrf.mxu0
      %v656 = vadd.f32 %v449, %v655
      %v657 = vpop.f32.mrf.mxu0
      %658 = vmatprep.mubr.f32.mxu0 0.0
      %659 = vmatmul.mubr.f32.gmra.mxu0 %v462
      %v660 = vpop.f32.mrf.mxu0
      %v661 = vadd.f32 %v449, %v660
      %v662 = vpop.f32.mrf.mxu0
      %663 = vmatprep.mubr.f32.mxu0 0.0
      %664 = vmatmul.mubr.f32.gmra.mxu0 %v465
      %v665 = vpop.f32.mrf.mxu0
      %v666 = vadd.f32 %v449, %v665
      %v667 = vpop.f32.mrf.mxu0
      %668 = vmatprep.mubr.f32.mxu0 0.0
      %669 = vmatmul.mubr.f32.gmra.mxu0 %v468
      %v670 = vpop.f32.mrf.mxu0
      %v671 = vadd.f32 %v449, %v670
      %v672 = vpop.f32.mrf.mxu0
      %673 = vmatprep.mubr.f32.mxu0 0.0
      %674 = vmatmul.mubr.f32.gmra.mxu0 %v471
      %v675 = vpop.f32.mrf.mxu0
      %v676 = vadd.f32 %v449, %v675
      %v677 = vpop.f32.mrf.mxu0
      %678 = vmatprep.mubr.f32.mxu0 0.0
      %679 = vmatmul.mubr.f32.gmra.mxu0 %v474
      %v680 = vpop.f32.mrf.mxu0
      %v681 = vadd.f32 %v449, %v680
      %v682 = vpop.f32.mrf.mxu0
      %683 = vmatprep.mubr.f32.mxu0 0.0
      %684 = vmatmul.mubr.f32.gmra.mxu0 %v477
      %v685 = vpop.f32.mrf.mxu0
      %v686 = vadd.f32 %v449, %v685
      %v687 = vpop.f32.mrf.mxu0
      %688 = vmatprep.mubr.f32.mxu0 0.0
      %689 = vmatmul.mubr.f32.gmra.mxu0 %v480
      %v690 = vpop.f32.mrf.mxu0
      %v691 = vadd.f32 %v449, %v690
      %v692 = vpop.f32.mrf.mxu0
      %693 = vmatprep.mubr.f32.mxu0 0.0
      %694 = vmatmul.mubr.f32.gmra.mxu0 %v483
      %v695 = vpop.f32.mrf.mxu0
      %v696 = vadd.f32 %v449, %v695
      %v697 = vpop.f32.mrf.mxu0
      %698 = vmatprep.mubr.f32.mxu0 0.0
      %699 = vmatmul.mubr.f32.gmra.mxu0 %v486
      %v700 = vpop.f32.mrf.mxu0
      %v701 = vadd.f32 %v449, %v700
      %v702 = vpop.f32.mrf.mxu0
      %703 = vmatprep.mubr.f32.mxu0 0.0
      %704 = vmatmul.mubr.f32.gmra.mxu0 %v489
      %v705 = vpop.f32.mrf.mxu0
      %v706 = vadd.f32 %v449, %v705
      %v707 = vpop.f32.mrf.mxu0
      %708 = vmatprep.mubr.f32.mxu0 0.0
      %709 = vmatmul.mubr.f32.gmra.mxu0 %v492
      %v710 = vpop.f32.mrf.mxu0
      %v711 = vadd.f32 %v449, %v710
      %v712 = vpop.f32.mrf.mxu0
      %713 = vmatprep.mubr.f32.mxu0 0.0
      %714 = vmatmul.mubr.f32.gmra.mxu0 %v495
      %v715 = vpop.f32.mrf.mxu0
      %v716 = vadd.f32 %v449, %v715
      %v717 = vpop.f32.mrf.mxu0
      %718 = vmatprep.mubr.f32.mxu0 0.0
      %719 = vmatmul.mubr.f32.gmra.mxu0 %v498
      %v720 = vpop.f32.mrf.mxu0
      %v721 = vadd.f32 %v449, %v720
      %v722 = vpop.f32.mrf.mxu0
      %723 = vmatprep.mubr.f32.mxu0 0.0
      %724 = vmatmul.mubr.f32.gmra.mxu0 %v501
      %v725 = vpop.f32.mrf.mxu0
      %v726 = vadd.f32 %v449, %v725
      %v727 = vpop.f32.mrf.mxu0
      %728 = vmatprep.mubr.f32.mxu0 0.0
      %729 = vmatmul.mubr.f32.gmra.mxu0 %v504
      %v730 = vpop.f32.mrf.mxu0
      %v731 = vadd.f32 %v449, %v730
      %v732 = vpop.f32.mrf.mxu0
      %733 = vmatprep.mubr.f32.mxu0 0.0
      %734 = vmatmul.mubr.f32.gmra.mxu0 %v507
      %v735 = vpop.f32.mrf.mxu0
      %v736 = vadd.f32 %v449, %v735
      %v737 = vpop.f32.mrf.mxu0
      %738 = vmatprep.mubr.f32.mxu0 0.0
      %739 = vmatmul.mubr.f32.gmra.mxu0 %v510
      %v740 = vpop.f32.mrf.mxu0
      %v741 = vadd.f32 %v449, %v740
      %v742 = vpop.f32.mrf.mxu0
      %743 = vmatprep.mubr.f32.mxu0 0.0
      %744 = vmatmul.mubr.f32.gmra.mxu0 %v513
      %v745 = vpop.f32.mrf.mxu0
      %v746 = vadd.f32 %v449, %v745
      %v747 = vpop.f32.mrf.mxu0
      %748 = vmatprep.mubr.f32.mxu0 0.0
      %749 = vmatmul.mubr.f32.gmra.mxu0 %v516
      %v750 = vpop.f32.mrf.mxu0
      %v751 = vadd.f32 %v449, %v750
      %v752 = vpop.f32.mrf.mxu0
      %753 = vmatprep.mubr.f32.mxu0 0.0
      %754 = vmatmul.mubr.f32.gmra.mxu0 %v519
      %v755 = vpop.f32.mrf.mxu0
      %v756 = vadd.f32 %v449, %v755
      %v757 = vpop.f32.mrf.mxu0
      %758 = vmatprep.mubr.f32.mxu0 0.0
      %759 = vmatmul.mubr.f32.gmra.mxu0 %v522
      %v760 = vpop.f32.mrf.mxu0
      %v761 = vadd.f32 %v449, %v760
      %v762 = vpop.f32.mrf.mxu0
      %763 = vmatprep.mubr.f32.mxu0 0.0
      %764 = vmatmul.mubr.f32.gmra.mxu0 %v525
      %v765 = vpop.f32.mrf.mxu0
      %v766 = vadd.f32 %v449, %v765
      %v767 = vpop.f32.mrf.mxu0
      %768 = vmatprep.mubr.f32.mxu0 0.0
      %769 = vmatmul.mubr.f32.gmra.mxu0 %v528
      %v770 = vpop.f32.mrf.mxu0
      %v771 = vadd.f32 %v449, %v770
      %v772 = vpop.f32.mrf.mxu0
      %773 = vmatprep.mubr.f32.mxu0 0.0
      %774 = vmatmul.mubr.f32.gmra.mxu0 %v531
      %v775 = vpop.f32.mrf.mxu0
      %v776 = vadd.f32 %v449, %v775
      %v777 = vpop.f32.mrf.mxu0
      %778 = vmatprep.mubr.f32.mxu0 0.0
      %779 = vmatmul.mubr.f32.gmra.mxu0 %v534
      %v780 = vpop.f32.mrf.mxu0
      %v781 = vadd.f32 %v449, %v780
      %v782 = vpop.f32.mrf.mxu0
      %783 = vmatprep.mubr.f32.mxu0 0.0
      %784 = vmatmul.mubr.f32.gmra.mxu0 %v537
      %v785 = vpop.f32.mrf.mxu0
      %v786 = vadd.f32 %v449, %v785
      %v787 = vpop.f32.mrf.mxu0
      %788 = vmatprep.mubr.f32.mxu0 0.0
      %789 = vmatmul.mubr.f32.gmra.mxu0 %v540
      %v790 = vpop.f32.mrf.mxu0
      %v791 = vadd.f32 %v449, %v790
      %v792 = vpop.f32.mrf.mxu0
      %793 = vmatprep.mubr.f32.mxu0 0.0
      %794 = vmatmul.mubr.f32.gmra.mxu0 %v543
      %v795 = vpop.f32.mrf.mxu0
      %v796 = vadd.f32 %v449, %v795
      %v797 = vpop.f32.mrf.mxu0
      %798 = vmatprep.mubr.f32.mxu0 0.0
      %799 = vmatmul.mubr.f32.gmra.mxu0 %v546
      %v800 = vpop.f32.mrf.mxu0
      %v801 = vadd.f32 %v449, %v800
      %v802 = vpop.f32.mrf.mxu0
      %803 = vmatprep.mubr.f32.mxu0 0.0
      %804 = vmatmul.mubr.f32.gmra.mxu0 %v549
      %v805 = vpop.f32.mrf.mxu0
      %v806 = vadd.f32 %v449, %v805
      %v807 = vpop.f32.mrf.mxu0
      %808 = vmatprep.mubr.f32.mxu0 0.0
      %809 = vmatmul.mubr.f32.gmra.mxu0 %v552
      %v810 = vpop.f32.mrf.mxu0
      %v811 = vadd.f32 %v449, %v810
      %v812 = vpop.f32.mrf.mxu0
      %813 = vmatprep.mubr.f32.mxu0 0.0
      %814 = vmatmul.mubr.f32.gmra.mxu0 %v555
      %v815 = vpop.f32.mrf.mxu0
      %v816 = vadd.f32 %v449, %v815
      %v817 = vpop.f32.mrf.mxu0
      %818 = vmatprep.mubr.f32.mxu0 0.0
      %819 = vmatmul.mubr.f32.gmra.mxu0 %v558
      %v820 = vpop.f32.mrf.mxu0
      %v821 = vadd.f32 %v449, %v820
      %v822 = vpop.f32.mrf.mxu0
      %823 = vmatprep.mubr.f32.mxu0 0.0
      %824 = vmatmul.mubr.f32.gmra.mxu0 %v561
      %v825 = vpop.f32.mrf.mxu0
      %v826 = vadd.f32 %v449, %v825
      %v827 = vpop.f32.mrf.mxu0
      %828 = vmatprep.mubr.f32.mxu0 0.0
      %829 = vmatmul.mubr.f32.gmra.mxu0 %v564
      %v830 = vpop.f32.mrf.mxu0
      %v831 = vadd.f32 %v449, %v830
      %v832 = vpop.f32.mrf.mxu0
      %833 = vmatprep.mubr.f32.mxu0 0.0
      %834 = vmatmul.mubr.f32.gmra.mxu0 %v567
      %v835 = vpop.f32.mrf.mxu0
      %v836 = vadd.f32 %v449, %v835
      %v837 = vpop.f32.mrf.mxu0
      %838 = vmatprep.mubr.f32.mxu0 0.0
      %839 = vmatmul.mubr.f32.gmra.mxu0 %v570
      %v840 = vpop.f32.mrf.mxu0
      %v841 = vadd.f32 %v449, %v840
      %v842 = vpop.f32.mrf.mxu0
      %843 = vmatprep.mubr.f32.mxu0 0.0
      %844 = vmatmul.mubr.f32.gmra.mxu0 %v573
      %v845 = vpop.f32.mrf.mxu0
      %v846 = vadd.f32 %v449, %v845
      %v847 = vpop.f32.mrf.mxu0
      %848 = vdwg.mxu0
      %v849 = vmul.f32 %v646, 0.01
      %v850 = vmul.f32 %v651, 0.01
      %v851 = vmul.f32 %v656, 0.01
      %v852 = vmul.f32 %v661, 0.01
      %v853 = vmul.f32 %v666, 0.01
      %v854 = vmul.f32 %v671, 0.01
      %v855 = vmul.f32 %v676, 0.01
      %v856 = vmul.f32 %v681, 0.01
      %v857 = vmul.f32 %v686, 0.01
      %v858 = vmul.f32 %v691, 0.01
      %v859 = vmul.f32 %v696, 0.01
      %v860 = vmul.f32 %v701, 0.01
      %v861 = vmul.f32 %v706, 0.01
      %v862 = vmul.f32 %v711, 0.01
      %v863 = vmul.f32 %v716, 0.01
      %v864 = vmul.f32 %v721, 0.01
      %v865 = vmul.f32 %v726, 0.01
      %v866 = vmul.f32 %v731, 0.01
      %v867 = vmul.f32 %v736, 0.01
      %v868 = vmul.f32 %v741, 0.01
      %v869 = vmul.f32 %v746, 0.01
      %v870 = vmul.f32 %v751, 0.01
      %v871 = vmul.f32 %v756, 0.01
      %v872 = vmul.f32 %v761, 0.01
      %v873 = vmul.f32 %v766, 0.01
      %v874 = vmul.f32 %v771, 0.01
      %v875 = vmul.f32 %v776, 0.01
      %v876 = vmul.f32 %v781, 0.01
      %v877 = vmul.f32 %v786, 0.01
      %v878 = vmul.f32 %v791, 0.01
      %v879 = vmul.f32 %v796, 0.01
      %v880 = vmul.f32 %v801, 0.01
      %v881 = vmul.f32 %v806, 0.01
      %v882 = vmul.f32 %v811, 0.01
      %v883 = vmul.f32 %v816, 0.01
      %v884 = vmul.f32 %v821, 0.01
      %v885 = vmul.f32 %v826, 0.01
      %v886 = vmul.f32 %v831, 0.01
      %v887 = vmul.f32 %v836, 0.01
      %v888 = vmul.f32 %v841, 0.01
      %v889 = vmul.f32 %v846, 0.01
      %v890 = vmax.f32 %v646, %v849
      %v891 = vmax.f32 %v651, %v850
      %v892 = vmax.f32 %v656, %v851
      %v893 = vmax.f32 %v661, %v852
      %v894 = vmax.f32 %v666, %v853
      %v895 = vmax.f32 %v671, %v854
      %v896 = vmax.f32 %v676, %v855
      %v897 = vmax.f32 %v681, %v856
      %v898 = vmax.f32 %v686, %v857
      %v899 = vmax.f32 %v691, %v858
      %v900 = vmax.f32 %v696, %v859
      %v901 = vmax.f32 %v701, %v860
      %v902 = vmax.f32 %v706, %v861
      %v903 = vmax.f32 %v711, %v862
      %v904 = vmax.f32 %v716, %v863
      %v905 = vmax.f32 %v721, %v864
      %v906 = vmax.f32 %v726, %v865
      %v907 = vmax.f32 %v731, %v866
      %v908 = vmax.f32 %v736, %v867
      %v909 = vmax.f32 %v741, %v868
      %v910 = vmax.f32 %v746, %v869
      %v911 = vmax.f32 %v751, %v870
      %v912 = vmax.f32 %v756, %v871
      %v913 = vmax.f32 %v761, %v872
      %v914 = vmax.f32 %v766, %v873
      %v915 = vmax.f32 %v771, %v874
      %v916 = vmax.f32 %v776, %v875
      %v917 = vmax.f32 %v781, %v876
      %v918 = vmax.f32 %v786, %v877
      %v919 = vmax.f32 %v791, %v878
      %v920 = vmax.f32 %v796, %v879
      %v921 = vmax.f32 %v801, %v880
      %v922 = vmax.f32 %v806, %v881
      %v923 = vmax.f32 %v811, %v882
      %v924 = vmax.f32 %v816, %v883
      %v925 = vmax.f32 %v821, %v884
      %v926 = vmax.f32 %v826, %v885
      %v927 = vmax.f32 %v831, %v886
      %v928 = vmax.f32 %v836, %v887
      %v929 = vmax.f32 %v841, %v888
      %v930 = vmax.f32 %v846, %v889
      %932 = vset.pattern.permute.xlu0 0
      %933 = vperm.xlu0 %932, %v358
      %v934 = vpop.permute.xlu0 %933
      %937 = vset.pattern.permute.xlu0 0
      %938 = vperm.xlu0 %937, %v359
      %v939 = vpop.permute.xlu0 %938
      %942 = vset.pattern.permute.xlu0 0
      %943 = vperm.xlu0 %942, %v360
      %v944 = vpop.permute.xlu0 %943
      %947 = vset.pattern.permute.xlu0 0
      %948 = vperm.xlu0 %947, %v361
      %v949 = vpop.permute.xlu0 %948
      %952 = vset.pattern.permute.xlu0 0
      %953 = vperm.xlu0 %952, %v362
      %v954 = vpop.permute.xlu0 %953
      %957 = vset.pattern.permute.xlu0 0
      %958 = vperm.xlu0 %957, %v363
      %v959 = vpop.permute.xlu0 %958
      %962 = vset.pattern.permute.xlu0 0
      %963 = vperm.xlu0 %962, %v364
      %v964 = vpop.permute.xlu0 %963
      %967 = vset.pattern.permute.xlu0 0
      %968 = vperm.xlu0 %967, %v365
      %v969 = vpop.permute.xlu0 %968
      %972 = vset.pattern.permute.xlu0 0
      %973 = vperm.xlu0 %972, %v366
      %v974 = vpop.permute.xlu0 %973
      %977 = vset.pattern.permute.xlu0 0
      %978 = vperm.xlu0 %977, %v367
      %v979 = vpop.permute.xlu0 %978
      %982 = vset.pattern.permute.xlu0 0
      %983 = vperm.xlu0 %982, %v368
      %v984 = vpop.permute.xlu0 %983
      %987 = vset.pattern.permute.xlu0 0
      %988 = vperm.xlu0 %987, %v369
      %v989 = vpop.permute.xlu0 %988
      %992 = vset.pattern.permute.xlu0 0
      %993 = vperm.xlu0 %992, %v370
      %v994 = vpop.permute.xlu0 %993
      %997 = vset.pattern.permute.xlu0 0
      %998 = vperm.xlu0 %997, %v371
      %v999 = vpop.permute.xlu0 %998
      %1002 = vset.pattern.permute.xlu0 0
      %1003 = vperm.xlu0 %1002, %v372
      %v1004 = vpop.permute.xlu0 %1003
      %1007 = vset.pattern.permute.xlu0 0
      %1008 = vperm.xlu0 %1007, %v373
      %v1009 = vpop.permute.xlu0 %1008
      %1012 = vset.pattern.permute.xlu0 0
      %1013 = vperm.xlu0 %1012, %v374
      %v1014 = vpop.permute.xlu0 %1013
      %1017 = vset.pattern.permute.xlu0 0
      %1018 = vperm.xlu0 %1017, %v375
      %v1019 = vpop.permute.xlu0 %1018
      %1022 = vset.pattern.permute.xlu0 0
      %1023 = vperm.xlu0 %1022, %v376
      %v1024 = vpop.permute.xlu0 %1023
      %1027 = vset.pattern.permute.xlu0 0
      %1028 = vperm.xlu0 %1027, %v377
      %v1029 = vpop.permute.xlu0 %1028
      %1032 = vset.pattern.permute.xlu0 0
      %1033 = vperm.xlu0 %1032, %v378
      %v1034 = vpop.permute.xlu0 %1033
      %1037 = vset.pattern.permute.xlu0 0
      %1038 = vperm.xlu0 %1037, %v379
      %v1039 = vpop.permute.xlu0 %1038
      %1042 = vset.pattern.permute.xlu0 0
      %1043 = vperm.xlu0 %1042, %v380
      %v1044 = vpop.permute.xlu0 %1043
      %1047 = vset.pattern.permute.xlu0 0
      %1048 = vperm.xlu0 %1047, %v381
      %v1049 = vpop.permute.xlu0 %1048
      %1052 = vset.pattern.permute.xlu0 0
      %1053 = vperm.xlu0 %1052, %v382
      %v1054 = vpop.permute.xlu0 %1053
      %1057 = vset.pattern.permute.xlu0 0
      %1058 = vperm.xlu0 %1057, %v383
      %v1059 = vpop.permute.xlu0 %1058
      %1062 = vset.pattern.permute.xlu0 0
      %1063 = vperm.xlu0 %1062, %v384
      %v1064 = vpop.permute.xlu0 %1063
      %1067 = vset.pattern.permute.xlu0 0
      %1068 = vperm.xlu0 %1067, %v385
      %v1069 = vpop.permute.xlu0 %1068
      %1072 = vset.pattern.permute.xlu0 0
      %1073 = vperm.xlu0 %1072, %v386
      %v1074 = vpop.permute.xlu0 %1073
      %1077 = vset.pattern.permute.xlu0 0
      %1078 = vperm.xlu0 %1077, %v387
      %v1079 = vpop.permute.xlu0 %1078
      %1082 = vset.pattern.permute.xlu0 0
      %1083 = vperm.xlu0 %1082, %v388
      %v1084 = vpop.permute.xlu0 %1083
      %1087 = vset.pattern.permute.xlu0 0
      %1088 = vperm.xlu0 %1087, %v389
      %v1089 = vpop.permute.xlu0 %1088
      %1092 = vset.pattern.permute.xlu0 0
      %1093 = vperm.xlu0 %1092, %v390
      %v1094 = vpop.permute.xlu0 %1093
      %1097 = vset.pattern.permute.xlu0 0
      %1098 = vperm.xlu0 %1097, %v391
      %v1099 = vpop.permute.xlu0 %1098
      %1102 = vset.pattern.permute.xlu0 0
      %1103 = vperm.xlu0 %1102, %v392
      %v1104 = vpop.permute.xlu0 %1103
      %1107 = vset.pattern.permute.xlu0 0
      %1108 = vperm.xlu0 %1107, %v393
      %v1109 = vpop.permute.xlu0 %1108
      %1112 = vset.pattern.permute.xlu0 0
      %1113 = vperm.xlu0 %1112, %v394
      %v1114 = vpop.permute.xlu0 %1113
      %1117 = vset.pattern.permute.xlu0 0
      %1118 = vperm.xlu0 %1117, %v395
      %v1119 = vpop.permute.xlu0 %1118
      %1122 = vset.pattern.permute.xlu0 0
      %1123 = vperm.xlu0 %1122, %v396
      %v1124 = vpop.permute.xlu0 %1123
      %1127 = vset.pattern.permute.xlu0 0
      %1128 = vperm.xlu0 %1127, %v397
      %v1129 = vpop.permute.xlu0 %1128
      %1132 = vset.pattern.permute.xlu0 0
      %1133 = vperm.xlu0 %1132, %v398
      %v1134 = vpop.permute.xlu0 %1133
      %v1136 = vmul.f32 %v890, %v934
      %v1137 = vmul.f32 %v891, %v939
      %v1138 = vmul.f32 %v892, %v944
      %v1139 = vmul.f32 %v893, %v949
      %v1140 = vmul.f32 %v894, %v954
      %v1141 = vmul.f32 %v895, %v959
      %v1142 = vmul.f32 %v896, %v964
      %v1143 = vmul.f32 %v897, %v969
      %v1144 = vmul.f32 %v898, %v974
      %v1145 = vmul.f32 %v899, %v979
      %v1146 = vmul.f32 %v900, %v984
      %v1147 = vmul.f32 %v901, %v989
      %v1148 = vmul.f32 %v902, %v994
      %v1149 = vmul.f32 %v903, %v999
      %v1150 = vmul.f32 %v904, %v1004
      %v1151 = vmul.f32 %v905, %v1009
      %v1152 = vmul.f32 %v906, %v1014
      %v1153 = vmul.f32 %v907, %v1019
      %v1154 = vmul.f32 %v908, %v1024
      %v1155 = vmul.f32 %v909, %v1029
      %v1156 = vmul.f32 %v910, %v1034
      %v1157 = vmul.f32 %v911, %v1039
      %v1158 = vmul.f32 %v912, %v1044
      %v1159 = vmul.f32 %v913, %v1049
      %v1160 = vmul.f32 %v914, %v1054
      %v1161 = vmul.f32 %v915, %v1059
      %v1162 = vmul.f32 %v916, %v1064
      %v1163 = vmul.f32 %v917, %v1069
      %v1164 = vmul.f32 %v918, %v1074
      %v1165 = vmul.f32 %v919, %v1079
      %v1166 = vmul.f32 %v920, %v1084
      %v1167 = vmul.f32 %v921, %v1089
      %v1168 = vmul.f32 %v922, %v1094
      %v1169 = vmul.f32 %v923, %v1099
      %v1170 = vmul.f32 %v924, %v1104
      %v1171 = vmul.f32 %v925, %v1109
      %v1172 = vmul.f32 %v926, %v1114
      %v1173 = vmul.f32 %v927, %v1119
      %v1174 = vmul.f32 %v928, %v1124
      %v1175 = vmul.f32 %v929, %v1129
      %v1176 = vmul.f32 %v930, %v1134
      %vm1217 = vcmask 1046528
      %v1218 = vrot.slane 0.0, 1
      %v1219 = vsel %vm1217, %v1218, %v1218
      %v1220 = vrot.slane %v1136, 1
      %v1221 = vsel %vm1217, %v1218, %v1220
      %v1222 = vrot.slane %v1137, 1
      %v1223 = vsel %vm1217, %v1220, %v1222
      %v1224 = vrot.slane %v1138, 1
      %v1225 = vsel %vm1217, %v1222, %v1224
      %v1226 = vrot.slane %v1139, 1
      %v1227 = vsel %vm1217, %v1224, %v1226
      %v1228 = vrot.slane %v1140, 1
      %v1229 = vsel %vm1217, %v1226, %v1228
      %v1230 = vrot.slane %v1141, 1
      %v1231 = vsel %vm1217, %v1228, %v1230
      %v1232 = vrot.slane %v1142, 1
      %v1233 = vsel %vm1217, %v1230, %v1232
      %v1234 = vrot.slane %v1143, 1
      %v1235 = vsel %vm1217, %v1232, %v1234
      %v1236 = vrot.slane %v1144, 1
      %v1237 = vsel %vm1217, %v1234, %v1236
      %v1238 = vrot.slane %v1145, 1
      %v1239 = vsel %vm1217, %v1236, %v1238
      %v1240 = vrot.slane %v1146, 1
      %v1241 = vsel %vm1217, %v1238, %v1240
      %v1242 = vrot.slane %v1147, 1
      %v1243 = vsel %vm1217, %v1240, %v1242
      %v1244 = vrot.slane %v1148, 1
      %v1245 = vsel %vm1217, %v1242, %v1244
      %v1246 = vrot.slane %v1149, 1
      %v1247 = vsel %vm1217, %v1244, %v1246
      %v1248 = vrot.slane %v1150, 1
      %v1249 = vsel %vm1217, %v1246, %v1248
      %v1250 = vrot.slane %v1151, 1
      %v1251 = vsel %vm1217, %v1248, %v1250
      %v1252 = vrot.slane %v1152, 1
      %v1253 = vsel %vm1217, %v1250, %v1252
      %v1254 = vrot.slane %v1153, 1
      %v1255 = vsel %vm1217, %v1252, %v1254
      %v1256 = vrot.slane %v1154, 1
      %v1257 = vsel %vm1217, %v1254, %v1256
      %v1258 = vrot.slane %v1155, 1
      %v1259 = vsel %vm1217, %v1256, %v1258
      %v1260 = vrot.slane %v1156, 1
      %v1261 = vsel %vm1217, %v1258, %v1260
      %v1262 = vrot.slane %v1157, 1
      %v1263 = vsel %vm1217, %v1260, %v1262
      %v1264 = vrot.slane %v1158, 1
      %v1265 = vsel %vm1217, %v1262, %v1264
      %v1266 = vrot.slane %v1159, 1
      %v1267 = vsel %vm1217, %v1264, %v1266
      %v1268 = vrot.slane %v1160, 1
      %v1269 = vsel %vm1217, %v1266, %v1268
      %v1270 = vrot.slane %v1161, 1
      %v1271 = vsel %vm1217, %v1268, %v1270
      %v1272 = vrot.slane %v1162, 1
      %v1273 = vsel %vm1217, %v1270, %v1272
      %v1274 = vrot.slane %v1163, 1
      %v1275 = vsel %vm1217, %v1272, %v1274
      %v1276 = vrot.slane %v1164, 1
      %v1277 = vsel %vm1217, %v1274, %v1276
      %v1278 = vrot.slane %v1165, 1
      %v1279 = vsel %vm1217, %v1276, %v1278
      %v1280 = vrot.slane %v1166, 1
      %v1281 = vsel %vm1217, %v1278, %v1280
      %v1282 = vrot.slane %v1167, 1
      %v1283 = vsel %vm1217, %v1280, %v1282
      %v1284 = vrot.slane %v1168, 1
      %v1285 = vsel %vm1217, %v1282, %v1284
      %v1286 = vrot.slane %v1169, 1
      %v1287 = vsel %vm1217, %v1284, %v1286
      %v1288 = vrot.slane %v1170, 1
      %v1289 = vsel %vm1217, %v1286, %v1288
      %v1290 = vrot.slane %v1171, 1
      %v1291 = vsel %vm1217, %v1288, %v1290
      %v1292 = vrot.slane %v1172, 1
      %v1293 = vsel %vm1217, %v1290, %v1292
      %v1294 = vrot.slane %v1173, 1
      %v1295 = vsel %vm1217, %v1292, %v1294
      %v1296 = vrot.slane %v1174, 1
      %v1297 = vsel %vm1217, %v1294, %v1296
      %1298 = vrot.lane.b32.xlu0 %v1219, 32
      %v1299 = vpop.permute.xlu0 %1298
      %1300 = vrot.lane.b32.xlu0 %v1221, 32
      %v1301 = vpop.permute.xlu0 %1300
      %1302 = vrot.lane.b32.xlu0 %v1223, 32
      %v1303 = vpop.permute.xlu0 %1302
      %1304 = vrot.lane.b32.xlu0 %v1225, 32
      %v1305 = vpop.permute.xlu0 %1304
      %1306 = vrot.lane.b32.xlu0 %v1227, 32
      %v1307 = vpop.permute.xlu0 %1306
      %1308 = vrot.lane.b32.xlu0 %v1229, 32
      %v1309 = vpop.permute.xlu0 %1308
      %1310 = vrot.lane.b32.xlu0 %v1231, 32
      %v1311 = vpop.permute.xlu0 %1310
      %1312 = vrot.lane.b32.xlu0 %v1233, 32
      %v1313 = vpop.permute.xlu0 %1312
      %1314 = vrot.lane.b32.xlu0 %v1235, 32
      %v1315 = vpop.permute.xlu0 %1314
      %1316 = vrot.lane.b32.xlu0 %v1237, 32
      %v1317 = vpop.permute.xlu0 %1316
      %1318 = vrot.lane.b32.xlu0 %v1239, 32
      %v1319 = vpop.permute.xlu0 %1318
      %1320 = vrot.lane.b32.xlu0 %v1241, 32
      %v1321 = vpop.permute.xlu0 %1320
      %1322 = vrot.lane.b32.xlu0 %v1243, 32
      %v1323 = vpop.permute.xlu0 %1322
      %1324 = vrot.lane.b32.xlu0 %v1245, 32
      %v1325 = vpop.permute.xlu0 %1324
      %1326 = vrot.lane.b32.xlu0 %v1247, 32
      %v1327 = vpop.permute.xlu0 %1326
      %1328 = vrot.lane.b32.xlu0 %v1249, 32
      %v1329 = vpop.permute.xlu0 %1328
      %1330 = vrot.lane.b32.xlu0 %v1251, 32
      %v1331 = vpop.permute.xlu0 %1330
      %1332 = vrot.lane.b32.xlu0 %v1253, 32
      %v1333 = vpop.permute.xlu0 %1332
      %1334 = vrot.lane.b32.xlu0 %v1255, 32
      %v1335 = vpop.permute.xlu0 %1334
      %1336 = vrot.lane.b32.xlu0 %v1257, 32
      %v1337 = vpop.permute.xlu0 %1336
      %1338 = vrot.lane.b32.xlu0 %v1259, 32
      %v1339 = vpop.permute.xlu0 %1338
      %1340 = vrot.lane.b32.xlu0 %v1261, 32
      %v1341 = vpop.permute.xlu0 %1340
      %1342 = vrot.lane.b32.xlu0 %v1263, 32
      %v1343 = vpop.permute.xlu0 %1342
      %1344 = vrot.lane.b32.xlu0 %v1265, 32
      %v1345 = vpop.permute.xlu0 %1344
      %1346 = vrot.lane.b32.xlu0 %v1267, 32
      %v1347 = vpop.permute.xlu0 %1346
      %1348 = vrot.lane.b32.xlu0 %v1269, 32
      %v1349 = vpop.permute.xlu0 %1348
      %1350 = vrot.lane.b32.xlu0 %v1271, 32
      %v1351 = vpop.permute.xlu0 %1350
      %1352 = vrot.lane.b32.xlu0 %v1273, 32
      %v1353 = vpop.permute.xlu0 %1352
      %1354 = vrot.lane.b32.xlu0 %v1275, 32
      %v1355 = vpop.permute.xlu0 %1354
      %1356 = vrot.lane.b32.xlu0 %v1277, 32
      %v1357 = vpop.permute.xlu0 %1356
      %1358 = vrot.lane.b32.xlu0 %v1279, 32
      %v1359 = vpop.permute.xlu0 %1358
      %1360 = vrot.lane.b32.xlu0 %v1281, 32
      %v1361 = vpop.permute.xlu0 %1360
      %1362 = vrot.lane.b32.xlu0 %v1283, 32
      %v1363 = vpop.permute.xlu0 %1362
      %1364 = vrot.lane.b32.xlu0 %v1285, 32
      %v1365 = vpop.permute.xlu0 %1364
      %1366 = vrot.lane.b32.xlu0 %v1287, 32
      %v1367 = vpop.permute.xlu0 %1366
      %1368 = vrot.lane.b32.xlu0 %v1289, 32
      %v1369 = vpop.permute.xlu0 %1368
      %1370 = vrot.lane.b32.xlu0 %v1291, 32
      %v1371 = vpop.permute.xlu0 %1370
      %1372 = vrot.lane.b32.xlu0 %v1293, 32
      %v1373 = vpop.permute.xlu0 %1372
      %1374 = vrot.lane.b32.xlu0 %v1295, 32
      %v1375 = vpop.permute.xlu0 %1374
      %1376 = vrot.lane.b32.xlu0 %v1297, 32
      %v1377 = vpop.permute.xlu0 %1376
      %1378 = vrot.lane.b32.xlu0 %v1296, 32
      %v1379 = vpop.permute.xlu0 %1378
      %vm1421 = vcmask 1045504
      %v1422 = vrot.slane 0.0, 2
      %v1423 = vsel %vm1421, %v1422, %v1422
      %v1424 = vrot.slane %v1136, 2
      %v1425 = vsel %vm1421, %v1422, %v1424
      %v1426 = vrot.slane %v1137, 2
      %v1427 = vsel %vm1421, %v1424, %v1426
      %v1428 = vrot.slane %v1138, 2
      %v1429 = vsel %vm1421, %v1426, %v1428
      %v1430 = vrot.slane %v1139, 2
      %v1431 = vsel %vm1421, %v1428, %v1430
      %v1432 = vrot.slane %v1140, 2
      %v1433 = vsel %vm1421, %v1430, %v1432
      %v1434 = vrot.slane %v1141, 2
      %v1435 = vsel %vm1421, %v1432, %v1434
      %v1436 = vrot.slane %v1142, 2
      %v1437 = vsel %vm1421, %v1434, %v1436
      %v1438 = vrot.slane %v1143, 2
      %v1439 = vsel %vm1421, %v1436, %v1438
      %v1440 = vrot.slane %v1144, 2
      %v1441 = vsel %vm1421, %v1438, %v1440
      %v1442 = vrot.slane %v1145, 2
      %v1443 = vsel %vm1421, %v1440, %v1442
      %v1444 = vrot.slane %v1146, 2
      %v1445 = vsel %vm1421, %v1442, %v1444
      %v1446 = vrot.slane %v1147, 2
      %v1447 = vsel %vm1421, %v1444, %v1446
      %v1448 = vrot.slane %v1148, 2
      %v1449 = vsel %vm1421, %v1446, %v1448
      %v1450 = vrot.slane %v1149, 2
      %v1451 = vsel %vm1421, %v1448, %v1450
      %v1452 = vrot.slane %v1150, 2
      %v1453 = vsel %vm1421, %v1450, %v1452
      %v1454 = vrot.slane %v1151, 2
      %v1455 = vsel %vm1421, %v1452, %v1454
      %v1456 = vrot.slane %v1152, 2
      %v1457 = vsel %vm1421, %v1454, %v1456
      %v1458 = vrot.slane %v1153, 2
      %v1459 = vsel %vm1421, %v1456, %v1458
      %v1460 = vrot.slane %v1154, 2
      %v1461 = vsel %vm1421, %v1458, %v1460
      %v1462 = vrot.slane %v1155, 2
      %v1463 = vsel %vm1421, %v1460, %v1462
      %v1464 = vrot.slane %v1156, 2
      %v1465 = vsel %vm1421, %v1462, %v1464
      %v1466 = vrot.slane %v1157, 2
      %v1467 = vsel %vm1421, %v1464, %v1466
      %v1468 = vrot.slane %v1158, 2
      %v1469 = vsel %vm1421, %v1466, %v1468
      %v1470 = vrot.slane %v1159, 2
      %v1471 = vsel %vm1421, %v1468, %v1470
      %v1472 = vrot.slane %v1160, 2
      %v1473 = vsel %vm1421, %v1470, %v1472
      %v1474 = vrot.slane %v1161, 2
      %v1475 = vsel %vm1421, %v1472, %v1474
      %v1476 = vrot.slane %v1162, 2
      %v1477 = vsel %vm1421, %v1474, %v1476
      %v1478 = vrot.slane %v1163, 2
      %v1479 = vsel %vm1421, %v1476, %v1478
      %v1480 = vrot.slane %v1164, 2
      %v1481 = vsel %vm1421, %v1478, %v1480
      %v1482 = vrot.slane %v1165, 2
      %v1483 = vsel %vm1421, %v1480, %v1482
      %v1484 = vrot.slane %v1166, 2
      %v1485 = vsel %vm1421, %v1482, %v1484
      %v1486 = vrot.slane %v1167, 2
      %v1487 = vsel %vm1421, %v1484, %v1486
      %v1488 = vrot.slane %v1168, 2
      %v1489 = vsel %vm1421, %v1486, %v1488
      %v1490 = vrot.slane %v1169, 2
      %v1491 = vsel %vm1421, %v1488, %v1490
      %v1492 = vrot.slane %v1170, 2
      %v1493 = vsel %vm1421, %v1490, %v1492
      %v1494 = vrot.slane %v1171, 2
      %v1495 = vsel %vm1421, %v1492, %v1494
      %v1496 = vrot.slane %v1172, 2
      %v1497 = vsel %vm1421, %v1494, %v1496
      %v1498 = vrot.slane %v1173, 2
      %v1499 = vsel %vm1421, %v1496, %v1498
      %v1500 = vrot.slane %v1174, 2
      %v1501 = vsel %vm1421, %v1498, %v1500
      %1502 = vrot.lane.b32.xlu0 %v1423, 64
      %v1503 = vpop.permute.xlu0 %1502
      %1504 = vrot.lane.b32.xlu0 %v1425, 64
      %v1505 = vpop.permute.xlu0 %1504
      %1506 = vrot.lane.b32.xlu0 %v1427, 64
      %v1507 = vpop.permute.xlu0 %1506
      %1508 = vrot.lane.b32.xlu0 %v1429, 64
      %v1509 = vpop.permute.xlu0 %1508
      %1510 = vrot.lane.b32.xlu0 %v1431, 64
      %v1511 = vpop.permute.xlu0 %1510
      %1512 = vrot.lane.b32.xlu0 %v1433, 64
      %v1513 = vpop.permute.xlu0 %1512
      %1514 = vrot.lane.b32.xlu0 %v1435, 64
      %v1515 = vpop.permute.xlu0 %1514
      %1516 = vrot.lane.b32.xlu0 %v1437, 64
      %v1517 = vpop.permute.xlu0 %1516
      %1518 = vrot.lane.b32.xlu0 %v1439, 64
      %v1519 = vpop.permute.xlu0 %1518
      %1520 = vrot.lane.b32.xlu0 %v1441, 64
      %v1521 = vpop.permute.xlu0 %1520
      %1522 = vrot.lane.b32.xlu0 %v1443, 64
      %v1523 = vpop.permute.xlu0 %1522
      %1524 = vrot.lane.b32.xlu0 %v1445, 64
      %v1525 = vpop.permute.xlu0 %1524
      %1526 = vrot.lane.b32.xlu0 %v1447, 64
      %v1527 = vpop.permute.xlu0 %1526
      %1528 = vrot.lane.b32.xlu0 %v1449, 64
      %v1529 = vpop.permute.xlu0 %1528
      %1530 = vrot.lane.b32.xlu0 %v1451, 64
      %v1531 = vpop.permute.xlu0 %1530
      %1532 = vrot.lane.b32.xlu0 %v1453, 64
      %v1533 = vpop.permute.xlu0 %1532
      %1534 = vrot.lane.b32.xlu0 %v1455, 64
      %v1535 = vpop.permute.xlu0 %1534
      %1536 = vrot.lane.b32.xlu0 %v1457, 64
      %v1537 = vpop.permute.xlu0 %1536
      %1538 = vrot.lane.b32.xlu0 %v1459, 64
      %v1539 = vpop.permute.xlu0 %1538
      %1540 = vrot.lane.b32.xlu0 %v1461, 64
      %v1541 = vpop.permute.xlu0 %1540
      %1542 = vrot.lane.b32.xlu0 %v1463, 64
      %v1543 = vpop.permute.xlu0 %1542
      %1544 = vrot.lane.b32.xlu0 %v1465, 64
      %v1545 = vpop.permute.xlu0 %1544
      %1546 = vrot.lane.b32.xlu0 %v1467, 64
      %v1547 = vpop.permute.xlu0 %1546
      %1548 = vrot.lane.b32.xlu0 %v1469, 64
      %v1549 = vpop.permute.xlu0 %1548
      %1550 = vrot.lane.b32.xlu0 %v1471, 64
      %v1551 = vpop.permute.xlu0 %1550
      %1552 = vrot.lane.b32.xlu0 %v1473, 64
      %v1553 = vpop.permute.xlu0 %1552
      %1554 = vrot.lane.b32.xlu0 %v1475, 64
      %v1555 = vpop.permute.xlu0 %1554
      %1556 = vrot.lane.b32.xlu0 %v1477, 64
      %v1557 = vpop.permute.xlu0 %1556
      %1558 = vrot.lane.b32.xlu0 %v1479, 64
      %v1559 = vpop.permute.xlu0 %1558
      %1560 = vrot.lane.b32.xlu0 %v1481, 64
      %v1561 = vpop.permute.xlu0 %1560
      %1562 = vrot.lane.b32.xlu0 %v1483, 64
      %v1563 = vpop.permute.xlu0 %1562
      %1564 = vrot.lane.b32.xlu0 %v1485, 64
      %v1565 = vpop.permute.xlu0 %1564
      %1566 = vrot.lane.b32.xlu0 %v1487, 64
      %v1567 = vpop.permute.xlu0 %1566
      %1568 = vrot.lane.b32.xlu0 %v1489, 64
      %v1569 = vpop.permute.xlu0 %1568
      %1570 = vrot.lane.b32.xlu0 %v1491, 64
      %v1571 = vpop.permute.xlu0 %1570
      %1572 = vrot.lane.b32.xlu0 %v1493, 64
      %v1573 = vpop.permute.xlu0 %1572
      %1574 = vrot.lane.b32.xlu0 %v1495, 64
      %v1575 = vpop.permute.xlu0 %1574
      %1576 = vrot.lane.b32.xlu0 %v1497, 64
      %v1577 = vpop.permute.xlu0 %1576
      %1578 = vrot.lane.b32.xlu0 %v1499, 64
      %v1579 = vpop.permute.xlu0 %1578
      %1580 = vrot.lane.b32.xlu0 %v1501, 64
      %v1581 = vpop.permute.xlu0 %1580
      %1582 = vrot.lane.b32.xlu0 %v1500, 64
      %v1583 = vpop.permute.xlu0 %1582
      %v1627 = vrot.slane %v1175, 2
      %v1628 = vsel %vm1421, %v1500, %v1627
      %v1629 = vrot.slane %v1176, 2
      %v1630 = vsel %vm1421, %v1627, %v1629
      %1631 = vrot.lane.b32.xlu0 %v1425, 96
      %v1632 = vpop.permute.xlu0 %1631
      %1633 = vrot.lane.b32.xlu0 %v1427, 96
      %v1634 = vpop.permute.xlu0 %1633
      %1635 = vrot.lane.b32.xlu0 %v1429, 96
      %v1636 = vpop.permute.xlu0 %1635
      %1637 = vrot.lane.b32.xlu0 %v1431, 96
      %v1638 = vpop.permute.xlu0 %1637
      %1639 = vrot.lane.b32.xlu0 %v1433, 96
      %v1640 = vpop.permute.xlu0 %1639
      %1641 = vrot.lane.b32.xlu0 %v1435, 96
      %v1642 = vpop.permute.xlu0 %1641
      %1643 = vrot.lane.b32.xlu0 %v1437, 96
      %v1644 = vpop.permute.xlu0 %1643
      %1645 = vrot.lane.b32.xlu0 %v1439, 96
      %v1646 = vpop.permute.xlu0 %1645
      %1647 = vrot.lane.b32.xlu0 %v1441, 96
      %v1648 = vpop.permute.xlu0 %1647
      %1649 = vrot.lane.b32.xlu0 %v1443, 96
      %v1650 = vpop.permute.xlu0 %1649
      %1651 = vrot.lane.b32.xlu0 %v1445, 96
      %v1652 = vpop.permute.xlu0 %1651
      %1653 = vrot.lane.b32.xlu0 %v1447, 96
      %v1654 = vpop.permute.xlu0 %1653
      %1655 = vrot.lane.b32.xlu0 %v1449, 96
      %v1656 = vpop.permute.xlu0 %1655
      %1657 = vrot.lane.b32.xlu0 %v1451, 96
      %v1658 = vpop.permute.xlu0 %1657
      %1659 = vrot.lane.b32.xlu0 %v1453, 96
      %v1660 = vpop.permute.xlu0 %1659
      %1661 = vrot.lane.b32.xlu0 %v1455, 96
      %v1662 = vpop.permute.xlu0 %1661
      %1663 = vrot.lane.b32.xlu0 %v1457, 96
      %v1664 = vpop.permute.xlu0 %1663
      %1665 = vrot.lane.b32.xlu0 %v1459, 96
      %v1666 = vpop.permute.xlu0 %1665
      %1667 = vrot.lane.b32.xlu0 %v1461, 96
      %v1668 = vpop.permute.xlu0 %1667
      %1669 = vrot.lane.b32.xlu0 %v1463, 96
      %v1670 = vpop.permute.xlu0 %1669
      %1671 = vrot.lane.b32.xlu0 %v1465, 96
      %v1672 = vpop.permute.xlu0 %1671
      %1673 = vrot.lane.b32.xlu0 %v1467, 96
      %v1674 = vpop.permute.xlu0 %1673
      %1675 = vrot.lane.b32.xlu0 %v1469, 96
      %v1676 = vpop.permute.xlu0 %1675
      %1677 = vrot.lane.b32.xlu0 %v1471, 96
      %v1678 = vpop.permute.xlu0 %1677
      %1679 = vrot.lane.b32.xlu0 %v1473, 96
      %v1680 = vpop.permute.xlu0 %1679
      %1681 = vrot.lane.b32.xlu0 %v1475, 96
      %v1682 = vpop.permute.xlu0 %1681
      %1683 = vrot.lane.b32.xlu0 %v1477, 96
      %v1684 = vpop.permute.xlu0 %1683
      %1685 = vrot.lane.b32.xlu0 %v1479, 96
      %v1686 = vpop.permute.xlu0 %1685
      %1687 = vrot.lane.b32.xlu0 %v1481, 96
      %v1688 = vpop.permute.xlu0 %1687
      %1689 = vrot.lane.b32.xlu0 %v1483, 96
      %v1690 = vpop.permute.xlu0 %1689
      %1691 = vrot.lane.b32.xlu0 %v1485, 96
      %v1692 = vpop.permute.xlu0 %1691
      %1693 = vrot.lane.b32.xlu0 %v1487, 96
      %v1694 = vpop.permute.xlu0 %1693
      %1695 = vrot.lane.b32.xlu0 %v1489, 96
      %v1696 = vpop.permute.xlu0 %1695
      %1697 = vrot.lane.b32.xlu0 %v1491, 96
      %v1698 = vpop.permute.xlu0 %1697
      %1699 = vrot.lane.b32.xlu0 %v1493, 96
      %v1700 = vpop.permute.xlu0 %1699
      %1701 = vrot.lane.b32.xlu0 %v1495, 96
      %v1702 = vpop.permute.xlu0 %1701
      %1703 = vrot.lane.b32.xlu0 %v1497, 96
      %v1704 = vpop.permute.xlu0 %1703
      %1705 = vrot.lane.b32.xlu0 %v1499, 96
      %v1706 = vpop.permute.xlu0 %1705
      %1707 = vrot.lane.b32.xlu0 %v1501, 96
      %v1708 = vpop.permute.xlu0 %1707
      %1709 = vrot.lane.b32.xlu0 %v1628, 96
      %v1710 = vpop.permute.xlu0 %1709
      %1711 = vrot.lane.b32.xlu0 %v1630, 96
      %v1712 = vpop.permute.xlu0 %1711
      %1713 = vrot.lane.b32.xlu0 %v1629, 96
      %v1714 = vpop.permute.xlu0 %1713
      %vm1757 = vcmask 1044480
      %v1758 = vrot.slane %v1136, 3
      %v1759 = vrot.slane %v1137, 3
      %v1760 = vsel %vm1757, %v1758, %v1759
      %v1761 = vrot.slane %v1138, 3
      %v1762 = vsel %vm1757, %v1759, %v1761
      %v1763 = vrot.slane %v1139, 3
      %v1764 = vsel %vm1757, %v1761, %v1763
      %v1765 = vrot.slane %v1140, 3
      %v1766 = vsel %vm1757, %v1763, %v1765
      %v1767 = vrot.slane %v1141, 3
      %v1768 = vsel %vm1757, %v1765, %v1767
      %v1769 = vrot.slane %v1142, 3
      %v1770 = vsel %vm1757, %v1767, %v1769
      %v1771 = vrot.slane %v1143, 3
      %v1772 = vsel %vm1757, %v1769, %v1771
      %v1773 = vrot.slane %v1144, 3
      %v1774 = vsel %vm1757, %v1771, %v1773
      %v1775 = vrot.slane %v1145, 3
      %v1776 = vsel %vm1757, %v1773, %v1775
      %v1777 = vrot.slane %v1146, 3
      %v1778 = vsel %vm1757, %v1775, %v1777
      %v1779 = vrot.slane %v1147, 3
      %v1780 = vsel %vm1757, %v1777, %v1779
      %v1781 = vrot.slane %v1148, 3
      %v1782 = vsel %vm1757, %v1779, %v1781
      %v1783 = vrot.slane %v1149, 3
      %v1784 = vsel %vm1757, %v1781, %v1783
      %v1785 = vrot.slane %v1150, 3
      %v1786 = vsel %vm1757, %v1783, %v1785
      %v1787 = vrot.slane %v1151, 3
      %v1788 = vsel %vm1757, %v1785, %v1787
      %v1789 = vrot.slane %v1152, 3
      %v1790 = vsel %vm1757, %v1787, %v1789
      %v1791 = vrot.slane %v1153, 3
      %v1792 = vsel %vm1757, %v1789, %v1791
      %v1793 = vrot.slane %v1154, 3
      %v1794 = vsel %vm1757, %v1791, %v1793
      %v1795 = vrot.slane %v1155, 3
      %v1796 = vsel %vm1757, %v1793, %v1795
      %v1797 = vrot.slane %v1156, 3
      %v1798 = vsel %vm1757, %v1795, %v1797
      %v1799 = vrot.slane %v1157, 3
      %v1800 = vsel %vm1757, %v1797, %v1799
      %v1801 = vrot.slane %v1158, 3
      %v1802 = vsel %vm1757, %v1799, %v1801
      %v1803 = vrot.slane %v1159, 3
      %v1804 = vsel %vm1757, %v1801, %v1803
      %v1805 = vrot.slane %v1160, 3
      %v1806 = vsel %vm1757, %v1803, %v1805
      %v1807 = vrot.slane %v1161, 3
      %v1808 = vsel %vm1757, %v1805, %v1807
      %v1809 = vrot.slane %v1162, 3
      %v1810 = vsel %vm1757, %v1807, %v1809
      %v1811 = vrot.slane %v1163, 3
      %v1812 = vsel %vm1757, %v1809, %v1811
      %v1813 = vrot.slane %v1164, 3
      %v1814 = vsel %vm1757, %v1811, %v1813
      %v1815 = vrot.slane %v1165, 3
      %v1816 = vsel %vm1757, %v1813, %v1815
      %v1817 = vrot.slane %v1166, 3
      %v1818 = vsel %vm1757, %v1815, %v1817
      %v1819 = vrot.slane %v1167, 3
      %v1820 = vsel %vm1757, %v1817, %v1819
      %v1821 = vrot.slane %v1168, 3
      %v1822 = vsel %vm1757, %v1819, %v1821
      %v1823 = vrot.slane %v1169, 3
      %v1824 = vsel %vm1757, %v1821, %v1823
      %v1825 = vrot.slane %v1170, 3
      %v1826 = vsel %vm1757, %v1823, %v1825
      %v1827 = vrot.slane %v1171, 3
      %v1828 = vsel %vm1757, %v1825, %v1827
      %v1829 = vrot.slane %v1172, 3
      %v1830 = vsel %vm1757, %v1827, %v1829
      %v1831 = vrot.slane %v1173, 3
      %v1832 = vsel %vm1757, %v1829, %v1831
      %v1833 = vrot.slane %v1174, 3
      %v1834 = vsel %vm1757, %v1831, %v1833
      %v1835 = vrot.slane %v1175, 3
      %v1836 = vsel %vm1757, %v1833, %v1835
      %v1837 = vrot.slane %v1176, 3
      %v1838 = vsel %vm1757, %v1835, %v1837
      %vm1881 = vcmask 1043456
      %v1882 = vrot.slane %v1136, 4
      %v1883 = vrot.slane %v1137, 4
      %v1884 = vsel %vm1881, %v1882, %v1883
      %v1885 = vrot.slane %v1138, 4
      %v1886 = vsel %vm1881, %v1883, %v1885
      %v1887 = vrot.slane %v1139, 4
      %v1888 = vsel %vm1881, %v1885, %v1887
      %v1889 = vrot.slane %v1140, 4
      %v1890 = vsel %vm1881, %v1887, %v1889
      %v1891 = vrot.slane %v1141, 4
      %v1892 = vsel %vm1881, %v1889, %v1891
      %v1893 = vrot.slane %v1142, 4
      %v1894 = vsel %vm1881, %v1891, %v1893
      %v1895 = vrot.slane %v1143, 4
      %v1896 = vsel %vm1881, %v1893, %v1895
      %v1897 = vrot.slane %v1144, 4
      %v1898 = vsel %vm1881, %v1895, %v1897
      %v1899 = vrot.slane %v1145, 4
      %v1900 = vsel %vm1881, %v1897, %v1899
      %v1901 = vrot.slane %v1146, 4
      %v1902 = vsel %vm1881, %v1899, %v1901
      %v1903 = vrot.slane %v1147, 4
      %v1904 = vsel %vm1881, %v1901, %v1903
      %v1905 = vrot.slane %v1148, 4
      %v1906 = vsel %vm1881, %v1903, %v1905
      %v1907 = vrot.slane %v1149, 4
      %v1908 = vsel %vm1881, %v1905, %v1907
      %v1909 = vrot.slane %v1150, 4
      %v1910 = vsel %vm1881, %v1907, %v1909
      %v1911 = vrot.slane %v1151, 4
      %v1912 = vsel %vm1881, %v1909, %v1911
      %v1913 = vrot.slane %v1152, 4
      %v1914 = vsel %vm1881, %v1911, %v1913
      %v1915 = vrot.slane %v1153, 4
      %v1916 = vsel %vm1881, %v1913, %v1915
      %v1917 = vrot.slane %v1154, 4
      %v1918 = vsel %vm1881, %v1915, %v1917
      %v1919 = vrot.slane %v1155, 4
      %v1920 = vsel %vm1881, %v1917, %v1919
      %v1921 = vrot.slane %v1156, 4
      %v1922 = vsel %vm1881, %v1919, %v1921
      %v1923 = vrot.slane %v1157, 4
      %v1924 = vsel %vm1881, %v1921, %v1923
      %v1925 = vrot.slane %v1158, 4
      %v1926 = vsel %vm1881, %v1923, %v1925
      %v1927 = vrot.slane %v1159, 4
      %v1928 = vsel %vm1881, %v1925, %v1927
      %v1929 = vrot.slane %v1160, 4
      %v1930 = vsel %vm1881, %v1927, %v1929
      %v1931 = vrot.slane %v1161, 4
      %v1932 = vsel %vm1881, %v1929, %v1931
      %v1933 = vrot.slane %v1162, 4
      %v1934 = vsel %vm1881, %v1931, %v1933
      %v1935 = vrot.slane %v1163, 4
      %v1936 = vsel %vm1881, %v1933, %v1935
      %v1937 = vrot.slane %v1164, 4
      %v1938 = vsel %vm1881, %v1935, %v1937
      %v1939 = vrot.slane %v1165, 4
      %v1940 = vsel %vm1881, %v1937, %v1939
      %v1941 = vrot.slane %v1166, 4
      %v1942 = vsel %vm1881, %v1939, %v1941
      %v1943 = vrot.slane %v1167, 4
      %v1944 = vsel %vm1881, %v1941, %v1943
      %v1945 = vrot.slane %v1168, 4
      %v1946 = vsel %vm1881, %v1943, %v1945
      %v1947 = vrot.slane %v1169, 4
      %v1948 = vsel %vm1881, %v1945, %v1947
      %v1949 = vrot.slane %v1170, 4
      %v1950 = vsel %vm1881, %v1947, %v1949
      %v1951 = vrot.slane %v1171, 4
      %v1952 = vsel %vm1881, %v1949, %v1951
      %v1953 = vrot.slane %v1172, 4
      %v1954 = vsel %vm1881, %v1951, %v1953
      %v1955 = vrot.slane %v1173, 4
      %v1956 = vsel %vm1881, %v1953, %v1955
      %v1957 = vrot.slane %v1174, 4
      %v1958 = vsel %vm1881, %v1955, %v1957
      %v1959 = vrot.slane %v1175, 4
      %v1960 = vsel %vm1881, %v1957, %v1959
      %v1961 = vrot.slane %v1176, 4
      %v1962 = vsel %vm1881, %v1959, %v1961
      %v1963 = vrot.slane 0.0, 4
      %v1964 = vsel %vm1881, %v1961, %v1963
      %1965 = vrot.lane.b32.xlu0 %v1882, 32
      %v1966 = vpop.permute.xlu0 %1965
      %1967 = vrot.lane.b32.xlu0 %v1884, 32
      %v1968 = vpop.permute.xlu0 %1967
      %1969 = vrot.lane.b32.xlu0 %v1886, 32
      %v1970 = vpop.permute.xlu0 %1969
      %1971 = vrot.lane.b32.xlu0 %v1888, 32
      %v1972 = vpop.permute.xlu0 %1971
      %1973 = vrot.lane.b32.xlu0 %v1890, 32
      %v1974 = vpop.permute.xlu0 %1973
      %1975 = vrot.lane.b32.xlu0 %v1892, 32
      %v1976 = vpop.permute.xlu0 %1975
      %1977 = vrot.lane.b32.xlu0 %v1894, 32
      %v1978 = vpop.permute.xlu0 %1977
      %1979 = vrot.lane.b32.xlu0 %v1896, 32
      %v1980 = vpop.permute.xlu0 %1979
      %1981 = vrot.lane.b32.xlu0 %v1898, 32
      %v1982 = vpop.permute.xlu0 %1981
      %1983 = vrot.lane.b32.xlu0 %v1900, 32
      %v1984 = vpop.permute.xlu0 %1983
      %1985 = vrot.lane.b32.xlu0 %v1902, 32
      %v1986 = vpop.permute.xlu0 %1985
      %1987 = vrot.lane.b32.xlu0 %v1904, 32
      %v1988 = vpop.permute.xlu0 %1987
      %1989 = vrot.lane.b32.xlu0 %v1906, 32
      %v1990 = vpop.permute.xlu0 %1989
      %1991 = vrot.lane.b32.xlu0 %v1908, 32
      %v1992 = vpop.permute.xlu0 %1991
      %1993 = vrot.lane.b32.xlu0 %v1910, 32
      %v1994 = vpop.permute.xlu0 %1993
      %1995 = vrot.lane.b32.xlu0 %v1912, 32
      %v1996 = vpop.permute.xlu0 %1995
      %1997 = vrot.lane.b32.xlu0 %v1914, 32
      %v1998 = vpop.permute.xlu0 %1997
      %1999 = vrot.lane.b32.xlu0 %v1916, 32
      %v2000 = vpop.permute.xlu0 %1999
      %2001 = vrot.lane.b32.xlu0 %v1918, 32
      %v2002 = vpop.permute.xlu0 %2001
      %2003 = vrot.lane.b32.xlu0 %v1920, 32
      %v2004 = vpop.permute.xlu0 %2003
      %2005 = vrot.lane.b32.xlu0 %v1922, 32
      %v2006 = vpop.permute.xlu0 %2005
      %2007 = vrot.lane.b32.xlu0 %v1924, 32
      %v2008 = vpop.permute.xlu0 %2007
      %2009 = vrot.lane.b32.xlu0 %v1926, 32
      %v2010 = vpop.permute.xlu0 %2009
      %2011 = vrot.lane.b32.xlu0 %v1928, 32
      %v2012 = vpop.permute.xlu0 %2011
      %2013 = vrot.lane.b32.xlu0 %v1930, 32
      %v2014 = vpop.permute.xlu0 %2013
      %2015 = vrot.lane.b32.xlu0 %v1932, 32
      %v2016 = vpop.permute.xlu0 %2015
      %2017 = vrot.lane.b32.xlu0 %v1934, 32
      %v2018 = vpop.permute.xlu0 %2017
      %2019 = vrot.lane.b32.xlu0 %v1936, 32
      %v2020 = vpop.permute.xlu0 %2019
      %2021 = vrot.lane.b32.xlu0 %v1938, 32
      %v2022 = vpop.permute.xlu0 %2021
      %2023 = vrot.lane.b32.xlu0 %v1940, 32
      %v2024 = vpop.permute.xlu0 %2023
      %2025 = vrot.lane.b32.xlu0 %v1942, 32
      %v2026 = vpop.permute.xlu0 %2025
      %2027 = vrot.lane.b32.xlu0 %v1944, 32
      %v2028 = vpop.permute.xlu0 %2027
      %2029 = vrot.lane.b32.xlu0 %v1946, 32
      %v2030 = vpop.permute.xlu0 %2029
      %2031 = vrot.lane.b32.xlu0 %v1948, 32
      %v2032 = vpop.permute.xlu0 %2031
      %2033 = vrot.lane.b32.xlu0 %v1950, 32
      %v2034 = vpop.permute.xlu0 %2033
      %2035 = vrot.lane.b32.xlu0 %v1952, 32
      %v2036 = vpop.permute.xlu0 %2035
      %2037 = vrot.lane.b32.xlu0 %v1954, 32
      %v2038 = vpop.permute.xlu0 %2037
      %2039 = vrot.lane.b32.xlu0 %v1956, 32
      %v2040 = vpop.permute.xlu0 %2039
      %2041 = vrot.lane.b32.xlu0 %v1958, 32
      %v2042 = vpop.permute.xlu0 %2041
      %2043 = vrot.lane.b32.xlu0 %v1960, 32
      %v2044 = vpop.permute.xlu0 %2043
      %2045 = vrot.lane.b32.xlu0 %v1962, 32
      %v2046 = vpop.permute.xlu0 %2045
      %2047 = vrot.lane.b32.xlu0 %v1964, 32
      %v2048 = vpop.permute.xlu0 %2047
      %v2091 = vsel %vm1881, %v1963, %v1963
      %2092 = vrot.lane.b32.xlu0 %v1885, 64
      %v2093 = vpop.permute.xlu0 %2092
      %2094 = vrot.lane.b32.xlu0 %v1888, 64
      %v2095 = vpop.permute.xlu0 %2094
      %2096 = vrot.lane.b32.xlu0 %v1890, 64
      %v2097 = vpop.permute.xlu0 %2096
      %2098 = vrot.lane.b32.xlu0 %v1892, 64
      %v2099 = vpop.permute.xlu0 %2098
      %2100 = vrot.lane.b32.xlu0 %v1894, 64
      %v2101 = vpop.permute.xlu0 %2100
      %2102 = vrot.lane.b32.xlu0 %v1896, 64
      %v2103 = vpop.permute.xlu0 %2102
      %2104 = vrot.lane.b32.xlu0 %v1898, 64
      %v2105 = vpop.permute.xlu0 %2104
      %2106 = vrot.lane.b32.xlu0 %v1900, 64
      %v2107 = vpop.permute.xlu0 %2106
      %2108 = vrot.lane.b32.xlu0 %v1902, 64
      %v2109 = vpop.permute.xlu0 %2108
      %2110 = vrot.lane.b32.xlu0 %v1904, 64
      %v2111 = vpop.permute.xlu0 %2110
      %2112 = vrot.lane.b32.xlu0 %v1906, 64
      %v2113 = vpop.permute.xlu0 %2112
      %2114 = vrot.lane.b32.xlu0 %v1908, 64
      %v2115 = vpop.permute.xlu0 %2114
      %2116 = vrot.lane.b32.xlu0 %v1910, 64
      %v2117 = vpop.permute.xlu0 %2116
      %2118 = vrot.lane.b32.xlu0 %v1912, 64
      %v2119 = vpop.permute.xlu0 %2118
      %2120 = vrot.lane.b32.xlu0 %v1914, 64
      %v2121 = vpop.permute.xlu0 %2120
      %2122 = vrot.lane.b32.xlu0 %v1916, 64
      %v2123 = vpop.permute.xlu0 %2122
      %2124 = vrot.lane.b32.xlu0 %v1918, 64
      %v2125 = vpop.permute.xlu0 %2124
      %2126 = vrot.lane.b32.xlu0 %v1920, 64
      %v2127 = vpop.permute.xlu0 %2126
      %2128 = vrot.lane.b32.xlu0 %v1922, 64
      %v2129 = vpop.permute.xlu0 %2128
      %2130 = vrot.lane.b32.xlu0 %v1924, 64
      %v2131 = vpop.permute.xlu0 %2130
      %2132 = vrot.lane.b32.xlu0 %v1926, 64
      %v2133 = vpop.permute.xlu0 %2132
      %2134 = vrot.lane.b32.xlu0 %v1928, 64
      %v2135 = vpop.permute.xlu0 %2134
      %2136 = vrot.lane.b32.xlu0 %v1930, 64
      %v2137 = vpop.permute.xlu0 %2136
      %2138 = vrot.lane.b32.xlu0 %v1932, 64
      %v2139 = vpop.permute.xlu0 %2138
      %2140 = vrot.lane.b32.xlu0 %v1934, 64
      %v2141 = vpop.permute.xlu0 %2140
      %2142 = vrot.lane.b32.xlu0 %v1936, 64
      %v2143 = vpop.permute.xlu0 %2142
      %2144 = vrot.lane.b32.xlu0 %v1938, 64
      %v2145 = vpop.permute.xlu0 %2144
      %2146 = vrot.lane.b32.xlu0 %v1940, 64
      %v2147 = vpop.permute.xlu0 %2146
      %2148 = vrot.lane.b32.xlu0 %v1942, 64
      %v2149 = vpop.permute.xlu0 %2148
      %2150 = vrot.lane.b32.xlu0 %v1944, 64
      %v2151 = vpop.permute.xlu0 %2150
      %2152 = vrot.lane.b32.xlu0 %v1946, 64
      %v2153 = vpop.permute.xlu0 %2152
      %2154 = vrot.lane.b32.xlu0 %v1948, 64
      %v2155 = vpop.permute.xlu0 %2154
      %2156 = vrot.lane.b32.xlu0 %v1950, 64
      %v2157 = vpop.permute.xlu0 %2156
      %2158 = vrot.lane.b32.xlu0 %v1952, 64
      %v2159 = vpop.permute.xlu0 %2158
      %2160 = vrot.lane.b32.xlu0 %v1954, 64
      %v2161 = vpop.permute.xlu0 %2160
      %2162 = vrot.lane.b32.xlu0 %v1956, 64
      %v2163 = vpop.permute.xlu0 %2162
      %2164 = vrot.lane.b32.xlu0 %v1958, 64
      %v2165 = vpop.permute.xlu0 %2164
      %2166 = vrot.lane.b32.xlu0 %v1960, 64
      %v2167 = vpop.permute.xlu0 %2166
      %2168 = vrot.lane.b32.xlu0 %v1962, 64
      %v2169 = vpop.permute.xlu0 %2168
      %2170 = vrot.lane.b32.xlu0 %v1964, 64
      %v2171 = vpop.permute.xlu0 %2170
      %2172 = vrot.lane.b32.xlu0 %v2091, 64
      %v2173 = vpop.permute.xlu0 %2172
      %v2215 = vrot.slane %v1138, 5
      %v2216 = vrot.slane %v1139, 5
      %v2217 = vsel %vm575, %v2215, %v2216
      %v2218 = vrot.slane %v1140, 5
      %v2219 = vsel %vm575, %v2216, %v2218
      %v2220 = vrot.slane %v1141, 5
      %v2221 = vsel %vm575, %v2218, %v2220
      %v2222 = vrot.slane %v1142, 5
      %v2223 = vsel %vm575, %v2220, %v2222
      %v2224 = vrot.slane %v1143, 5
      %v2225 = vsel %vm575, %v2222, %v2224
      %v2226 = vrot.slane %v1144, 5
      %v2227 = vsel %vm575, %v2224, %v2226
      %v2228 = vrot.slane %v1145, 5
      %v2229 = vsel %vm575, %v2226, %v2228
      %v2230 = vrot.slane %v1146, 5
      %v2231 = vsel %vm575, %v2228, %v2230
      %v2232 = vrot.slane %v1147, 5
      %v2233 = vsel %vm575, %v2230, %v2232
      %v2234 = vrot.slane %v1148, 5
      %v2235 = vsel %vm575, %v2232, %v2234
      %v2236 = vrot.slane %v1149, 5
      %v2237 = vsel %vm575, %v2234, %v2236
      %v2238 = vrot.slane %v1150, 5
      %v2239 = vsel %vm575, %v2236, %v2238
      %v2240 = vrot.slane %v1151, 5
      %v2241 = vsel %vm575, %v2238, %v2240
      %v2242 = vrot.slane %v1152, 5
      %v2243 = vsel %vm575, %v2240, %v2242
      %v2244 = vrot.slane %v1153, 5
      %v2245 = vsel %vm575, %v2242, %v2244
      %v2246 = vrot.slane %v1154, 5
      %v2247 = vsel %vm575, %v2244, %v2246
      %v2248 = vrot.slane %v1155, 5
      %v2249 = vsel %vm575, %v2246, %v2248
      %v2250 = vrot.slane %v1156, 5
      %v2251 = vsel %vm575, %v2248, %v2250
      %v2252 = vrot.slane %v1157, 5
      %v2253 = vsel %vm575, %v2250, %v2252
      %v2254 = vrot.slane %v1158, 5
      %v2255 = vsel %vm575, %v2252, %v2254
      %v2256 = vrot.slane %v1159, 5
      %v2257 = vsel %vm575, %v2254, %v2256
      %v2258 = vrot.slane %v1160, 5
      %v2259 = vsel %vm575, %v2256, %v2258
      %v2260 = vrot.slane %v1161, 5
      %v2261 = vsel %vm575, %v2258, %v2260
      %v2262 = vrot.slane %v1162, 5
      %v2263 = vsel %vm575, %v2260, %v2262
      %v2264 = vrot.slane %v1163, 5
      %v2265 = vsel %vm575, %v2262, %v2264
      %v2266 = vrot.slane %v1164, 5
      %v2267 = vsel %vm575, %v2264, %v2266
      %v2268 = vrot.slane %v1165, 5
      %v2269 = vsel %vm575, %v2266, %v2268
      %v2270 = vrot.slane %v1166, 5
      %v2271 = vsel %vm575, %v2268, %v2270
      %v2272 = vrot.slane %v1167, 5
      %v2273 = vsel %vm575, %v2270, %v2272
      %v2274 = vrot.slane %v1168, 5
      %v2275 = vsel %vm575, %v2272, %v2274
      %v2276 = vrot.slane %v1169, 5
      %v2277 = vsel %vm575, %v2274, %v2276
      %v2278 = vrot.slane %v1170, 5
      %v2279 = vsel %vm575, %v2276, %v2278
      %v2280 = vrot.slane %v1171, 5
      %v2281 = vsel %vm575, %v2278, %v2280
      %v2282 = vrot.slane %v1172, 5
      %v2283 = vsel %vm575, %v2280, %v2282
      %v2284 = vrot.slane %v1173, 5
      %v2285 = vsel %vm575, %v2282, %v2284
      %v2286 = vrot.slane %v1174, 5
      %v2287 = vsel %vm575, %v2284, %v2286
      %v2288 = vrot.slane %v1175, 5
      %v2289 = vsel %vm575, %v2286, %v2288
      %v2290 = vrot.slane %v1176, 5
      %v2291 = vsel %vm575, %v2288, %v2290
      %v2292 = vrot.slane 0.0, 5
      %v2293 = vsel %vm575, %v2290, %v2292
      %v2294 = vsel %vm575, %v2292, %v2292
      %2295 = vrot.lane.b32.xlu0 %v2215, 96
      %v2296 = vpop.permute.xlu0 %2295
      %2297 = vrot.lane.b32.xlu0 %v2217, 96
      %v2298 = vpop.permute.xlu0 %2297
      %2299 = vrot.lane.b32.xlu0 %v2219, 96
      %v2300 = vpop.permute.xlu0 %2299
      %2301 = vrot.lane.b32.xlu0 %v2221, 96
      %v2302 = vpop.permute.xlu0 %2301
      %2303 = vrot.lane.b32.xlu0 %v2223, 96
      %v2304 = vpop.permute.xlu0 %2303
      %2305 = vrot.lane.b32.xlu0 %v2225, 96
      %v2306 = vpop.permute.xlu0 %2305
      %2307 = vrot.lane.b32.xlu0 %v2227, 96
      %v2308 = vpop.permute.xlu0 %2307
      %2309 = vrot.lane.b32.xlu0 %v2229, 96
      %v2310 = vpop.permute.xlu0 %2309
      %2311 = vrot.lane.b32.xlu0 %v2231, 96
      %v2312 = vpop.permute.xlu0 %2311
      %2313 = vrot.lane.b32.xlu0 %v2233, 96
      %v2314 = vpop.permute.xlu0 %2313
      %2315 = vrot.lane.b32.xlu0 %v2235, 96
      %v2316 = vpop.permute.xlu0 %2315
      %2317 = vrot.lane.b32.xlu0 %v2237, 96
      %v2318 = vpop.permute.xlu0 %2317
      %2319 = vrot.lane.b32.xlu0 %v2239, 96
      %v2320 = vpop.permute.xlu0 %2319
      %2321 = vrot.lane.b32.xlu0 %v2241, 96
      %v2322 = vpop.permute.xlu0 %2321
      %2323 = vrot.lane.b32.xlu0 %v2243, 96
      %v2324 = vpop.permute.xlu0 %2323
      %2325 = vrot.lane.b32.xlu0 %v2245, 96
      %v2326 = vpop.permute.xlu0 %2325
      %2327 = vrot.lane.b32.xlu0 %v2247, 96
      %v2328 = vpop.permute.xlu0 %2327
      %2329 = vrot.lane.b32.xlu0 %v2249, 96
      %v2330 = vpop.permute.xlu0 %2329
      %2331 = vrot.lane.b32.xlu0 %v2251, 96
      %v2332 = vpop.permute.xlu0 %2331
      %2333 = vrot.lane.b32.xlu0 %v2253, 96
      %v2334 = vpop.permute.xlu0 %2333
      %2335 = vrot.lane.b32.xlu0 %v2255, 96
      %v2336 = vpop.permute.xlu0 %2335
      %2337 = vrot.lane.b32.xlu0 %v2257, 96
      %v2338 = vpop.permute.xlu0 %2337
      %2339 = vrot.lane.b32.xlu0 %v2259, 96
      %v2340 = vpop.permute.xlu0 %2339
      %2341 = vrot.lane.b32.xlu0 %v2261, 96
      %v2342 = vpop.permute.xlu0 %2341
      %2343 = vrot.lane.b32.xlu0 %v2263, 96
      %v2344 = vpop.permute.xlu0 %2343
      %2345 = vrot.lane.b32.xlu0 %v2265, 96
      %v2346 = vpop.permute.xlu0 %2345
      %2347 = vrot.lane.b32.xlu0 %v2267, 96
      %v2348 = vpop.permute.xlu0 %2347
      %2349 = vrot.lane.b32.xlu0 %v2269, 96
      %v2350 = vpop.permute.xlu0 %2349
      %2351 = vrot.lane.b32.xlu0 %v2271, 96
      %v2352 = vpop.permute.xlu0 %2351
      %2353 = vrot.lane.b32.xlu0 %v2273, 96
      %v2354 = vpop.permute.xlu0 %2353
      %2355 = vrot.lane.b32.xlu0 %v2275, 96
      %v2356 = vpop.permute.xlu0 %2355
      %2357 = vrot.lane.b32.xlu0 %v2277, 96
      %v2358 = vpop.permute.xlu0 %2357
      %2359 = vrot.lane.b32.xlu0 %v2279, 96
      %v2360 = vpop.permute.xlu0 %2359
      %2361 = vrot.lane.b32.xlu0 %v2281, 96
      %v2362 = vpop.permute.xlu0 %2361
      %2363 = vrot.lane.b32.xlu0 %v2283, 96
      %v2364 = vpop.permute.xlu0 %2363
      %2365 = vrot.lane.b32.xlu0 %v2285, 96
      %v2366 = vpop.permute.xlu0 %2365
      %2367 = vrot.lane.b32.xlu0 %v2287, 96
      %v2368 = vpop.permute.xlu0 %2367
      %2369 = vrot.lane.b32.xlu0 %v2289, 96
      %v2370 = vpop.permute.xlu0 %2369
      %2371 = vrot.lane.b32.xlu0 %v2291, 96
      %v2372 = vpop.permute.xlu0 %2371
      %2373 = vrot.lane.b32.xlu0 %v2293, 96
      %v2374 = vpop.permute.xlu0 %2373
      %2375 = vrot.lane.b32.xlu0 %v2294, 96
      %v2376 = vpop.permute.xlu0 %2375
      %vm2418 = vcmask 1041408
      %v2419 = vrot.slane %v1138, 6
      %v2420 = vrot.slane %v1139, 6
      %v2421 = vsel %vm2418, %v2419, %v2420
      %v2422 = vrot.slane %v1140, 6
      %v2423 = vsel %vm2418, %v2420, %v2422
      %v2424 = vrot.slane %v1141, 6
      %v2425 = vsel %vm2418, %v2422, %v2424
      %v2426 = vrot.slane %v1142, 6
      %v2427 = vsel %vm2418, %v2424, %v2426
      %v2428 = vrot.slane %v1143, 6
      %v2429 = vsel %vm2418, %v2426, %v2428
      %v2430 = vrot.slane %v1144, 6
      %v2431 = vsel %vm2418, %v2428, %v2430
      %v2432 = vrot.slane %v1145, 6
      %v2433 = vsel %vm2418, %v2430, %v2432
      %v2434 = vrot.slane %v1146, 6
      %v2435 = vsel %vm2418, %v2432, %v2434
      %v2436 = vrot.slane %v1147, 6
      %v2437 = vsel %vm2418, %v2434, %v2436
      %v2438 = vrot.slane %v1148, 6
      %v2439 = vsel %vm2418, %v2436, %v2438
      %v2440 = vrot.slane %v1149, 6
      %v2441 = vsel %vm2418, %v2438, %v2440
      %v2442 = vrot.slane %v1150, 6
      %v2443 = vsel %vm2418, %v2440, %v2442
      %v2444 = vrot.slane %v1151, 6
      %v2445 = vsel %vm2418, %v2442, %v2444
      %v2446 = vrot.slane %v1152, 6
      %v2447 = vsel %vm2418, %v2444, %v2446
      %v2448 = vrot.slane %v1153, 6
      %v2449 = vsel %vm2418, %v2446, %v2448
      %v2450 = vrot.slane %v1154, 6
      %v2451 = vsel %vm2418, %v2448, %v2450
      %v2452 = vrot.slane %v1155, 6
      %v2453 = vsel %vm2418, %v2450, %v2452
      %v2454 = vrot.slane %v1156, 6
      %v2455 = vsel %vm2418, %v2452, %v2454
      %v2456 = vrot.slane %v1157, 6
      %v2457 = vsel %vm2418, %v2454, %v2456
      %v2458 = vrot.slane %v1158, 6
      %v2459 = vsel %vm2418, %v2456, %v2458
      %v2460 = vrot.slane %v1159, 6
      %v2461 = vsel %vm2418, %v2458, %v2460
      %v2462 = vrot.slane %v1160, 6
      %v2463 = vsel %vm2418, %v2460, %v2462
      %v2464 = vrot.slane %v1161, 6
      %v2465 = vsel %vm2418, %v2462, %v2464
      %v2466 = vrot.slane %v1162, 6
      %v2467 = vsel %vm2418, %v2464, %v2466
      %v2468 = vrot.slane %v1163, 6
      %v2469 = vsel %vm2418, %v2466, %v2468
      %v2470 = vrot.slane %v1164, 6
      %v2471 = vsel %vm2418, %v2468, %v2470
      %v2472 = vrot.slane %v1165, 6
      %v2473 = vsel %vm2418, %v2470, %v2472
      %v2474 = vrot.slane %v1166, 6
      %v2475 = vsel %vm2418, %v2472, %v2474
      %v2476 = vrot.slane %v1167, 6
      %v2477 = vsel %vm2418, %v2474, %v2476
      %v2478 = vrot.slane %v1168, 6
      %v2479 = vsel %vm2418, %v2476, %v2478
      %v2480 = vrot.slane %v1169, 6
      %v2481 = vsel %vm2418, %v2478, %v2480
      %v2482 = vrot.slane %v1170, 6
      %v2483 = vsel %vm2418, %v2480, %v2482
      %v2484 = vrot.slane %v1171, 6
      %v2485 = vsel %vm2418, %v2482, %v2484
      %v2486 = vrot.slane %v1172, 6
      %v2487 = vsel %vm2418, %v2484, %v2486
      %v2488 = vrot.slane %v1173, 6
      %v2489 = vsel %vm2418, %v2486, %v2488
      %v2490 = vrot.slane %v1174, 6
      %v2491 = vsel %vm2418, %v2488, %v2490
      %v2492 = vrot.slane %v1175, 6
      %v2493 = vsel %vm2418, %v2490, %v2492
      %v2494 = vrot.slane %v1176, 6
      %v2495 = vsel %vm2418, %v2492, %v2494
      %v2496 = vrot.slane 0.0, 6
      %v2497 = vsel %vm2418, %v2494, %v2496
      %v2498 = vsel %vm2418, %v2496, %v2496
      %vm2499 = vcmask 261120
      %v2500 = vsel %vm2499, 0.0, %v1299
      %v2501 = vsel %vm2499, 0.0, %v1301
      %v2502 = vsel %vm2499, %v1136, %v1303
      %v2503 = vsel %vm2499, %v1137, %v1305
      %v2504 = vsel %vm2499, %v1138, %v1307
      %v2505 = vsel %vm2499, %v1139, %v1309
      %v2506 = vsel %vm2499, %v1140, %v1311
      %v2507 = vsel %vm2499, %v1141, %v1313
      %v2508 = vsel %vm2499, %v1142, %v1315
      %v2509 = vsel %vm2499, %v1143, %v1317
      %v2510 = vsel %vm2499, %v1144, %v1319
      %v2511 = vsel %vm2499, %v1145, %v1321
      %v2512 = vsel %vm2499, %v1146, %v1323
      %v2513 = vsel %vm2499, %v1147, %v1325
      %v2514 = vsel %vm2499, %v1148, %v1327
      %v2515 = vsel %vm2499, %v1149, %v1329
      %v2516 = vsel %vm2499, %v1150, %v1331
      %v2517 = vsel %vm2499, %v1151, %v1333
      %v2518 = vsel %vm2499, %v1152, %v1335
      %v2519 = vsel %vm2499, %v1153, %v1337
      %v2520 = vsel %vm2499, %v1154, %v1339
      %v2521 = vsel %vm2499, %v1155, %v1341
      %v2522 = vsel %vm2499, %v1156, %v1343
      %v2523 = vsel %vm2499, %v1157, %v1345
      %v2524 = vsel %vm2499, %v1158, %v1347
      %v2525 = vsel %vm2499, %v1159, %v1349
      %v2526 = vsel %vm2499, %v1160, %v1351
      %v2527 = vsel %vm2499, %v1161, %v1353
      %v2528 = vsel %vm2499, %v1162, %v1355
      %v2529 = vsel %vm2499, %v1163, %v1357
      %v2530 = vsel %vm2499, %v1164, %v1359
      %v2531 = vsel %vm2499, %v1165, %v1361
      %v2532 = vsel %vm2499, %v1166, %v1363
      %v2533 = vsel %vm2499, %v1167, %v1365
      %v2534 = vsel %vm2499, %v1168, %v1367
      %v2535 = vsel %vm2499, %v1169, %v1369
      %v2536 = vsel %vm2499, %v1170, %v1371
      %v2537 = vsel %vm2499, %v1171, %v1373
      %v2538 = vsel %vm2499, %v1172, %v1375
      %v2539 = vsel %vm2499, %v1173, %v1377
      %v2540 = vsel %vm2499, %v1174, %v1379
      %vm2541 = vcmask 523264
      %v2542 = vsel %vm2541, %v2500, %v1503
      %v2543 = vsel %vm2541, %v2501, %v1505
      %v2544 = vsel %vm2541, %v2502, %v1507
      %v2545 = vsel %vm2541, %v2503, %v1509
      %v2546 = vsel %vm2541, %v2504, %v1511
      %v2547 = vsel %vm2541, %v2505, %v1513
      %v2548 = vsel %vm2541, %v2506, %v1515
      %v2549 = vsel %vm2541, %v2507, %v1517
      %v2550 = vsel %vm2541, %v2508, %v1519
      %v2551 = vsel %vm2541, %v2509, %v1521
      %v2552 = vsel %vm2541, %v2510, %v1523
      %v2553 = vsel %vm2541, %v2511, %v1525
      %v2554 = vsel %vm2541, %v2512, %v1527
      %v2555 = vsel %vm2541, %v2513, %v1529
      %v2556 = vsel %vm2541, %v2514, %v1531
      %v2557 = vsel %vm2541, %v2515, %v1533
      %v2558 = vsel %vm2541, %v2516, %v1535
      %v2559 = vsel %vm2541, %v2517, %v1537
      %v2560 = vsel %vm2541, %v2518, %v1539
      %v2561 = vsel %vm2541, %v2519, %v1541
      %v2562 = vsel %vm2541, %v2520, %v1543
      %v2563 = vsel %vm2541, %v2521, %v1545
      %v2564 = vsel %vm2541, %v2522, %v1547
      %v2565 = vsel %vm2541, %v2523, %v1549
      %v2566 = vsel %vm2541, %v2524, %v1551
      %v2567 = vsel %vm2541, %v2525, %v1553
      %v2568 = vsel %vm2541, %v2526, %v1555
      %v2569 = vsel %vm2541, %v2527, %v1557
      %v2570 = vsel %vm2541, %v2528, %v1559
      %v2571 = vsel %vm2541, %v2529, %v1561
      %v2572 = vsel %vm2541, %v2530, %v1563
      %v2573 = vsel %vm2541, %v2531, %v1565
      %v2574 = vsel %vm2541, %v2532, %v1567
      %v2575 = vsel %vm2541, %v2533, %v1569
      %v2576 = vsel %vm2541, %v2534, %v1571
      %v2577 = vsel %vm2541, %v2535, %v1573
      %v2578 = vsel %vm2541, %v2536, %v1575
      %v2579 = vsel %vm2541, %v2537, %v1577
      %v2580 = vsel %vm2541, %v2538, %v1579
      %v2581 = vsel %vm2541, %v2539, %v1581
      %v2582 = vsel %vm2541, %v2540, %v1583
      %vm2583 = vcmask 785408
      %v2584 = vsel %vm2583, %v2542, %v1632
      %v2585 = vsel %vm2583, %v2542, %v1634
      %v2586 = vsel %vm2583, %v2543, %v1636
      %v2587 = vsel %vm2583, %v2544, %v1638
      %v2588 = vsel %vm2583, %v2545, %v1640
      %v2589 = vsel %vm2583, %v2546, %v1642
      %v2590 = vsel %vm2583, %v2547, %v1644
      %v2591 = vsel %vm2583, %v2548, %v1646
      %v2592 = vsel %vm2583, %v2549, %v1648
      %v2593 = vsel %vm2583, %v2550, %v1650
      %v2594 = vsel %vm2583, %v2551, %v1652
      %v2595 = vsel %vm2583, %v2552, %v1654
      %v2596 = vsel %vm2583, %v2553, %v1656
      %v2597 = vsel %vm2583, %v2554, %v1658
      %v2598 = vsel %vm2583, %v2555, %v1660
      %v2599 = vsel %vm2583, %v2556, %v1662
      %v2600 = vsel %vm2583, %v2557, %v1664
      %v2601 = vsel %vm2583, %v2558, %v1666
      %v2602 = vsel %vm2583, %v2559, %v1668
      %v2603 = vsel %vm2583, %v2560, %v1670
      %v2604 = vsel %vm2583, %v2561, %v1672
      %v2605 = vsel %vm2583, %v2562, %v1674
      %v2606 = vsel %vm2583, %v2563, %v1676
      %v2607 = vsel %vm2583, %v2564, %v1678
      %v2608 = vsel %vm2583, %v2565, %v1680
      %v2609 = vsel %vm2583, %v2566, %v1682
      %v2610 = vsel %vm2583, %v2567, %v1684
      %v2611 = vsel %vm2583, %v2568, %v1686
      %v2612 = vsel %vm2583, %v2569, %v1688
      %v2613 = vsel %vm2583, %v2570, %v1690
      %v2614 = vsel %vm2583, %v2571, %v1692
      %v2615 = vsel %vm2583, %v2572, %v1694
      %v2616 = vsel %vm2583, %v2573, %v1696
      %v2617 = vsel %vm2583, %v2574, %v1698
      %v2618 = vsel %vm2583, %v2575, %v1700
      %v2619 = vsel %vm2583, %v2576, %v1702
      %v2620 = vsel %vm2583, %v2577, %v1704
      %v2621 = vsel %vm2583, %v2578, %v1706
      %v2622 = vsel %vm2583, %v2579, %v1708
      %v2623 = vsel %vm2583, %v2580, %v1710
      %v2624 = vsel %vm2583, %v2581, %v1712
      %v2625 = vsel %vm2583, %v2582, %v1714
      %v2626 = vsel %vm2499, %v1758, %v1966
      %v2627 = vsel %vm2499, %v1760, %v1968
      %v2628 = vsel %vm2499, %v1762, %v1970
      %v2629 = vsel %vm2499, %v1764, %v1972
      %v2630 = vsel %vm2499, %v1766, %v1974
      %v2631 = vsel %vm2499, %v1768, %v1976
      %v2632 = vsel %vm2499, %v1770, %v1978
      %v2633 = vsel %vm2499, %v1772, %v1980
      %v2634 = vsel %vm2499, %v1774, %v1982
      %v2635 = vsel %vm2499, %v1776, %v1984
      %v2636 = vsel %vm2499, %v1778, %v1986
      %v2637 = vsel %vm2499, %v1780, %v1988
      %v2638 = vsel %vm2499, %v1782, %v1990
      %v2639 = vsel %vm2499, %v1784, %v1992
      %v2640 = vsel %vm2499, %v1786, %v1994
      %v2641 = vsel %vm2499, %v1788, %v1996
      %v2642 = vsel %vm2499, %v1790, %v1998
      %v2643 = vsel %vm2499, %v1792, %v2000
      %v2644 = vsel %vm2499, %v1794, %v2002
      %v2645 = vsel %vm2499, %v1796, %v2004
      %v2646 = vsel %vm2499, %v1798, %v2006
      %v2647 = vsel %vm2499, %v1800, %v2008
      %v2648 = vsel %vm2499, %v1802, %v2010
      %v2649 = vsel %vm2499, %v1804, %v2012
      %v2650 = vsel %vm2499, %v1806, %v2014
      %v2651 = vsel %vm2499, %v1808, %v2016
      %v2652 = vsel %vm2499, %v1810, %v2018
      %v2653 = vsel %vm2499, %v1812, %v2020
      %v2654 = vsel %vm2499, %v1814, %v2022
      %v2655 = vsel %vm2499, %v1816, %v2024
      %v2656 = vsel %vm2499, %v1818, %v2026
      %v2657 = vsel %vm2499, %v1820, %v2028
      %v2658 = vsel %vm2499, %v1822, %v2030
      %v2659 = vsel %vm2499, %v1824, %v2032
      %v2660 = vsel %vm2499, %v1826, %v2034
      %v2661 = vsel %vm2499, %v1828, %v2036
      %v2662 = vsel %vm2499, %v1830, %v2038
      %v2663 = vsel %vm2499, %v1832, %v2040
      %v2664 = vsel %vm2499, %v1834, %v2042
      %v2665 = vsel %vm2499, %v1836, %v2044
      %v2666 = vsel %vm2499, %v1838, %v2046
      %v2667 = vsel %vm2499, %v1837, %v2048
      %v2668 = vsel %vm2541, %v2626, %v2093
      %v2669 = vsel %vm2541, %v2627, %v2095
      %v2670 = vsel %vm2541, %v2628, %v2097
      %v2671 = vsel %vm2541, %v2629, %v2099
      %v2672 = vsel %vm2541, %v2630, %v2101
      %v2673 = vsel %vm2541, %v2631, %v2103
      %v2674 = vsel %vm2541, %v2632, %v2105
      %v2675 = vsel %vm2541, %v2633, %v2107
      %v2676 = vsel %vm2541, %v2634, %v2109
      %v2677 = vsel %vm2541, %v2635, %v2111
      %v2678 = vsel %vm2541, %v2636, %v2113
      %v2679 = vsel %vm2541, %v2637, %v2115
      %v2680 = vsel %vm2541, %v2638, %v2117
      %v2681 = vsel %vm2541, %v2639, %v2119
      %v2682 = vsel %vm2541, %v2640, %v2121
      %v2683 = vsel %vm2541, %v2641, %v2123
      %v2684 = vsel %vm2541, %v2642, %v2125
      %v2685 = vsel %vm2541, %v2643, %v2127
      %v2686 = vsel %vm2541, %v2644, %v2129
      %v2687 = vsel %vm2541, %v2645, %v2131
      %v2688 = vsel %vm2541, %v2646, %v2133
      %v2689 = vsel %vm2541, %v2647, %v2135
      %v2690 = vsel %vm2541, %v2648, %v2137
      %v2691 = vsel %vm2541, %v2649, %v2139
      %v2692 = vsel %vm2541, %v2650, %v2141
      %v2693 = vsel %vm2541, %v2651, %v2143
      %v2694 = vsel %vm2541, %v2652, %v2145
      %v2695 = vsel %vm2541, %v2653, %v2147
      %v2696 = vsel %vm2541, %v2654, %v2149
      %v2697 = vsel %vm2541, %v2655, %v2151
      %v2698 = vsel %vm2541, %v2656, %v2153
      %v2699 = vsel %vm2541, %v2657, %v2155
      %v2700 = vsel %vm2541, %v2658, %v2157
      %v2701 = vsel %vm2541, %v2659, %v2159
      %v2702 = vsel %vm2541, %v2660, %v2161
      %v2703 = vsel %vm2541, %v2661, %v2163
      %v2704 = vsel %vm2541, %v2662, %v2165
      %v2705 = vsel %vm2541, %v2663, %v2167
      %v2706 = vsel %vm2541, %v2664, %v2169
      %v2707 = vsel %vm2541, %v2665, %v2171
      %v2708 = vsel %vm2541, %v2666, %v2173
      %v2709 = vsel %vm2541, %v2667, %v2173
      %v2710 = vsel %vm2583, %v2668, %v2296
      %v2711 = vsel %vm2583, %v2669, %v2298
      %v2712 = vsel %vm2583, %v2670, %v2300
      %v2713 = vsel %vm2583, %v2671, %v2302
      %v2714 = vsel %vm2583, %v2672, %v2304
      %v2715 = vsel %vm2583, %v2673, %v2306
      %v2716 = vsel %vm2583, %v2674, %v2308
      %v2717 = vsel %vm2583, %v2675, %v2310
      %v2718 = vsel %vm2583, %v2676, %v2312
      %v2719 = vsel %vm2583, %v2677, %v2314
      %v2720 = vsel %vm2583, %v2678, %v2316
      %v2721 = vsel %vm2583, %v2679, %v2318
      %v2722 = vsel %vm2583, %v2680, %v2320
      %v2723 = vsel %vm2583, %v2681, %v2322
      %v2724 = vsel %vm2583, %v2682, %v2324
      %v2725 = vsel %vm2583, %v2683, %v2326
      %v2726 = vsel %vm2583, %v2684, %v2328
      %v2727 = vsel %vm2583, %v2685, %v2330
      %v2728 = vsel %vm2583, %v2686, %v2332
      %v2729 = vsel %vm2583, %v2687, %v2334
      %v2730 = vsel %vm2583, %v2688, %v2336
      %v2731 = vsel %vm2583, %v2689, %v2338
      %v2732 = vsel %vm2583, %v2690, %v2340
      %v2733 = vsel %vm2583, %v2691, %v2342
      %v2734 = vsel %vm2583, %v2692, %v2344
      %v2735 = vsel %vm2583, %v2693, %v2346
      %v2736 = vsel %vm2583, %v2694, %v2348
      %v2737 = vsel %vm2583, %v2695, %v2350
      %v2738 = vsel %vm2583, %v2696, %v2352
      %v2739 = vsel %vm2583, %v2697, %v2354
      %v2740 = vsel %vm2583, %v2698, %v2356
      %v2741 = vsel %vm2583, %v2699, %v2358
      %v2742 = vsel %vm2583, %v2700, %v2360
      %v2743 = vsel %vm2583, %v2701, %v2362
      %v2744 = vsel %vm2583, %v2702, %v2364
      %v2745 = vsel %vm2583, %v2703, %v2366
      %v2746 = vsel %vm2583, %v2704, %v2368
      %v2747 = vsel %vm2583, %v2705, %v2370
      %v2748 = vsel %vm2583, %v2706, %v2372
      %v2749 = vsel %vm2583, %v2707, %v2374
      %v2750 = vsel %vm2583, %v2708, %v2376
      %v2751 = vsel %vm2583, %v2709, %v2376
      %v2752 = vld [vmem:[%s3] sm:$0xff]
      %v2753 = vld [vmem:[%s3 + $0x8] sm:$0xff]
      %v2754 = vld [vmem:[%s3 + $0x10] sm:$0xff]
      %v2755 = vld [vmem:[%s3 + $0x18] sm:$0xff]
      %v2756 = vld [vmem:[%s3 + $0x20] sm:$0xff]
      %v2757 = vld [vmem:[%s3 + $0x28] sm:$0xff]
      %v2758 = vld [vmem:[%s3 + $0x30] sm:$0xff]
      %v2759 = vld [vmem:[%s3 + $0x38] sm:$0xff]
      %v2760 = vld [vmem:[%s3 + $0x40] sm:$0xff]
      %v2761 = vld [vmem:[%s3 + $0x48] sm:$0xff]
      %v2762 = vld [vmem:[%s3 + $0x50] sm:$0xff]
      %v2763 = vld [vmem:[%s3 + $0x58] sm:$0xff]
      %v2764 = vld [vmem:[%s3 + $0x60] sm:$0xff]
      %v2765 = vld [vmem:[%s3 + $0x68] sm:$0xff]
      %v2766 = vld [vmem:[%s3 + $0x70] sm:$0xff]
      %v2767 = vld [vmem:[%s3 + $0x78] sm:$0xff]
      %v2768 = vld [vmem:[%s3 + $0x80] sm:$0xff]
      %v2769 = vld [vmem:[%s3 + $0x88] sm:$0xff]
      %v2770 = vld [vmem:[%s3 + $0x90] sm:$0xff]
      %v2771 = vld [vmem:[%s3 + $0x98] sm:$0xff]
      %v2772 = vld [vmem:[%s3 + $0xa0] sm:$0xff]
      %v2773 = vld [vmem:[%s3 + $0xa8] sm:$0xff]
      %v2774 = vld [vmem:[%s3 + $0xb0] sm:$0xff]
      %v2775 = vld [vmem:[%s3 + $0xb8] sm:$0xff]
      %v2776 = vld [vmem:[%s3 + $0xc0] sm:$0xff]
      %v2777 = vld [vmem:[%s3 + $0xc8] sm:$0xff]
      %v2778 = vld [vmem:[%s3 + $0xd0] sm:$0xff]
      %v2779 = vld [vmem:[%s3 + $0xd8] sm:$0xff]
      %v2780 = vld [vmem:[%s3 + $0xe0] sm:$0xff]
      %v2781 = vld [vmem:[%s3 + $0xe8] sm:$0xff]
      %v2782 = vld [vmem:[%s3 + $0xf0] sm:$0xff]
      %v2783 = vld [vmem:[%s3 + $0xf8] sm:$0xff]
      %v2784 = vld [vmem:[%s3 + $0x100] sm:$0xff]
      %v2785 = vld [vmem:[%s3 + $0x108] sm:$0xff]
      %v2786 = vld [vmem:[%s3 + $0x110] sm:$0xff]
      %v2787 = vld [vmem:[%s3 + $0x118] sm:$0xff]
      %v2788 = vld [vmem:[%s4] sm:$0x1]
      %v2790 = vlaneseq
      %v2791 = vshrl.u32 %v2790, 7
      %v2792 = vsub.s32 0, %v2791
      %v2793 = vrot.slane %v2788, %v2792
      %v2879 = vrot.slane %v2584, 5
      %v2880 = vrot.slane %v2585, 5
      %v2881 = vsel %vm575, %v2879, %v2880
      %v2882 = vrot.slane %v2710, 5
      %v2883 = vrot.slane %v2711, 5
      %v2884 = vsel %vm575, %v2882, %v2883
      %v2885 = vrot.slane %v2419, 5
      %v2886 = vrot.slane %v2421, 5
      %v2887 = vsel %vm575, %v2885, %v2886
      %v2888 = vrot.slane %v2586, 5
      %v2889 = vsel %vm575, %v2880, %v2888
      %v2890 = vrot.slane %v2712, 5
      %v2891 = vsel %vm575, %v2883, %v2890
      %v2892 = vrot.slane %v2423, 5
      %v2893 = vsel %vm575, %v2886, %v2892
      %v2894 = vrot.slane %v2587, 5
      %v2895 = vsel %vm575, %v2888, %v2894
      %v2896 = vrot.slane %v2713, 5
      %v2897 = vsel %vm575, %v2890, %v2896
      %v2898 = vrot.slane %v2425, 5
      %v2899 = vsel %vm575, %v2892, %v2898
      %v2900 = vrot.slane %v2588, 5
      %v2901 = vsel %vm575, %v2894, %v2900
      %v2902 = vrot.slane %v2714, 5
      %v2903 = vsel %vm575, %v2896, %v2902
      %v2904 = vrot.slane %v2427, 5
      %v2905 = vsel %vm575, %v2898, %v2904
      %v2906 = vrot.slane %v2589, 5
      %v2907 = vsel %vm575, %v2900, %v2906
      %v2908 = vrot.slane %v2715, 5
      %v2909 = vsel %vm575, %v2902, %v2908
      %v2910 = vrot.slane %v2429, 5
      %v2911 = vsel %vm575, %v2904, %v2910
      %v2912 = vrot.slane %v2590, 5
      %v2913 = vsel %vm575, %v2906, %v2912
      %v2914 = vrot.slane %v2716, 5
      %v2915 = vsel %vm575, %v2908, %v2914
      %v2916 = vrot.slane %v2431, 5
      %v2917 = vsel %vm575, %v2910, %v2916
      %v2918 = vrot.slane %v2591, 5
      %v2919 = vsel %vm575, %v2912, %v2918
      %v2920 = vrot.slane %v2717, 5
      %v2921 = vsel %vm575, %v2914, %v2920
      %v2922 = vrot.slane %v2433, 5
      %v2923 = vsel %vm575, %v2916, %v2922
      %v2924 = vrot.slane %v2592, 5
      %v2925 = vsel %vm575, %v2918, %v2924
      %v2926 = vrot.slane %v2718, 5
      %v2927 = vsel %vm575, %v2920, %v2926
      %v2928 = vrot.slane %v2435, 5
      %v2929 = vsel %vm575, %v2922, %v2928
      %v2930 = vrot.slane %v2593, 5
      %v2931 = vsel %vm575, %v2924, %v2930
      %v2932 = vrot.slane %v2719, 5
      %v2933 = vsel %vm575, %v2926, %v2932
      %v2934 = vrot.slane %v2437, 5
      %v2935 = vsel %vm575, %v2928, %v2934
      %v2936 = vrot.slane %v2594, 5
      %v2937 = vsel %vm575, %v2930, %v2936
      %v2938 = vrot.slane %v2720, 5
      %v2939 = vsel %vm575, %v2932, %v2938
      %v2940 = vrot.slane %v2439, 5
      %v2941 = vsel %vm575, %v2934, %v2940
      %v2942 = vrot.slane %v2595, 5
      %v2943 = vsel %vm575, %v2936, %v2942
      %v2944 = vrot.slane %v2721, 5
      %v2945 = vsel %vm575, %v2938, %v2944
      %v2946 = vrot.slane %v2441, 5
      %v2947 = vsel %vm575, %v2940, %v2946
      %v2948 = vrot.slane %v2596, 5
      %v2949 = vsel %vm575, %v2942, %v2948
      %v2950 = vrot.slane %v2722, 5
      %v2951 = vsel %vm575, %v2944, %v2950
      %v2952 = vrot.slane %v2443, 5
      %v2953 = vsel %vm575, %v2946, %v2952
      %v2954 = vrot.slane %v2597, 5
      %v2955 = vsel %vm575, %v2948, %v2954
      %v2956 = vrot.slane %v2723, 5
      %v2957 = vsel %vm575, %v2950, %v2956
      %v2958 = vrot.slane %v2445, 5
      %v2959 = vsel %vm575, %v2952, %v2958
      %v2960 = vrot.slane %v2598, 5
      %v2961 = vsel %vm575, %v2954, %v2960
      %v2962 = vrot.slane %v2724, 5
      %v2963 = vsel %vm575, %v2956, %v2962
      %v2964 = vrot.slane %v2447, 5
      %v2965 = vsel %vm575, %v2958, %v2964
      %v2966 = vrot.slane %v2599, 5
      %v2967 = vsel %vm575, %v2960, %v2966
      %v2968 = vrot.slane %v2725, 5
      %v2969 = vsel %vm575, %v2962, %v2968
      %v2970 = vrot.slane %v2449, 5
      %v2971 = vsel %vm575, %v2964, %v2970
      %v2972 = vrot.slane %v2600, 5
      %v2973 = vsel %vm575, %v2966, %v2972
      %v2974 = vrot.slane %v2726, 5
      %v2975 = vsel %vm575, %v2968, %v2974
      %v2976 = vrot.slane %v2451, 5
      %v2977 = vsel %vm575, %v2970, %v2976
      %v2978 = vrot.slane %v2601, 5
      %v2979 = vsel %vm575, %v2972, %v2978
      %v2980 = vrot.slane %v2727, 5
      %v2981 = vsel %vm575, %v2974, %v2980
      %v2982 = vrot.slane %v2453, 5
      %v2983 = vsel %vm575, %v2976, %v2982
      %v2984 = vrot.slane %v2602, 5
      %v2985 = vsel %vm575, %v2978, %v2984
      %v2986 = vrot.slane %v2728, 5
      %v2987 = vsel %vm575, %v2980, %v2986
      %v2988 = vrot.slane %v2455, 5
      %v2989 = vsel %vm575, %v2982, %v2988
      %v2990 = vrot.slane %v2603, 5
      %v2991 = vsel %vm575, %v2984, %v2990
      %v2992 = vrot.slane %v2729, 5
      %v2993 = vsel %vm575, %v2986, %v2992
      %v2994 = vrot.slane %v2457, 5
      %v2995 = vsel %vm575, %v2988, %v2994
      %v2996 = vrot.slane %v2604, 5
      %v2997 = vsel %vm575, %v2990, %v2996
      %v2998 = vrot.slane %v2730, 5
      %v2999 = vsel %vm575, %v2992, %v2998
      %v3000 = vrot.slane %v2459, 5
      %v3001 = vsel %vm575, %v2994, %v3000
      %v3002 = vrot.slane %v2605, 5
      %v3003 = vsel %vm575, %v2996, %v3002
      %v3004 = vrot.slane %v2731, 5
      %v3005 = vsel %vm575, %v2998, %v3004
      %v3006 = vrot.slane %v2461, 5
      %v3007 = vsel %vm575, %v3000, %v3006
      %v3008 = vrot.slane %v2606, 5
      %v3009 = vsel %vm575, %v3002, %v3008
      %v3010 = vrot.slane %v2732, 5
      %v3011 = vsel %vm575, %v3004, %v3010
      %v3012 = vrot.slane %v2463, 5
      %v3013 = vsel %vm575, %v3006, %v3012
      %v3014 = vrot.slane %v2607, 5
      %v3015 = vsel %vm575, %v3008, %v3014
      %v3016 = vrot.slane %v2733, 5
      %v3017 = vsel %vm575, %v3010, %v3016
      %v3018 = vrot.slane %v2465, 5
      %v3019 = vsel %vm575, %v3012, %v3018
      %v3020 = vrot.slane %v2608, 5
      %v3021 = vsel %vm575, %v3014, %v3020
      %v3022 = vrot.slane %v2734, 5
      %v3023 = vsel %vm575, %v3016, %v3022
      %v3024 = vrot.slane %v2467, 5
      %v3025 = vsel %vm575, %v3018, %v3024
      %v3026 = vrot.slane %v2609, 5
      %v3027 = vsel %vm575, %v3020, %v3026
      %v3028 = vrot.slane %v2735, 5
      %v3029 = vsel %vm575, %v3022, %v3028
      %v3030 = vrot.slane %v2469, 5
      %v3031 = vsel %vm575, %v3024, %v3030
      %v3032 = vrot.slane %v2610, 5
      %v3033 = vsel %vm575, %v3026, %v3032
      %v3034 = vrot.slane %v2736, 5
      %v3035 = vsel %vm575, %v3028, %v3034
      %v3036 = vrot.slane %v2471, 5
      %v3037 = vsel %vm575, %v3030, %v3036
      %v3038 = vrot.slane %v2611, 5
      %v3039 = vsel %vm575, %v3032, %v3038
      %v3040 = vrot.slane %v2737, 5
      %v3041 = vsel %vm575, %v3034, %v3040
      %v3042 = vrot.slane %v2473, 5
      %v3043 = vsel %vm575, %v3036, %v3042
      %v3044 = vrot.slane %v2612, 5
      %v3045 = vsel %vm575, %v3038, %v3044
      %v3046 = vrot.slane %v2738, 5
      %v3047 = vsel %vm575, %v3040, %v3046
      %v3048 = vrot.slane %v2475, 5
      %v3049 = vsel %vm575, %v3042, %v3048
      %v3050 = vrot.slane %v2613, 5
      %v3051 = vsel %vm575, %v3044, %v3050
      %v3052 = vrot.slane %v2739, 5
      %v3053 = vsel %vm575, %v3046, %v3052
      %v3054 = vrot.slane %v2477, 5
      %v3055 = vsel %vm575, %v3048, %v3054
      %v3056 = vrot.slane %v2614, 5
      %v3057 = vsel %vm575, %v3050, %v3056
      %v3058 = vrot.slane %v2740, 5
      %v3059 = vsel %vm575, %v3052, %v3058
      %v3060 = vrot.slane %v2479, 5
      %v3061 = vsel %vm575, %v3054, %v3060
      %v3062 = vrot.slane %v2615, 5
      %v3063 = vsel %vm575, %v3056, %v3062
      %v3064 = vrot.slane %v2741, 5
      %v3065 = vsel %vm575, %v3058, %v3064
      %v3066 = vrot.slane %v2481, 5
      %v3067 = vsel %vm575, %v3060, %v3066
      %v3068 = vrot.slane %v2616, 5
      %v3069 = vsel %vm575, %v3062, %v3068
      %v3070 = vrot.slane %v2742, 5
      %v3071 = vsel %vm575, %v3064, %v3070
      %v3072 = vrot.slane %v2483, 5
      %v3073 = vsel %vm575, %v3066, %v3072
      %v3074 = vrot.slane %v2617, 5
      %v3075 = vsel %vm575, %v3068, %v3074
      %v3076 = vrot.slane %v2743, 5
      %v3077 = vsel %vm575, %v3070, %v3076
      %v3078 = vrot.slane %v2485, 5
      %v3079 = vsel %vm575, %v3072, %v3078
      %v3080 = vrot.slane %v2618, 5
      %v3081 = vsel %vm575, %v3074, %v3080
      %v3082 = vrot.slane %v2744, 5
      %v3083 = vsel %vm575, %v3076, %v3082
      %v3084 = vrot.slane %v2487, 5
      %v3085 = vsel %vm575, %v3078, %v3084
      %v3086 = vrot.slane %v2619, 5
      %v3087 = vsel %vm575, %v3080, %v3086
      %v3088 = vrot.slane %v2745, 5
      %v3089 = vsel %vm575, %v3082, %v3088
      %v3090 = vrot.slane %v2489, 5
      %v3091 = vsel %vm575, %v3084, %v3090
      %v3092 = vrot.slane %v2620, 5
      %v3093 = vsel %vm575, %v3086, %v3092
      %v3094 = vrot.slane %v2746, 5
      %v3095 = vsel %vm575, %v3088, %v3094
      %v3096 = vrot.slane %v2491, 5
      %v3097 = vsel %vm575, %v3090, %v3096
      %v3098 = vrot.slane %v2621, 5
      %v3099 = vsel %vm575, %v3092, %v3098
      %v3100 = vrot.slane %v2747, 5
      %v3101 = vsel %vm575, %v3094, %v3100
      %v3102 = vrot.slane %v2493, 5
      %v3103 = vsel %vm575, %v3096, %v3102
      %v3104 = vrot.slane %v2622, 5
      %v3105 = vsel %vm575, %v3098, %v3104
      %v3106 = vrot.slane %v2748, 5
      %v3107 = vsel %vm575, %v3100, %v3106
      %v3108 = vrot.slane %v2495, 5
      %v3109 = vsel %vm575, %v3102, %v3108
      %v3110 = vrot.slane %v2623, 5
      %v3111 = vsel %vm575, %v3104, %v3110
      %v3112 = vrot.slane %v2749, 5
      %v3113 = vsel %vm575, %v3106, %v3112
      %v3114 = vrot.slane %v2497, 5
      %v3115 = vsel %vm575, %v3108, %v3114
      %v3116 = vrot.slane %v2624, 5
      %v3117 = vsel %vm575, %v3110, %v3116
      %v3118 = vrot.slane %v2750, 5
      %v3119 = vsel %vm575, %v3112, %v3118
      %v3120 = vrot.slane %v2498, 5
      %v3121 = vsel %vm575, %v3114, %v3120
      %v3122 = vrot.slane %v2625, 5
      %v3123 = vsel %vm575, %v3116, %v3122
      %v3124 = vrot.slane %v2751, 5
      %v3125 = vsel %vm575, %v3118, %v3124
      %v3126 = vsel %vm575, %v3120, %v3120
      %v3209 = vsel %vm2499, %v2887, 0
      %v3211 = vsel %vm2499, %v2893, 0
      %v3213 = vsel %vm2499, %v2899, 0
      %v3215 = vsel %vm2499, %v2905, 0
      %v3217 = vsel %vm2499, %v2911, 0
      %v3219 = vsel %vm2499, %v2917, 0
      %v3221 = vsel %vm2499, %v2923, 0
      %v3223 = vsel %vm2499, %v2929, 0
      %v3225 = vsel %vm2499, %v2935, 0
      %v3227 = vsel %vm2499, %v2941, 0
      %v3229 = vsel %vm2499, %v2947, 0
      %v3231 = vsel %vm2499, %v2953, 0
      %v3233 = vsel %vm2499, %v2959, 0
      %v3235 = vsel %vm2499, %v2965, 0
      %v3237 = vsel %vm2499, %v2971, 0
      %v3239 = vsel %vm2499, %v2977, 0
      %v3241 = vsel %vm2499, %v2983, 0
      %v3243 = vsel %vm2499, %v2989, 0
      %v3245 = vsel %vm2499, %v2995, 0
      %v3247 = vsel %vm2499, %v3001, 0
      %v3249 = vsel %vm2499, %v3007, 0
      %v3251 = vsel %vm2499, %v3013, 0
      %v3253 = vsel %vm2499, %v3019, 0
      %v3255 = vsel %vm2499, %v3025, 0
      %v3257 = vsel %vm2499, %v3031, 0
      %v3259 = vsel %vm2499, %v3037, 0
      %v3261 = vsel %vm2499, %v3043, 0
      %v3263 = vsel %vm2499, %v3049, 0
      %v3265 = vsel %vm2499, %v3055, 0
      %v3267 = vsel %vm2499, %v3061, 0
      %v3269 = vsel %vm2499, %v3067, 0
      %v3271 = vsel %vm2499, %v3073, 0
      %v3273 = vsel %vm2499, %v3079, 0
      %v3275 = vsel %vm2499, %v3085, 0
      %v3277 = vsel %vm2499, %v3091, 0
      %v3279 = vsel %vm2499, %v3097, 0
      %v3281 = vsel %vm2499, %v3103, 0
      %v3283 = vsel %vm2499, %v3109, 0
      %v3285 = vsel %vm2499, %v3115, 0
      %v3287 = vsel %vm2499, %v3121, 0
      %v3289 = vsel %vm2499, %v3126, 0
      %3291 = vmatprep.subr.mxu0 0.0
      %3292 = vmatpush1.msra.mxu0 %v2767
      %3293 = vmatprep.subr.mxu0 0.0
      %3294 = vmatpush1.msra.mxu0 %v2766
      %3295 = vmatprep.subr.mxu0 0.0
      %3296 = vmatpush1.msra.mxu0 %v2765
      %3297 = vmatprep.subr.mxu0 0.0
      %3298 = vmatpush1.msra.mxu0 %v2764
      %3299 = vmatprep.subr.mxu0 0.0
      %3300 = vmatpush1.msra.mxu0 %v2763
      %3301 = vmatprep.subr.mxu0 0.0
      %3302 = vmatpush1.msra.mxu0 %v2762
      %3303 = vmatprep.subr.mxu0 0.0
      %3304 = vmatpush1.msra.mxu0 %v2761
      %3305 = vmatprep.subr.mxu0 0.0
      %3306 = vmatpush1.msra.mxu0 %v2760
      %3307 = vmatprep.subr.mxu0 0.0
      %3308 = vmatpush1.msra.mxu0 %v2759
      %3309 = vmatprep.subr.mxu0 0.0
      %3310 = vmatpush1.msra.mxu0 %v2758
      %3311 = vmatprep.subr.mxu0 0.0
      %3312 = vmatpush1.msra.mxu0 %v2757
      %3313 = vmatprep.subr.mxu0 0.0
      %3314 = vmatpush1.msra.mxu0 %v2756
      %3315 = vmatprep.subr.mxu0 0.0
      %3316 = vmatpush1.msra.mxu0 %v2755
      %3317 = vmatprep.subr.mxu0 0.0
      %3318 = vmatpush1.msra.mxu0 %v2754
      %3319 = vmatprep.subr.mxu0 0.0
      %3320 = vmatpush1.msra.mxu0 %v2753
      %3321 = vmatprep.subr.mxu0 0.0
      %3322 = vmatpush1.msra.mxu0 %v2752
      %3323 = vmatprep.subr.mxu0 0.0
      %3324 = vmatpush2.msra.mxu0 %v2783
      %3325 = vmatprep.subr.mxu0 0.0
      %3326 = vmatpush2.msra.mxu0 %v2782
      %3327 = vmatprep.subr.mxu0 0.0
      %3328 = vmatpush2.msra.mxu0 %v2781
      %3329 = vmatprep.subr.mxu0 0.0
      %3330 = vmatpush2.msra.mxu0 %v2780
      %3331 = vmatprep.subr.mxu0 0.0
      %3332 = vmatpush2.msra.mxu0 %v2779
      %3333 = vmatprep.subr.mxu0 0.0
      %3334 = vmatpush2.msra.mxu0 %v2778
      %3335 = vmatprep.subr.mxu0 0.0
      %3336 = vmatpush2.msra.mxu0 %v2777
      %3337 = vmatprep.subr.mxu0 0.0
      %3338 = vmatpush2.msra.mxu0 %v2776
      %3339 = vmatprep.subr.mxu0 0.0
      %3340 = vmatpush2.msra.mxu0 %v2775
      %3341 = vmatprep.subr.mxu0 0.0
      %3342 = vmatpush2.msra.mxu0 %v2774
      %3343 = vmatprep.subr.mxu0 0.0
      %3344 = vmatpush2.msra.mxu0 %v2773
      %3345 = vmatprep.subr.mxu0 0.0
      %3346 = vmatpush2.msra.mxu0 %v2772
      %3347 = vmatprep.subr.mxu0 0.0
      %3348 = vmatpush2.msra.mxu0 %v2771
      %3349 = vmatprep.subr.mxu0 0.0
      %3350 = vmatpush2.msra.mxu0 %v2770
      %3351 = vmatprep.subr.mxu0 0.0
      %3352 = vmatpush2.msra.mxu0 %v2769
      %3353 = vmatprep.subr.mxu0 0.0
      %3354 = vmatpush2.msra.mxu0 %v2768
      %3355 = vmatprep.mubr.f32.mxu0 %v2884
      %3356 = vmatmul.mubr.f32.gmra.mxu0 %v2881
      %v3357 = vpop.f32.mrf.mxu0
      %v3358 = vadd.f32 %v2793, %v3357
      %v3359 = vpop.f32.mrf.mxu0
      %3360 = vmatprep.mubr.f32.mxu0 %v2891
      %3361 = vmatmul.mubr.f32.gmra.mxu0 %v2889
      %v3362 = vpop.f32.mrf.mxu0
      %v3363 = vadd.f32 %v2793, %v3362
      %v3364 = vpop.f32.mrf.mxu0
      %3365 = vmatprep.mubr.f32.mxu0 %v2897
      %3366 = vmatmul.mubr.f32.gmra.mxu0 %v2895
      %v3367 = vpop.f32.mrf.mxu0
      %v3368 = vadd.f32 %v2793, %v3367
      %v3369 = vpop.f32.mrf.mxu0
      %3370 = vmatprep.mubr.f32.mxu0 %v2903
      %3371 = vmatmul.mubr.f32.gmra.mxu0 %v2901
      %v3372 = vpop.f32.mrf.mxu0
      %v3373 = vadd.f32 %v2793, %v3372
      %v3374 = vpop.f32.mrf.mxu0
      %3375 = vmatprep.mubr.f32.mxu0 %v2909
      %3376 = vmatmul.mubr.f32.gmra.mxu0 %v2907
      %v3377 = vpop.f32.mrf.mxu0
      %v3378 = vadd.f32 %v2793, %v3377
      %v3379 = vpop.f32.mrf.mxu0
      %3380 = vmatprep.mubr.f32.mxu0 %v2915
      %3381 = vmatmul.mubr.f32.gmra.mxu0 %v2913
      %v3382 = vpop.f32.mrf.mxu0
      %v3383 = vadd.f32 %v2793, %v3382
      %v3384 = vpop.f32.mrf.mxu0
      %3385 = vmatprep.mubr.f32.mxu0 %v2921
      %3386 = vmatmul.mubr.f32.gmra.mxu0 %v2919
      %v3387 = vpop.f32.mrf.mxu0
      %v3388 = vadd.f32 %v2793, %v3387
      %v3389 = vpop.f32.mrf.mxu0
      %3390 = vmatprep.mubr.f32.mxu0 %v2927
      %3391 = vmatmul.mubr.f32.gmra.mxu0 %v2925
      %v3392 = vpop.f32.mrf.mxu0
      %v3393 = vadd.f32 %v2793, %v3392
      %v3394 = vpop.f32.mrf.mxu0
      %3395 = vmatprep.mubr.f32.mxu0 %v2933
      %3396 = vmatmul.mubr.f32.gmra.mxu0 %v2931
      %v3397 = vpop.f32.mrf.mxu0
      %v3398 = vadd.f32 %v2793, %v3397
      %v3399 = vpop.f32.mrf.mxu0
      %3400 = vmatprep.mubr.f32.mxu0 %v2939
      %3401 = vmatmul.mubr.f32.gmra.mxu0 %v2937
      %v3402 = vpop.f32.mrf.mxu0
      %v3403 = vadd.f32 %v2793, %v3402
      %v3404 = vpop.f32.mrf.mxu0
      %3405 = vmatprep.mubr.f32.mxu0 %v2945
      %3406 = vmatmul.mubr.f32.gmra.mxu0 %v2943
      %v3407 = vpop.f32.mrf.mxu0
      %v3408 = vadd.f32 %v2793, %v3407
      %v3409 = vpop.f32.mrf.mxu0
      %3410 = vmatprep.mubr.f32.mxu0 %v2951
      %3411 = vmatmul.mubr.f32.gmra.mxu0 %v2949
      %v3412 = vpop.f32.mrf.mxu0
      %v3413 = vadd.f32 %v2793, %v3412
      %v3414 = vpop.f32.mrf.mxu0
      %3415 = vmatprep.mubr.f32.mxu0 %v2957
      %3416 = vmatmul.mubr.f32.gmra.mxu0 %v2955
      %v3417 = vpop.f32.mrf.mxu0
      %v3418 = vadd.f32 %v2793, %v3417
      %v3419 = vpop.f32.mrf.mxu0
      %3420 = vmatprep.mubr.f32.mxu0 %v2963
      %3421 = vmatmul.mubr.f32.gmra.mxu0 %v2961
      %v3422 = vpop.f32.mrf.mxu0
      %v3423 = vadd.f32 %v2793, %v3422
      %v3424 = vpop.f32.mrf.mxu0
      %3425 = vmatprep.mubr.f32.mxu0 %v2969
      %3426 = vmatmul.mubr.f32.gmra.mxu0 %v2967
      %v3427 = vpop.f32.mrf.mxu0
      %v3428 = vadd.f32 %v2793, %v3427
      %v3429 = vpop.f32.mrf.mxu0
      %3430 = vmatprep.mubr.f32.mxu0 %v2975
      %3431 = vmatmul.mubr.f32.gmra.mxu0 %v2973
      %v3432 = vpop.f32.mrf.mxu0
      %v3433 = vadd.f32 %v2793, %v3432
      %v3434 = vpop.f32.mrf.mxu0
      %3435 = vmatprep.mubr.f32.mxu0 %v2981
      %3436 = vmatmul.mubr.f32.gmra.mxu0 %v2979
      %v3437 = vpop.f32.mrf.mxu0
      %v3438 = vadd.f32 %v2793, %v3437
      %v3439 = vpop.f32.mrf.mxu0
      %3440 = vmatprep.mubr.f32.mxu0 %v2987
      %3441 = vmatmul.mubr.f32.gmra.mxu0 %v2985
      %v3442 = vpop.f32.mrf.mxu0
      %v3443 = vadd.f32 %v2793, %v3442
      %v3444 = vpop.f32.mrf.mxu0
      %3445 = vmatprep.mubr.f32.mxu0 %v2993
      %3446 = vmatmul.mubr.f32.gmra.mxu0 %v2991
      %v3447 = vpop.f32.mrf.mxu0
      %v3448 = vadd.f32 %v2793, %v3447
      %v3449 = vpop.f32.mrf.mxu0
      %3450 = vmatprep.mubr.f32.mxu0 %v2999
      %3451 = vmatmul.mubr.f32.gmra.mxu0 %v2997
      %v3452 = vpop.f32.mrf.mxu0
      %v3453 = vadd.f32 %v2793, %v3452
      %v3454 = vpop.f32.mrf.mxu0
      %3455 = vmatprep.mubr.f32.mxu0 %v3005
      %3456 = vmatmul.mubr.f32.gmra.mxu0 %v3003
      %v3457 = vpop.f32.mrf.mxu0
      %v3458 = vadd.f32 %v2793, %v3457
      %v3459 = vpop.f32.mrf.mxu0
      %3460 = vmatprep.mubr.f32.mxu0 %v3011
      %3461 = vmatmul.mubr.f32.gmra.mxu0 %v3009
      %v3462 = vpop.f32.mrf.mxu0
      %v3463 = vadd.f32 %v2793, %v3462
      %v3464 = vpop.f32.mrf.mxu0
      %3465 = vmatprep.mubr.f32.mxu0 %v3017
      %3466 = vmatmul.mubr.f32.gmra.mxu0 %v3015
      %v3467 = vpop.f32.mrf.mxu0
      %v3468 = vadd.f32 %v2793, %v3467
      %v3469 = vpop.f32.mrf.mxu0
      %3470 = vmatprep.mubr.f32.mxu0 %v3023
      %3471 = vmatmul.mubr.f32.gmra.mxu0 %v3021
      %v3472 = vpop.f32.mrf.mxu0
      %v3473 = vadd.f32 %v2793, %v3472
      %v3474 = vpop.f32.mrf.mxu0
      %3475 = vmatprep.mubr.f32.mxu0 %v3029
      %3476 = vmatmul.mubr.f32.gmra.mxu0 %v3027
      %v3477 = vpop.f32.mrf.mxu0
      %v3478 = vadd.f32 %v2793, %v3477
      %v3479 = vpop.f32.mrf.mxu0
      %3480 = vmatprep.mubr.f32.mxu0 %v3035
      %3481 = vmatmul.mubr.f32.gmra.mxu0 %v3033
      %v3482 = vpop.f32.mrf.mxu0
      %v3483 = vadd.f32 %v2793, %v3482
      %v3484 = vpop.f32.mrf.mxu0
      %3485 = vmatprep.mubr.f32.mxu0 %v3041
      %3486 = vmatmul.mubr.f32.gmra.mxu0 %v3039
      %v3487 = vpop.f32.mrf.mxu0
      %v3488 = vadd.f32 %v2793, %v3487
      %v3489 = vpop.f32.mrf.mxu0
      %3490 = vmatprep.mubr.f32.mxu0 %v3047
      %3491 = vmatmul.mubr.f32.gmra.mxu0 %v3045
      %v3492 = vpop.f32.mrf.mxu0
      %v3493 = vadd.f32 %v2793, %v3492
      %v3494 = vpop.f32.mrf.mxu0
      %3495 = vmatprep.mubr.f32.mxu0 %v3053
      %3496 = vmatmul.mubr.f32.gmra.mxu0 %v3051
      %v3497 = vpop.f32.mrf.mxu0
      %v3498 = vadd.f32 %v2793, %v3497
      %v3499 = vpop.f32.mrf.mxu0
      %3500 = vmatprep.mubr.f32.mxu0 %v3059
      %3501 = vmatmul.mubr.f32.gmra.mxu0 %v3057
      %v3502 = vpop.f32.mrf.mxu0
      %v3503 = vadd.f32 %v2793, %v3502
      %v3504 = vpop.f32.mrf.mxu0
      %3505 = vmatprep.mubr.f32.mxu0 %v3065
      %3506 = vmatmul.mubr.f32.gmra.mxu0 %v3063
      %v3507 = vpop.f32.mrf.mxu0
      %v3508 = vadd.f32 %v2793, %v3507
      %v3509 = vpop.f32.mrf.mxu0
      %3510 = vmatprep.mubr.f32.mxu0 %v3071
      %3511 = vmatmul.mubr.f32.gmra.mxu0 %v3069
      %v3512 = vpop.f32.mrf.mxu0
      %v3513 = vadd.f32 %v2793, %v3512
      %v3514 = vpop.f32.mrf.mxu0
      %3515 = vmatprep.mubr.f32.mxu0 %v3077
      %3516 = vmatmul.mubr.f32.gmra.mxu0 %v3075
      %v3517 = vpop.f32.mrf.mxu0
      %v3518 = vadd.f32 %v2793, %v3517
      %v3519 = vpop.f32.mrf.mxu0
      %3520 = vmatprep.mubr.f32.mxu0 %v3083
      %3521 = vmatmul.mubr.f32.gmra.mxu0 %v3081
      %v3522 = vpop.f32.mrf.mxu0
      %v3523 = vadd.f32 %v2793, %v3522
      %v3524 = vpop.f32.mrf.mxu0
      %3525 = vmatprep.mubr.f32.mxu0 %v3089
      %3526 = vmatmul.mubr.f32.gmra.mxu0 %v3087
      %v3527 = vpop.f32.mrf.mxu0
      %v3528 = vadd.f32 %v2793, %v3527
      %v3529 = vpop.f32.mrf.mxu0
      %3530 = vmatprep.mubr.f32.mxu0 %v3095
      %3531 = vmatmul.mubr.f32.gmra.mxu0 %v3093
      %v3532 = vpop.f32.mrf.mxu0
      %v3533 = vadd.f32 %v2793, %v3532
      %v3534 = vpop.f32.mrf.mxu0
      %3535 = vmatprep.mubr.f32.mxu0 %v3101
      %3536 = vmatmul.mubr.f32.gmra.mxu0 %v3099
      %v3537 = vpop.f32.mrf.mxu0
      %v3538 = vadd.f32 %v2793, %v3537
      %v3539 = vpop.f32.mrf.mxu0
      %3540 = vmatprep.mubr.f32.mxu0 %v3107
      %3541 = vmatmul.mubr.f32.gmra.mxu0 %v3105
      %v3542 = vpop.f32.mrf.mxu0
      %v3543 = vadd.f32 %v2793, %v3542
      %v3544 = vpop.f32.mrf.mxu0
      %3545 = vmatprep.mubr.f32.mxu0 %v3113
      %3546 = vmatmul.mubr.f32.gmra.mxu0 %v3111
      %v3547 = vpop.f32.mrf.mxu0
      %v3548 = vadd.f32 %v2793, %v3547
      %v3549 = vpop.f32.mrf.mxu0
      %3550 = vmatprep.mubr.f32.mxu0 %v3119
      %3551 = vmatmul.mubr.f32.gmra.mxu0 %v3117
      %v3552 = vpop.f32.mrf.mxu0
      %v3553 = vadd.f32 %v2793, %v3552
      %v3554 = vpop.f32.mrf.mxu0
      %3555 = vmatprep.mubr.f32.mxu0 %v3125
      %3556 = vmatmul.mubr.f32.gmra.mxu0 %v3123
      %v3557 = vpop.f32.mrf.mxu0
      %v3558 = vadd.f32 %v2793, %v3557
      %v3559 = vpop.f32.mrf.mxu0
      %3560 = vdwg.mxu0
      %3561 = vmatprep.subr.mxu0 0.0
      %3562 = vmatpush1.msra.mxu0 0.0
      %3563 = vmatprep.subr.mxu0 0.0
      %3564 = vmatpush1.msra.mxu0 0.0
      %3565 = vmatprep.subr.mxu0 0.0
      %3566 = vmatpush1.msra.mxu0 0.0
      %3567 = vmatprep.subr.mxu0 0.0
      %3568 = vmatpush1.msra.mxu0 0.0
      %3569 = vmatprep.subr.mxu0 0.0
      %3570 = vmatpush1.msra.mxu0 0.0
      %3571 = vmatprep.subr.mxu0 0.0
      %3572 = vmatpush1.msra.mxu0 0.0
      %3573 = vmatprep.subr.mxu0 0.0
      %3574 = vmatpush1.msra.mxu0 0.0
      %3575 = vmatprep.subr.mxu0 0.0
      %3576 = vmatpush1.msra.mxu0 0.0
      %3577 = vmatprep.subr.mxu0 0.0
      %3578 = vmatpush1.msra.mxu0 0.0
      %3579 = vmatprep.subr.mxu0 0.0
      %3580 = vmatpush1.msra.mxu0 0.0
      %3581 = vmatprep.subr.mxu0 0.0
      %3582 = vmatpush1.msra.mxu0 0.0
      %3583 = vmatprep.subr.mxu0 0.0
      %3584 = vmatpush1.msra.mxu0 0.0
      %3585 = vmatprep.subr.mxu0 0.0
      %3586 = vmatpush1.msra.mxu0 %v2787
      %3587 = vmatprep.subr.mxu0 0.0
      %3588 = vmatpush1.msra.mxu0 %v2786
      %3589 = vmatprep.subr.mxu0 0.0
      %3590 = vmatpush1.msra.mxu0 %v2785
      %3591 = vmatprep.subr.mxu0 0.0
      %3592 = vmatpush1.msra.mxu0 %v2784
      %3593 = vmatprep.subr.mxu0 0.0
      %3594 = vmatpush2.msra.mxu0 0.0
      %3595 = vmatprep.subr.mxu0 0.0
      %3596 = vmatpush2.msra.mxu0 0.0
      %3597 = vmatprep.subr.mxu0 0.0
      %3598 = vmatpush2.msra.mxu0 0.0
      %3599 = vmatprep.subr.mxu0 0.0
      %3600 = vmatpush2.msra.mxu0 0.0
      %3601 = vmatprep.subr.mxu0 0.0
      %3602 = vmatpush2.msra.mxu0 0.0
      %3603 = vmatprep.subr.mxu0 0.0
      %3604 = vmatpush2.msra.mxu0 0.0
      %3605 = vmatprep.subr.mxu0 0.0
      %3606 = vmatpush2.msra.mxu0 0.0
      %3607 = vmatprep.subr.mxu0 0.0
      %3608 = vmatpush2.msra.mxu0 0.0
      %3609 = vmatprep.subr.mxu0 0.0
      %3610 = vmatpush2.msra.mxu0 0.0
      %3611 = vmatprep.subr.mxu0 0.0
      %3612 = vmatpush2.msra.mxu0 0.0
      %3613 = vmatprep.subr.mxu0 0.0
      %3614 = vmatpush2.msra.mxu0 0.0
      %3615 = vmatprep.subr.mxu0 0.0
      %3616 = vmatpush2.msra.mxu0 0.0
      %3617 = vmatprep.subr.mxu0 0.0
      %3618 = vmatpush2.msra.mxu0 0.0
      %3619 = vmatprep.subr.mxu0 0.0
      %3620 = vmatpush2.msra.mxu0 0.0
      %3621 = vmatprep.subr.mxu0 0.0
      %3622 = vmatpush2.msra.mxu0 0.0
      %3623 = vmatprep.subr.mxu0 0.0
      %3624 = vmatpush2.msra.mxu0 0.0
      %3625 = vmatprep.mubr.f32.mxu0 0.0
      %3626 = vmatmul.mubr.f32.gmra.mxu0 %v3209
      %v3627 = vpop.f32.mrf.mxu0
      %v3628 = vadd.f32 %v3358, %v3627
      %v3629 = vpop.f32.mrf.mxu0
      %3630 = vmatprep.mubr.f32.mxu0 0.0
      %3631 = vmatmul.mubr.f32.gmra.mxu0 %v3211
      %v3632 = vpop.f32.mrf.mxu0
      %v3633 = vadd.f32 %v3363, %v3632
      %v3634 = vpop.f32.mrf.mxu0
      %3635 = vmatprep.mubr.f32.mxu0 0.0
      %3636 = vmatmul.mubr.f32.gmra.mxu0 %v3213
      %v3637 = vpop.f32.mrf.mxu0
      %v3638 = vadd.f32 %v3368, %v3637
      %v3639 = vpop.f32.mrf.mxu0
      %3640 = vmatprep.mubr.f32.mxu0 0.0
      %3641 = vmatmul.mubr.f32.gmra.mxu0 %v3215
      %v3642 = vpop.f32.mrf.mxu0
      %v3643 = vadd.f32 %v3373, %v3642
      %v3644 = vpop.f32.mrf.mxu0
      %3645 = vmatprep.mubr.f32.mxu0 0.0
      %3646 = vmatmul.mubr.f32.gmra.mxu0 %v3217
      %v3647 = vpop.f32.mrf.mxu0
      %v3648 = vadd.f32 %v3378, %v3647
      %v3649 = vpop.f32.mrf.mxu0
      %3650 = vmatprep.mubr.f32.mxu0 0.0
      %3651 = vmatmul.mubr.f32.gmra.mxu0 %v3219
      %v3652 = vpop.f32.mrf.mxu0
      %v3653 = vadd.f32 %v3383, %v3652
      %v3654 = vpop.f32.mrf.mxu0
      %3655 = vmatprep.mubr.f32.mxu0 0.0
      %3656 = vmatmul.mubr.f32.gmra.mxu0 %v3221
      %v3657 = vpop.f32.mrf.mxu0
      %v3658 = vadd.f32 %v3388, %v3657
      %v3659 = vpop.f32.mrf.mxu0
      %3660 = vmatprep.mubr.f32.mxu0 0.0
      %3661 = vmatmul.mubr.f32.gmra.mxu0 %v3223
      %v3662 = vpop.f32.mrf.mxu0
      %v3663 = vadd.f32 %v3393, %v3662
      %v3664 = vpop.f32.mrf.mxu0
      %3665 = vmatprep.mubr.f32.mxu0 0.0
      %3666 = vmatmul.mubr.f32.gmra.mxu0 %v3225
      %v3667 = vpop.f32.mrf.mxu0
      %v3668 = vadd.f32 %v3398, %v3667
      %v3669 = vpop.f32.mrf.mxu0
      %3670 = vmatprep.mubr.f32.mxu0 0.0
      %3671 = vmatmul.mubr.f32.gmra.mxu0 %v3227
      %v3672 = vpop.f32.mrf.mxu0
      %v3673 = vadd.f32 %v3403, %v3672
      %v3674 = vpop.f32.mrf.mxu0
      %3675 = vmatprep.mubr.f32.mxu0 0.0
      %3676 = vmatmul.mubr.f32.gmra.mxu0 %v3229
      %v3677 = vpop.f32.mrf.mxu0
      %v3678 = vadd.f32 %v3408, %v3677
      %v3679 = vpop.f32.mrf.mxu0
      %3680 = vmatprep.mubr.f32.mxu0 0.0
      %3681 = vmatmul.mubr.f32.gmra.mxu0 %v3231
      %v3682 = vpop.f32.mrf.mxu0
      %v3683 = vadd.f32 %v3413, %v3682
      %v3684 = vpop.f32.mrf.mxu0
      %3685 = vmatprep.mubr.f32.mxu0 0.0
      %3686 = vmatmul.mubr.f32.gmra.mxu0 %v3233
      %v3687 = vpop.f32.mrf.mxu0
      %v3688 = vadd.f32 %v3418, %v3687
      %v3689 = vpop.f32.mrf.mxu0
      %3690 = vmatprep.mubr.f32.mxu0 0.0
      %3691 = vmatmul.mubr.f32.gmra.mxu0 %v3235
      %v3692 = vpop.f32.mrf.mxu0
      %v3693 = vadd.f32 %v3423, %v3692
      %v3694 = vpop.f32.mrf.mxu0
      %3695 = vmatprep.mubr.f32.mxu0 0.0
      %3696 = vmatmul.mubr.f32.gmra.mxu0 %v3237
      %v3697 = vpop.f32.mrf.mxu0
      %v3698 = vadd.f32 %v3428, %v3697
      %v3699 = vpop.f32.mrf.mxu0
      %3700 = vmatprep.mubr.f32.mxu0 0.0
      %3701 = vmatmul.mubr.f32.gmra.mxu0 %v3239
      %v3702 = vpop.f32.mrf.mxu0
      %v3703 = vadd.f32 %v3433, %v3702
      %v3704 = vpop.f32.mrf.mxu0
      %3705 = vmatprep.mubr.f32.mxu0 0.0
      %3706 = vmatmul.mubr.f32.gmra.mxu0 %v3241
      %v3707 = vpop.f32.mrf.mxu0
      %v3708 = vadd.f32 %v3438, %v3707
      %v3709 = vpop.f32.mrf.mxu0
      %3710 = vmatprep.mubr.f32.mxu0 0.0
      %3711 = vmatmul.mubr.f32.gmra.mxu0 %v3243
      %v3712 = vpop.f32.mrf.mxu0
      %v3713 = vadd.f32 %v3443, %v3712
      %v3714 = vpop.f32.mrf.mxu0
      %3715 = vmatprep.mubr.f32.mxu0 0.0
      %3716 = vmatmul.mubr.f32.gmra.mxu0 %v3245
      %v3717 = vpop.f32.mrf.mxu0
      %v3718 = vadd.f32 %v3448, %v3717
      %v3719 = vpop.f32.mrf.mxu0
      %3720 = vmatprep.mubr.f32.mxu0 0.0
      %3721 = vmatmul.mubr.f32.gmra.mxu0 %v3247
      %v3722 = vpop.f32.mrf.mxu0
      %v3723 = vadd.f32 %v3453, %v3722
      %v3724 = vpop.f32.mrf.mxu0
      %3725 = vmatprep.mubr.f32.mxu0 0.0
      %3726 = vmatmul.mubr.f32.gmra.mxu0 %v3249
      %v3727 = vpop.f32.mrf.mxu0
      %v3728 = vadd.f32 %v3458, %v3727
      %v3729 = vpop.f32.mrf.mxu0
      %3730 = vmatprep.mubr.f32.mxu0 0.0
      %3731 = vmatmul.mubr.f32.gmra.mxu0 %v3251
      %v3732 = vpop.f32.mrf.mxu0
      %v3733 = vadd.f32 %v3463, %v3732
      %v3734 = vpop.f32.mrf.mxu0
      %3735 = vmatprep.mubr.f32.mxu0 0.0
      %3736 = vmatmul.mubr.f32.gmra.mxu0 %v3253
      %v3737 = vpop.f32.mrf.mxu0
      %v3738 = vadd.f32 %v3468, %v3737
      %v3739 = vpop.f32.mrf.mxu0
      %3740 = vmatprep.mubr.f32.mxu0 0.0
      %3741 = vmatmul.mubr.f32.gmra.mxu0 %v3255
      %v3742 = vpop.f32.mrf.mxu0
      %v3743 = vadd.f32 %v3473, %v3742
      %v3744 = vpop.f32.mrf.mxu0
      %3745 = vmatprep.mubr.f32.mxu0 0.0
      %3746 = vmatmul.mubr.f32.gmra.mxu0 %v3257
      %v3747 = vpop.f32.mrf.mxu0
      %v3748 = vadd.f32 %v3478, %v3747
      %v3749 = vpop.f32.mrf.mxu0
      %3750 = vmatprep.mubr.f32.mxu0 0.0
      %3751 = vmatmul.mubr.f32.gmra.mxu0 %v3259
      %v3752 = vpop.f32.mrf.mxu0
      %v3753 = vadd.f32 %v3483, %v3752
      %v3754 = vpop.f32.mrf.mxu0
      %3755 = vmatprep.mubr.f32.mxu0 0.0
      %3756 = vmatmul.mubr.f32.gmra.mxu0 %v3261
      %v3757 = vpop.f32.mrf.mxu0
      %v3758 = vadd.f32 %v3488, %v3757
      %v3759 = vpop.f32.mrf.mxu0
      %3760 = vmatprep.mubr.f32.mxu0 0.0
      %3761 = vmatmul.mubr.f32.gmra.mxu0 %v3263
      %v3762 = vpop.f32.mrf.mxu0
      %v3763 = vadd.f32 %v3493, %v3762
      %v3764 = vpop.f32.mrf.mxu0
      %3765 = vmatprep.mubr.f32.mxu0 0.0
      %3766 = vmatmul.mubr.f32.gmra.mxu0 %v3265
      %v3767 = vpop.f32.mrf.mxu0
      %v3768 = vadd.f32 %v3498, %v3767
      %v3769 = vpop.f32.mrf.mxu0
      %3770 = vmatprep.mubr.f32.mxu0 0.0
      %3771 = vmatmul.mubr.f32.gmra.mxu0 %v3267
      %v3772 = vpop.f32.mrf.mxu0
      %v3773 = vadd.f32 %v3503, %v3772
      %v3774 = vpop.f32.mrf.mxu0
      %3775 = vmatprep.mubr.f32.mxu0 0.0
      %3776 = vmatmul.mubr.f32.gmra.mxu0 %v3269
      %v3777 = vpop.f32.mrf.mxu0
      %v3778 = vadd.f32 %v3508, %v3777
      %v3779 = vpop.f32.mrf.mxu0
      %3780 = vmatprep.mubr.f32.mxu0 0.0
      %3781 = vmatmul.mubr.f32.gmra.mxu0 %v3271
      %v3782 = vpop.f32.mrf.mxu0
      %v3783 = vadd.f32 %v3513, %v3782
      %v3784 = vpop.f32.mrf.mxu0
      %3785 = vmatprep.mubr.f32.mxu0 0.0
      %3786 = vmatmul.mubr.f32.gmra.mxu0 %v3273
      %v3787 = vpop.f32.mrf.mxu0
      %v3788 = vadd.f32 %v3518, %v3787
      %v3789 = vpop.f32.mrf.mxu0
      %3790 = vmatprep.mubr.f32.mxu0 0.0
      %3791 = vmatmul.mubr.f32.gmra.mxu0 %v3275
      %v3792 = vpop.f32.mrf.mxu0
      %v3793 = vadd.f32 %v3523, %v3792
      %v3794 = vpop.f32.mrf.mxu0
      %3795 = vmatprep.mubr.f32.mxu0 0.0
      %3796 = vmatmul.mubr.f32.gmra.mxu0 %v3277
      %v3797 = vpop.f32.mrf.mxu0
      %v3798 = vadd.f32 %v3528, %v3797
      %v3799 = vpop.f32.mrf.mxu0
      %3800 = vmatprep.mubr.f32.mxu0 0.0
      %3801 = vmatmul.mubr.f32.gmra.mxu0 %v3279
      %v3802 = vpop.f32.mrf.mxu0
      %v3803 = vadd.f32 %v3533, %v3802
      %v3804 = vpop.f32.mrf.mxu0
      %3805 = vmatprep.mubr.f32.mxu0 0.0
      %3806 = vmatmul.mubr.f32.gmra.mxu0 %v3281
      %v3807 = vpop.f32.mrf.mxu0
      %v3808 = vadd.f32 %v3538, %v3807
      %v3809 = vpop.f32.mrf.mxu0
      %3810 = vmatprep.mubr.f32.mxu0 0.0
      %3811 = vmatmul.mubr.f32.gmra.mxu0 %v3283
      %v3812 = vpop.f32.mrf.mxu0
      %v3813 = vadd.f32 %v3543, %v3812
      %v3814 = vpop.f32.mrf.mxu0
      %3815 = vmatprep.mubr.f32.mxu0 0.0
      %3816 = vmatmul.mubr.f32.gmra.mxu0 %v3285
      %v3817 = vpop.f32.mrf.mxu0
      %v3818 = vadd.f32 %v3548, %v3817
      %v3819 = vpop.f32.mrf.mxu0
      %3820 = vmatprep.mubr.f32.mxu0 0.0
      %3821 = vmatmul.mubr.f32.gmra.mxu0 %v3287
      %v3822 = vpop.f32.mrf.mxu0
      %v3823 = vadd.f32 %v3553, %v3822
      %v3824 = vpop.f32.mrf.mxu0
      %3825 = vmatprep.mubr.f32.mxu0 0.0
      %3826 = vmatmul.mubr.f32.gmra.mxu0 %v3289
      %v3827 = vpop.f32.mrf.mxu0
      %v3828 = vadd.f32 %v3558, %v3827
      %v3829 = vpop.f32.mrf.mxu0
      %3830 = vdwg.mxu0
      %v3831 = vmul.f32 %v3628, 0.01
      %v3832 = vmul.f32 %v3633, 0.01
      %v3833 = vmul.f32 %v3638, 0.01
      %v3834 = vmul.f32 %v3643, 0.01
      %v3835 = vmul.f32 %v3648, 0.01
      %v3836 = vmul.f32 %v3653, 0.01
      %v3837 = vmul.f32 %v3658, 0.01
      %v3838 = vmul.f32 %v3663, 0.01
      %v3839 = vmul.f32 %v3668, 0.01
      %v3840 = vmul.f32 %v3673, 0.01
      %v3841 = vmul.f32 %v3678, 0.01
      %v3842 = vmul.f32 %v3683, 0.01
      %v3843 = vmul.f32 %v3688, 0.01
      %v3844 = vmul.f32 %v3693, 0.01
      %v3845 = vmul.f32 %v3698, 0.01
      %v3846 = vmul.f32 %v3703, 0.01
      %v3847 = vmul.f32 %v3708, 0.01
      %v3848 = vmul.f32 %v3713, 0.01
      %v3849 = vmul.f32 %v3718, 0.01
      %v3850 = vmul.f32 %v3723, 0.01
      %v3851 = vmul.f32 %v3728, 0.01
      %v3852 = vmul.f32 %v3733, 0.01
      %v3853 = vmul.f32 %v3738, 0.01
      %v3854 = vmul.f32 %v3743, 0.01
      %v3855 = vmul.f32 %v3748, 0.01
      %v3856 = vmul.f32 %v3753, 0.01
      %v3857 = vmul.f32 %v3758, 0.01
      %v3858 = vmul.f32 %v3763, 0.01
      %v3859 = vmul.f32 %v3768, 0.01
      %v3860 = vmul.f32 %v3773, 0.01
      %v3861 = vmul.f32 %v3778, 0.01
      %v3862 = vmul.f32 %v3783, 0.01
      %v3863 = vmul.f32 %v3788, 0.01
      %v3864 = vmul.f32 %v3793, 0.01
      %v3865 = vmul.f32 %v3798, 0.01
      %v3866 = vmul.f32 %v3803, 0.01
      %v3867 = vmul.f32 %v3808, 0.01
      %v3868 = vmul.f32 %v3813, 0.01
      %v3869 = vmul.f32 %v3818, 0.01
      %v3870 = vmul.f32 %v3823, 0.01
      %v3871 = vmul.f32 %v3828, 0.01
      %v3872 = vmax.f32 %v3628, %v3831
      %v3873 = vmax.f32 %v3633, %v3832
      %v3874 = vmax.f32 %v3638, %v3833
      %v3875 = vmax.f32 %v3643, %v3834
      %v3876 = vmax.f32 %v3648, %v3835
      %v3877 = vmax.f32 %v3653, %v3836
      %v3878 = vmax.f32 %v3658, %v3837
      %v3879 = vmax.f32 %v3663, %v3838
      %v3880 = vmax.f32 %v3668, %v3839
      %v3881 = vmax.f32 %v3673, %v3840
      %v3882 = vmax.f32 %v3678, %v3841
      %v3883 = vmax.f32 %v3683, %v3842
      %v3884 = vmax.f32 %v3688, %v3843
      %v3885 = vmax.f32 %v3693, %v3844
      %v3886 = vmax.f32 %v3698, %v3845
      %v3887 = vmax.f32 %v3703, %v3846
      %v3888 = vmax.f32 %v3708, %v3847
      %v3889 = vmax.f32 %v3713, %v3848
      %v3890 = vmax.f32 %v3718, %v3849
      %v3891 = vmax.f32 %v3723, %v3850
      %v3892 = vmax.f32 %v3728, %v3851
      %v3893 = vmax.f32 %v3733, %v3852
      %v3894 = vmax.f32 %v3738, %v3853
      %v3895 = vmax.f32 %v3743, %v3854
      %v3896 = vmax.f32 %v3748, %v3855
      %v3897 = vmax.f32 %v3753, %v3856
      %v3898 = vmax.f32 %v3758, %v3857
      %v3899 = vmax.f32 %v3763, %v3858
      %v3900 = vmax.f32 %v3768, %v3859
      %v3901 = vmax.f32 %v3773, %v3860
      %v3902 = vmax.f32 %v3778, %v3861
      %v3903 = vmax.f32 %v3783, %v3862
      %v3904 = vmax.f32 %v3788, %v3863
      %v3905 = vmax.f32 %v3793, %v3864
      %v3906 = vmax.f32 %v3798, %v3865
      %v3907 = vmax.f32 %v3803, %v3866
      %v3908 = vmax.f32 %v3808, %v3867
      %v3909 = vmax.f32 %v3813, %v3868
      %v3910 = vmax.f32 %v3818, %v3869
      %v3911 = vmax.f32 %v3823, %v3870
      %v3912 = vmax.f32 %v3828, %v3871
      %v3913 = vmul.f32 %v3872, %v934
      %v3914 = vmul.f32 %v3873, %v939
      %v3915 = vmul.f32 %v3874, %v944
      %v3916 = vmul.f32 %v3875, %v949
      %v3917 = vmul.f32 %v3876, %v954
      %v3918 = vmul.f32 %v3877, %v959
      %v3919 = vmul.f32 %v3878, %v964
      %v3920 = vmul.f32 %v3879, %v969
      %v3921 = vmul.f32 %v3880, %v974
      %v3922 = vmul.f32 %v3881, %v979
      %v3923 = vmul.f32 %v3882, %v984
      %v3924 = vmul.f32 %v3883, %v989
      %v3925 = vmul.f32 %v3884, %v994
      %v3926 = vmul.f32 %v3885, %v999
      %v3927 = vmul.f32 %v3886, %v1004
      %v3928 = vmul.f32 %v3887, %v1009
      %v3929 = vmul.f32 %v3888, %v1014
      %v3930 = vmul.f32 %v3889, %v1019
      %v3931 = vmul.f32 %v3890, %v1024
      %v3932 = vmul.f32 %v3891, %v1029
      %v3933 = vmul.f32 %v3892, %v1034
      %v3934 = vmul.f32 %v3893, %v1039
      %v3935 = vmul.f32 %v3894, %v1044
      %v3936 = vmul.f32 %v3895, %v1049
      %v3937 = vmul.f32 %v3896, %v1054
      %v3938 = vmul.f32 %v3897, %v1059
      %v3939 = vmul.f32 %v3898, %v1064
      %v3940 = vmul.f32 %v3899, %v1069
      %v3941 = vmul.f32 %v3900, %v1074
      %v3942 = vmul.f32 %v3901, %v1079
      %v3943 = vmul.f32 %v3902, %v1084
      %v3944 = vmul.f32 %v3903, %v1089
      %v3945 = vmul.f32 %v3904, %v1094
      %v3946 = vmul.f32 %v3905, %v1099
      %v3947 = vmul.f32 %v3906, %v1104
      %v3948 = vmul.f32 %v3907, %v1109
      %v3949 = vmul.f32 %v3908, %v1114
      %v3950 = vmul.f32 %v3909, %v1119
      %v3951 = vmul.f32 %v3910, %v1124
      %v3952 = vmul.f32 %v3911, %v1129
      %v3953 = vmul.f32 %v3912, %v1134
      %v3993 = vrot.slane %v3913, 1
      %v3994 = vsel %vm1217, %v1218, %v3993
      %v3995 = vrot.slane %v3914, 1
      %v3996 = vsel %vm1217, %v3993, %v3995
      %v3997 = vrot.slane %v3915, 1
      %v3998 = vsel %vm1217, %v3995, %v3997
      %v3999 = vrot.slane %v3916, 1
      %v4000 = vsel %vm1217, %v3997, %v3999
      %v4001 = vrot.slane %v3917, 1
      %v4002 = vsel %vm1217, %v3999, %v4001
      %v4003 = vrot.slane %v3918, 1
      %v4004 = vsel %vm1217, %v4001, %v4003
      %v4005 = vrot.slane %v3919, 1
      %v4006 = vsel %vm1217, %v4003, %v4005
      %v4007 = vrot.slane %v3920, 1
      %v4008 = vsel %vm1217, %v4005, %v4007
      %v4009 = vrot.slane %v3921, 1
      %v4010 = vsel %vm1217, %v4007, %v4009
      %v4011 = vrot.slane %v3922, 1
      %v4012 = vsel %vm1217, %v4009, %v4011
      %v4013 = vrot.slane %v3923, 1
      %v4014 = vsel %vm1217, %v4011, %v4013
      %v4015 = vrot.slane %v3924, 1
      %v4016 = vsel %vm1217, %v4013, %v4015
      %v4017 = vrot.slane %v3925, 1
      %v4018 = vsel %vm1217, %v4015, %v4017
      %v4019 = vrot.slane %v3926, 1
      %v4020 = vsel %vm1217, %v4017, %v4019
      %v4021 = vrot.slane %v3927, 1
      %v4022 = vsel %vm1217, %v4019, %v4021
      %v4023 = vrot.slane %v3928, 1
      %v4024 = vsel %vm1217, %v4021, %v4023
      %v4025 = vrot.slane %v3929, 1
      %v4026 = vsel %vm1217, %v4023, %v4025
      %v4027 = vrot.slane %v3930, 1
      %v4028 = vsel %vm1217, %v4025, %v4027
      %v4029 = vrot.slane %v3931, 1
      %v4030 = vsel %vm1217, %v4027, %v4029
      %v4031 = vrot.slane %v3932, 1
      %v4032 = vsel %vm1217, %v4029, %v4031
      %v4033 = vrot.slane %v3933, 1
      %v4034 = vsel %vm1217, %v4031, %v4033
      %v4035 = vrot.slane %v3934, 1
      %v4036 = vsel %vm1217, %v4033, %v4035
      %v4037 = vrot.slane %v3935, 1
      %v4038 = vsel %vm1217, %v4035, %v4037
      %v4039 = vrot.slane %v3936, 1
      %v4040 = vsel %vm1217, %v4037, %v4039
      %v4041 = vrot.slane %v3937, 1
      %v4042 = vsel %vm1217, %v4039, %v4041
      %v4043 = vrot.slane %v3938, 1
      %v4044 = vsel %vm1217, %v4041, %v4043
      %v4045 = vrot.slane %v3939, 1
      %v4046 = vsel %vm1217, %v4043, %v4045
      %v4047 = vrot.slane %v3940, 1
      %v4048 = vsel %vm1217, %v4045, %v4047
      %v4049 = vrot.slane %v3941, 1
      %v4050 = vsel %vm1217, %v4047, %v4049
      %v4051 = vrot.slane %v3942, 1
      %v4052 = vsel %vm1217, %v4049, %v4051
      %v4053 = vrot.slane %v3943, 1
      %v4054 = vsel %vm1217, %v4051, %v4053
      %v4055 = vrot.slane %v3944, 1
      %v4056 = vsel %vm1217, %v4053, %v4055
      %v4057 = vrot.slane %v3945, 1
      %v4058 = vsel %vm1217, %v4055, %v4057
      %v4059 = vrot.slane %v3946, 1
      %v4060 = vsel %vm1217, %v4057, %v4059
      %v4061 = vrot.slane %v3947, 1
      %v4062 = vsel %vm1217, %v4059, %v4061
      %v4063 = vrot.slane %v3948, 1
      %v4064 = vsel %vm1217, %v4061, %v4063
      %v4065 = vrot.slane %v3949, 1
      %v4066 = vsel %vm1217, %v4063, %v4065
      %v4067 = vrot.slane %v3950, 1
      %v4068 = vsel %vm1217, %v4065, %v4067
      %v4069 = vrot.slane %v3951, 1
      %v4070 = vsel %vm1217, %v4067, %v4069
      %4071 = vrot.lane.b32.xlu0 %v3994, 32
      %v4072 = vpop.permute.xlu0 %4071
      %4073 = vrot.lane.b32.xlu0 %v3996, 32
      %v4074 = vpop.permute.xlu0 %4073
      %4075 = vrot.lane.b32.xlu0 %v3998, 32
      %v4076 = vpop.permute.xlu0 %4075
      %4077 = vrot.lane.b32.xlu0 %v4000, 32
      %v4078 = vpop.permute.xlu0 %4077
      %4079 = vrot.lane.b32.xlu0 %v4002, 32
      %v4080 = vpop.permute.xlu0 %4079
      %4081 = vrot.lane.b32.xlu0 %v4004, 32
      %v4082 = vpop.permute.xlu0 %4081
      %4083 = vrot.lane.b32.xlu0 %v4006, 32
      %v4084 = vpop.permute.xlu0 %4083
      %4085 = vrot.lane.b32.xlu0 %v4008, 32
      %v4086 = vpop.permute.xlu0 %4085
      %4087 = vrot.lane.b32.xlu0 %v4010, 32
      %v4088 = vpop.permute.xlu0 %4087
      %4089 = vrot.lane.b32.xlu0 %v4012, 32
      %v4090 = vpop.permute.xlu0 %4089
      %4091 = vrot.lane.b32.xlu0 %v4014, 32
      %v4092 = vpop.permute.xlu0 %4091
      %4093 = vrot.lane.b32.xlu0 %v4016, 32
      %v4094 = vpop.permute.xlu0 %4093
      %4095 = vrot.lane.b32.xlu0 %v4018, 32
      %v4096 = vpop.permute.xlu0 %4095
      %4097 = vrot.lane.b32.xlu0 %v4020, 32
      %v4098 = vpop.permute.xlu0 %4097
      %4099 = vrot.lane.b32.xlu0 %v4022, 32
      %v4100 = vpop.permute.xlu0 %4099
      %4101 = vrot.lane.b32.xlu0 %v4024, 32
      %v4102 = vpop.permute.xlu0 %4101
      %4103 = vrot.lane.b32.xlu0 %v4026, 32
      %v4104 = vpop.permute.xlu0 %4103
      %4105 = vrot.lane.b32.xlu0 %v4028, 32
      %v4106 = vpop.permute.xlu0 %4105
      %4107 = vrot.lane.b32.xlu0 %v4030, 32
      %v4108 = vpop.permute.xlu0 %4107
      %4109 = vrot.lane.b32.xlu0 %v4032, 32
      %v4110 = vpop.permute.xlu0 %4109
      %4111 = vrot.lane.b32.xlu0 %v4034, 32
      %v4112 = vpop.permute.xlu0 %4111
      %4113 = vrot.lane.b32.xlu0 %v4036, 32
      %v4114 = vpop.permute.xlu0 %4113
      %4115 = vrot.lane.b32.xlu0 %v4038, 32
      %v4116 = vpop.permute.xlu0 %4115
      %4117 = vrot.lane.b32.xlu0 %v4040, 32
      %v4118 = vpop.permute.xlu0 %4117
      %4119 = vrot.lane.b32.xlu0 %v4042, 32
      %v4120 = vpop.permute.xlu0 %4119
      %4121 = vrot.lane.b32.xlu0 %v4044, 32
      %v4122 = vpop.permute.xlu0 %4121
      %4123 = vrot.lane.b32.xlu0 %v4046, 32
      %v4124 = vpop.permute.xlu0 %4123
      %4125 = vrot.lane.b32.xlu0 %v4048, 32
      %v4126 = vpop.permute.xlu0 %4125
      %4127 = vrot.lane.b32.xlu0 %v4050, 32
      %v4128 = vpop.permute.xlu0 %4127
      %4129 = vrot.lane.b32.xlu0 %v4052, 32
      %v4130 = vpop.permute.xlu0 %4129
      %4131 = vrot.lane.b32.xlu0 %v4054, 32
      %v4132 = vpop.permute.xlu0 %4131
      %4133 = vrot.lane.b32.xlu0 %v4056, 32
      %v4134 = vpop.permute.xlu0 %4133
      %4135 = vrot.lane.b32.xlu0 %v4058, 32
      %v4136 = vpop.permute.xlu0 %4135
      %4137 = vrot.lane.b32.xlu0 %v4060, 32
      %v4138 = vpop.permute.xlu0 %4137
      %4139 = vrot.lane.b32.xlu0 %v4062, 32
      %v4140 = vpop.permute.xlu0 %4139
      %4141 = vrot.lane.b32.xlu0 %v4064, 32
      %v4142 = vpop.permute.xlu0 %4141
      %4143 = vrot.lane.b32.xlu0 %v4066, 32
      %v4144 = vpop.permute.xlu0 %4143
      %4145 = vrot.lane.b32.xlu0 %v4068, 32
      %v4146 = vpop.permute.xlu0 %4145
      %4147 = vrot.lane.b32.xlu0 %v4070, 32
      %v4148 = vpop.permute.xlu0 %4147
      %4149 = vrot.lane.b32.xlu0 %v4069, 32
      %v4150 = vpop.permute.xlu0 %4149
      %v4191 = vrot.slane %v3913, 2
      %v4192 = vsel %vm1421, %v1422, %v4191
      %v4193 = vrot.slane %v3914, 2
      %v4194 = vsel %vm1421, %v4191, %v4193
      %v4195 = vrot.slane %v3915, 2
      %v4196 = vsel %vm1421, %v4193, %v4195
      %v4197 = vrot.slane %v3916, 2
      %v4198 = vsel %vm1421, %v4195, %v4197
      %v4199 = vrot.slane %v3917, 2
      %v4200 = vsel %vm1421, %v4197, %v4199
      %v4201 = vrot.slane %v3918, 2
      %v4202 = vsel %vm1421, %v4199, %v4201
      %v4203 = vrot.slane %v3919, 2
      %v4204 = vsel %vm1421, %v4201, %v4203
      %v4205 = vrot.slane %v3920, 2
      %v4206 = vsel %vm1421, %v4203, %v4205
      %v4207 = vrot.slane %v3921, 2
      %v4208 = vsel %vm1421, %v4205, %v4207
      %v4209 = vrot.slane %v3922, 2
      %v4210 = vsel %vm1421, %v4207, %v4209
      %v4211 = vrot.slane %v3923, 2
      %v4212 = vsel %vm1421, %v4209, %v4211
      %v4213 = vrot.slane %v3924, 2
      %v4214 = vsel %vm1421, %v4211, %v4213
      %v4215 = vrot.slane %v3925, 2
      %v4216 = vsel %vm1421, %v4213, %v4215
      %v4217 = vrot.slane %v3926, 2
      %v4218 = vsel %vm1421, %v4215, %v4217
      %v4219 = vrot.slane %v3927, 2
      %v4220 = vsel %vm1421, %v4217, %v4219
      %v4221 = vrot.slane %v3928, 2
      %v4222 = vsel %vm1421, %v4219, %v4221
      %v4223 = vrot.slane %v3929, 2
      %v4224 = vsel %vm1421, %v4221, %v4223
      %v4225 = vrot.slane %v3930, 2
      %v4226 = vsel %vm1421, %v4223, %v4225
      %v4227 = vrot.slane %v3931, 2
      %v4228 = vsel %vm1421, %v4225, %v4227
      %v4229 = vrot.slane %v3932, 2
      %v4230 = vsel %vm1421, %v4227, %v4229
      %v4231 = vrot.slane %v3933, 2
      %v4232 = vsel %vm1421, %v4229, %v4231
      %v4233 = vrot.slane %v3934, 2
      %v4234 = vsel %vm1421, %v4231, %v4233
      %v4235 = vrot.slane %v3935, 2
      %v4236 = vsel %vm1421, %v4233, %v4235
      %v4237 = vrot.slane %v3936, 2
      %v4238 = vsel %vm1421, %v4235, %v4237
      %v4239 = vrot.slane %v3937, 2
      %v4240 = vsel %vm1421, %v4237, %v4239
      %v4241 = vrot.slane %v3938, 2
      %v4242 = vsel %vm1421, %v4239, %v4241
      %v4243 = vrot.slane %v3939, 2
      %v4244 = vsel %vm1421, %v4241, %v4243
      %v4245 = vrot.slane %v3940, 2
      %v4246 = vsel %vm1421, %v4243, %v4245
      %v4247 = vrot.slane %v3941, 2
      %v4248 = vsel %vm1421, %v4245, %v4247
      %v4249 = vrot.slane %v3942, 2
      %v4250 = vsel %vm1421, %v4247, %v4249
      %v4251 = vrot.slane %v3943, 2
      %v4252 = vsel %vm1421, %v4249, %v4251
      %v4253 = vrot.slane %v3944, 2
      %v4254 = vsel %vm1421, %v4251, %v4253
      %v4255 = vrot.slane %v3945, 2
      %v4256 = vsel %vm1421, %v4253, %v4255
      %v4257 = vrot.slane %v3946, 2
      %v4258 = vsel %vm1421, %v4255, %v4257
      %v4259 = vrot.slane %v3947, 2
      %v4260 = vsel %vm1421, %v4257, %v4259
      %v4261 = vrot.slane %v3948, 2
      %v4262 = vsel %vm1421, %v4259, %v4261
      %v4263 = vrot.slane %v3949, 2
      %v4264 = vsel %vm1421, %v4261, %v4263
      %v4265 = vrot.slane %v3950, 2
      %v4266 = vsel %vm1421, %v4263, %v4265
      %v4267 = vrot.slane %v3951, 2
      %v4268 = vsel %vm1421, %v4265, %v4267
      %4269 = vrot.lane.b32.xlu0 %v4192, 64
      %v4270 = vpop.permute.xlu0 %4269
      %4271 = vrot.lane.b32.xlu0 %v4194, 64
      %v4272 = vpop.permute.xlu0 %4271
      %4273 = vrot.lane.b32.xlu0 %v4196, 64
      %v4274 = vpop.permute.xlu0 %4273
      %4275 = vrot.lane.b32.xlu0 %v4198, 64
      %v4276 = vpop.permute.xlu0 %4275
      %4277 = vrot.lane.b32.xlu0 %v4200, 64
      %v4278 = vpop.permute.xlu0 %4277
      %4279 = vrot.lane.b32.xlu0 %v4202, 64
      %v4280 = vpop.permute.xlu0 %4279
      %4281 = vrot.lane.b32.xlu0 %v4204, 64
      %v4282 = vpop.permute.xlu0 %4281
      %4283 = vrot.lane.b32.xlu0 %v4206, 64
      %v4284 = vpop.permute.xlu0 %4283
      %4285 = vrot.lane.b32.xlu0 %v4208, 64
      %v4286 = vpop.permute.xlu0 %4285
      %4287 = vrot.lane.b32.xlu0 %v4210, 64
      %v4288 = vpop.permute.xlu0 %4287
      %4289 = vrot.lane.b32.xlu0 %v4212, 64
      %v4290 = vpop.permute.xlu0 %4289
      %4291 = vrot.lane.b32.xlu0 %v4214, 64
      %v4292 = vpop.permute.xlu0 %4291
      %4293 = vrot.lane.b32.xlu0 %v4216, 64
      %v4294 = vpop.permute.xlu0 %4293
      %4295 = vrot.lane.b32.xlu0 %v4218, 64
      %v4296 = vpop.permute.xlu0 %4295
      %4297 = vrot.lane.b32.xlu0 %v4220, 64
      %v4298 = vpop.permute.xlu0 %4297
      %4299 = vrot.lane.b32.xlu0 %v4222, 64
      %v4300 = vpop.permute.xlu0 %4299
      %4301 = vrot.lane.b32.xlu0 %v4224, 64
      %v4302 = vpop.permute.xlu0 %4301
      %4303 = vrot.lane.b32.xlu0 %v4226, 64
      %v4304 = vpop.permute.xlu0 %4303
      %4305 = vrot.lane.b32.xlu0 %v4228, 64
      %v4306 = vpop.permute.xlu0 %4305
      %4307 = vrot.lane.b32.xlu0 %v4230, 64
      %v4308 = vpop.permute.xlu0 %4307
      %4309 = vrot.lane.b32.xlu0 %v4232, 64
      %v4310 = vpop.permute.xlu0 %4309
      %4311 = vrot.lane.b32.xlu0 %v4234, 64
      %v4312 = vpop.permute.xlu0 %4311
      %4313 = vrot.lane.b32.xlu0 %v4236, 64
      %v4314 = vpop.permute.xlu0 %4313
      %4315 = vrot.lane.b32.xlu0 %v4238, 64
      %v4316 = vpop.permute.xlu0 %4315
      %4317 = vrot.lane.b32.xlu0 %v4240, 64
      %v4318 = vpop.permute.xlu0 %4317
      %4319 = vrot.lane.b32.xlu0 %v4242, 64
      %v4320 = vpop.permute.xlu0 %4319
      %4321 = vrot.lane.b32.xlu0 %v4244, 64
      %v4322 = vpop.permute.xlu0 %4321
      %4323 = vrot.lane.b32.xlu0 %v4246, 64
      %v4324 = vpop.permute.xlu0 %4323
      %4325 = vrot.lane.b32.xlu0 %v4248, 64
      %v4326 = vpop.permute.xlu0 %4325
      %4327 = vrot.lane.b32.xlu0 %v4250, 64
      %v4328 = vpop.permute.xlu0 %4327
      %4329 = vrot.lane.b32.xlu0 %v4252, 64
      %v4330 = vpop.permute.xlu0 %4329
      %4331 = vrot.lane.b32.xlu0 %v4254, 64
      %v4332 = vpop.permute.xlu0 %4331
      %4333 = vrot.lane.b32.xlu0 %v4256, 64
      %v4334 = vpop.permute.xlu0 %4333
      %4335 = vrot.lane.b32.xlu0 %v4258, 64
      %v4336 = vpop.permute.xlu0 %4335
      %4337 = vrot.lane.b32.xlu0 %v4260, 64
      %v4338 = vpop.permute.xlu0 %4337
      %4339 = vrot.lane.b32.xlu0 %v4262, 64
      %v4340 = vpop.permute.xlu0 %4339
      %4341 = vrot.lane.b32.xlu0 %v4264, 64
      %v4342 = vpop.permute.xlu0 %4341
      %4343 = vrot.lane.b32.xlu0 %v4266, 64
      %v4344 = vpop.permute.xlu0 %4343
      %4345 = vrot.lane.b32.xlu0 %v4268, 64
      %v4346 = vpop.permute.xlu0 %4345
      %4347 = vrot.lane.b32.xlu0 %v4267, 64
      %v4348 = vpop.permute.xlu0 %4347
      %v4391 = vrot.slane %v3952, 2
      %v4392 = vsel %vm1421, %v4267, %v4391
      %v4393 = vrot.slane %v3953, 2
      %v4394 = vsel %vm1421, %v4391, %v4393
      %4395 = vrot.lane.b32.xlu0 %v4192, 96
      %v4396 = vpop.permute.xlu0 %4395
      %4397 = vrot.lane.b32.xlu0 %v4194, 96
      %v4398 = vpop.permute.xlu0 %4397
      %4399 = vrot.lane.b32.xlu0 %v4196, 96
      %v4400 = vpop.permute.xlu0 %4399
      %4401 = vrot.lane.b32.xlu0 %v4198, 96
      %v4402 = vpop.permute.xlu0 %4401
      %4403 = vrot.lane.b32.xlu0 %v4200, 96
      %v4404 = vpop.permute.xlu0 %4403
      %4405 = vrot.lane.b32.xlu0 %v4202, 96
      %v4406 = vpop.permute.xlu0 %4405
      %4407 = vrot.lane.b32.xlu0 %v4204, 96
      %v4408 = vpop.permute.xlu0 %4407
      %4409 = vrot.lane.b32.xlu0 %v4206, 96
      %v4410 = vpop.permute.xlu0 %4409
      %4411 = vrot.lane.b32.xlu0 %v4208, 96
      %v4412 = vpop.permute.xlu0 %4411
      %4413 = vrot.lane.b32.xlu0 %v4210, 96
      %v4414 = vpop.permute.xlu0 %4413
      %4415 = vrot.lane.b32.xlu0 %v4212, 96
      %v4416 = vpop.permute.xlu0 %4415
      %4417 = vrot.lane.b32.xlu0 %v4214, 96
      %v4418 = vpop.permute.xlu0 %4417
      %4419 = vrot.lane.b32.xlu0 %v4216, 96
      %v4420 = vpop.permute.xlu0 %4419
      %4421 = vrot.lane.b32.xlu0 %v4218, 96
      %v4422 = vpop.permute.xlu0 %4421
      %4423 = vrot.lane.b32.xlu0 %v4220, 96
      %v4424 = vpop.permute.xlu0 %4423
      %4425 = vrot.lane.b32.xlu0 %v4222, 96
      %v4426 = vpop.permute.xlu0 %4425
      %4427 = vrot.lane.b32.xlu0 %v4224, 96
      %v4428 = vpop.permute.xlu0 %4427
      %4429 = vrot.lane.b32.xlu0 %v4226, 96
      %v4430 = vpop.permute.xlu0 %4429
      %4431 = vrot.lane.b32.xlu0 %v4228, 96
      %v4432 = vpop.permute.xlu0 %4431
      %4433 = vrot.lane.b32.xlu0 %v4230, 96
      %v4434 = vpop.permute.xlu0 %4433
      %4435 = vrot.lane.b32.xlu0 %v4232, 96
      %v4436 = vpop.permute.xlu0 %4435
      %4437 = vrot.lane.b32.xlu0 %v4234, 96
      %v4438 = vpop.permute.xlu0 %4437
      %4439 = vrot.lane.b32.xlu0 %v4236, 96
      %v4440 = vpop.permute.xlu0 %4439
      %4441 = vrot.lane.b32.xlu0 %v4238, 96
      %v4442 = vpop.permute.xlu0 %4441
      %4443 = vrot.lane.b32.xlu0 %v4240, 96
      %v4444 = vpop.permute.xlu0 %4443
      %4445 = vrot.lane.b32.xlu0 %v4242, 96
      %v4446 = vpop.permute.xlu0 %4445
      %4447 = vrot.lane.b32.xlu0 %v4244, 96
      %v4448 = vpop.permute.xlu0 %4447
      %4449 = vrot.lane.b32.xlu0 %v4246, 96
      %v4450 = vpop.permute.xlu0 %4449
      %4451 = vrot.lane.b32.xlu0 %v4248, 96
      %v4452 = vpop.permute.xlu0 %4451
      %4453 = vrot.lane.b32.xlu0 %v4250, 96
      %v4454 = vpop.permute.xlu0 %4453
      %4455 = vrot.lane.b32.xlu0 %v4252, 96
      %v4456 = vpop.permute.xlu0 %4455
      %4457 = vrot.lane.b32.xlu0 %v4254, 96
      %v4458 = vpop.permute.xlu0 %4457
      %4459 = vrot.lane.b32.xlu0 %v4256, 96
      %v4460 = vpop.permute.xlu0 %4459
      %4461 = vrot.lane.b32.xlu0 %v4258, 96
      %v4462 = vpop.permute.xlu0 %4461
      %4463 = vrot.lane.b32.xlu0 %v4260, 96
      %v4464 = vpop.permute.xlu0 %4463
      %4465 = vrot.lane.b32.xlu0 %v4262, 96
      %v4466 = vpop.permute.xlu0 %4465
      %4467 = vrot.lane.b32.xlu0 %v4264, 96
      %v4468 = vpop.permute.xlu0 %4467
      %4469 = vrot.lane.b32.xlu0 %v4266, 96
      %v4470 = vpop.permute.xlu0 %4469
      %4471 = vrot.lane.b32.xlu0 %v4268, 96
      %v4472 = vpop.permute.xlu0 %4471
      %4473 = vrot.lane.b32.xlu0 %v4392, 96
      %v4474 = vpop.permute.xlu0 %4473
      %4475 = vrot.lane.b32.xlu0 %v4394, 96
      %v4476 = vpop.permute.xlu0 %4475
      %4477 = vrot.lane.b32.xlu0 %v4393, 96
      %v4478 = vpop.permute.xlu0 %4477
      %v4521 = vrot.slane %v3913, 3
      %v4522 = vrot.slane %v3914, 3
      %v4523 = vsel %vm1757, %v4521, %v4522
      %v4524 = vrot.slane %v3915, 3
      %v4525 = vsel %vm1757, %v4522, %v4524
      %v4526 = vrot.slane %v3916, 3
      %v4527 = vsel %vm1757, %v4524, %v4526
      %v4528 = vrot.slane %v3917, 3
      %v4529 = vsel %vm1757, %v4526, %v4528
      %v4530 = vrot.slane %v3918, 3
      %v4531 = vsel %vm1757, %v4528, %v4530
      %v4532 = vrot.slane %v3919, 3
      %v4533 = vsel %vm1757, %v4530, %v4532
      %v4534 = vrot.slane %v3920, 3
      %v4535 = vsel %vm1757, %v4532, %v4534
      %v4536 = vrot.slane %v3921, 3
      %v4537 = vsel %vm1757, %v4534, %v4536
      %v4538 = vrot.slane %v3922, 3
      %v4539 = vsel %vm1757, %v4536, %v4538
      %v4540 = vrot.slane %v3923, 3
      %v4541 = vsel %vm1757, %v4538, %v4540
      %v4542 = vrot.slane %v3924, 3
      %v4543 = vsel %vm1757, %v4540, %v4542
      %v4544 = vrot.slane %v3925, 3
      %v4545 = vsel %vm1757, %v4542, %v4544
      %v4546 = vrot.slane %v3926, 3
      %v4547 = vsel %vm1757, %v4544, %v4546
      %v4548 = vrot.slane %v3927, 3
      %v4549 = vsel %vm1757, %v4546, %v4548
      %v4550 = vrot.slane %v3928, 3
      %v4551 = vsel %vm1757, %v4548, %v4550
      %v4552 = vrot.slane %v3929, 3
      %v4553 = vsel %vm1757, %v4550, %v4552
      %v4554 = vrot.slane %v3930, 3
      %v4555 = vsel %vm1757, %v4552, %v4554
      %v4556 = vrot.slane %v3931, 3
      %v4557 = vsel %vm1757, %v4554, %v4556
      %v4558 = vrot.slane %v3932, 3
      %v4559 = vsel %vm1757, %v4556, %v4558
      %v4560 = vrot.slane %v3933, 3
      %v4561 = vsel %vm1757, %v4558, %v4560
      %v4562 = vrot.slane %v3934, 3
      %v4563 = vsel %vm1757, %v4560, %v4562
      %v4564 = vrot.slane %v3935, 3
      %v4565 = vsel %vm1757, %v4562, %v4564
      %v4566 = vrot.slane %v3936, 3
      %v4567 = vsel %vm1757, %v4564, %v4566
      %v4568 = vrot.slane %v3937, 3
      %v4569 = vsel %vm1757, %v4566, %v4568
      %v4570 = vrot.slane %v3938, 3
      %v4571 = vsel %vm1757, %v4568, %v4570
      %v4572 = vrot.slane %v3939, 3
      %v4573 = vsel %vm1757, %v4570, %v4572
      %v4574 = vrot.slane %v3940, 3
      %v4575 = vsel %vm1757, %v4572, %v4574
      %v4576 = vrot.slane %v3941, 3
      %v4577 = vsel %vm1757, %v4574, %v4576
      %v4578 = vrot.slane %v3942, 3
      %v4579 = vsel %vm1757, %v4576, %v4578
      %v4580 = vrot.slane %v3943, 3
      %v4581 = vsel %vm1757, %v4578, %v4580
      %v4582 = vrot.slane %v3944, 3
      %v4583 = vsel %vm1757, %v4580, %v4582
      %v4584 = vrot.slane %v3945, 3
      %v4585 = vsel %vm1757, %v4582, %v4584
      %v4586 = vrot.slane %v3946, 3
      %v4587 = vsel %vm1757, %v4584, %v4586
      %v4588 = vrot.slane %v3947, 3
      %v4589 = vsel %vm1757, %v4586, %v4588
      %v4590 = vrot.slane %v3948, 3
      %v4591 = vsel %vm1757, %v4588, %v4590
      %v4592 = vrot.slane %v3949, 3
      %v4593 = vsel %vm1757, %v4590, %v4592
      %v4594 = vrot.slane %v3950, 3
      %v4595 = vsel %vm1757, %v4592, %v4594
      %v4596 = vrot.slane %v3951, 3
      %v4597 = vsel %vm1757, %v4594, %v4596
      %v4598 = vrot.slane %v3952, 3
      %v4599 = vsel %vm1757, %v4596, %v4598
      %v4600 = vrot.slane %v3953, 3
      %v4601 = vsel %vm1757, %v4598, %v4600
      %v4644 = vrot.slane %v3913, 4
      %v4645 = vrot.slane %v3914, 4
      %v4646 = vsel %vm1881, %v4644, %v4645
      %v4647 = vrot.slane %v3915, 4
      %v4648 = vsel %vm1881, %v4645, %v4647
      %v4649 = vrot.slane %v3916, 4
      %v4650 = vsel %vm1881, %v4647, %v4649
      %v4651 = vrot.slane %v3917, 4
      %v4652 = vsel %vm1881, %v4649, %v4651
      %v4653 = vrot.slane %v3918, 4
      %v4654 = vsel %vm1881, %v4651, %v4653
      %v4655 = vrot.slane %v3919, 4
      %v4656 = vsel %vm1881, %v4653, %v4655
      %v4657 = vrot.slane %v3920, 4
      %v4658 = vsel %vm1881, %v4655, %v4657
      %v4659 = vrot.slane %v3921, 4
      %v4660 = vsel %vm1881, %v4657, %v4659
      %v4661 = vrot.slane %v3922, 4
      %v4662 = vsel %vm1881, %v4659, %v4661
      %v4663 = vrot.slane %v3923, 4
      %v4664 = vsel %vm1881, %v4661, %v4663
      %v4665 = vrot.slane %v3924, 4
      %v4666 = vsel %vm1881, %v4663, %v4665
      %v4667 = vrot.slane %v3925, 4
      %v4668 = vsel %vm1881, %v4665, %v4667
      %v4669 = vrot.slane %v3926, 4
      %v4670 = vsel %vm1881, %v4667, %v4669
      %v4671 = vrot.slane %v3927, 4
      %v4672 = vsel %vm1881, %v4669, %v4671
      %v4673 = vrot.slane %v3928, 4
      %v4674 = vsel %vm1881, %v4671, %v4673
      %v4675 = vrot.slane %v3929, 4
      %v4676 = vsel %vm1881, %v4673, %v4675
      %v4677 = vrot.slane %v3930, 4
      %v4678 = vsel %vm1881, %v4675, %v4677
      %v4679 = vrot.slane %v3931, 4
      %v4680 = vsel %vm1881, %v4677, %v4679
      %v4681 = vrot.slane %v3932, 4
      %v4682 = vsel %vm1881, %v4679, %v4681
      %v4683 = vrot.slane %v3933, 4
      %v4684 = vsel %vm1881, %v4681, %v4683
      %v4685 = vrot.slane %v3934, 4
      %v4686 = vsel %vm1881, %v4683, %v4685
      %v4687 = vrot.slane %v3935, 4
      %v4688 = vsel %vm1881, %v4685, %v4687
      %v4689 = vrot.slane %v3936, 4
      %v4690 = vsel %vm1881, %v4687, %v4689
      %v4691 = vrot.slane %v3937, 4
      %v4692 = vsel %vm1881, %v4689, %v4691
      %v4693 = vrot.slane %v3938, 4
      %v4694 = vsel %vm1881, %v4691, %v4693
      %v4695 = vrot.slane %v3939, 4
      %v4696 = vsel %vm1881, %v4693, %v4695
      %v4697 = vrot.slane %v3940, 4
      %v4698 = vsel %vm1881, %v4695, %v4697
      %v4699 = vrot.slane %v3941, 4
      %v4700 = vsel %vm1881, %v4697, %v4699
      %v4701 = vrot.slane %v3942, 4
      %v4702 = vsel %vm1881, %v4699, %v4701
      %v4703 = vrot.slane %v3943, 4
      %v4704 = vsel %vm1881, %v4701, %v4703
      %v4705 = vrot.slane %v3944, 4
      %v4706 = vsel %vm1881, %v4703, %v4705
      %v4707 = vrot.slane %v3945, 4
      %v4708 = vsel %vm1881, %v4705, %v4707
      %v4709 = vrot.slane %v3946, 4
      %v4710 = vsel %vm1881, %v4707, %v4709
      %v4711 = vrot.slane %v3947, 4
      %v4712 = vsel %vm1881, %v4709, %v4711
      %v4713 = vrot.slane %v3948, 4
      %v4714 = vsel %vm1881, %v4711, %v4713
      %v4715 = vrot.slane %v3949, 4
      %v4716 = vsel %vm1881, %v4713, %v4715
      %v4717 = vrot.slane %v3950, 4
      %v4718 = vsel %vm1881, %v4715, %v4717
      %v4719 = vrot.slane %v3951, 4
      %v4720 = vsel %vm1881, %v4717, %v4719
      %v4721 = vrot.slane %v3952, 4
      %v4722 = vsel %vm1881, %v4719, %v4721
      %v4723 = vrot.slane %v3953, 4
      %v4724 = vsel %vm1881, %v4721, %v4723
      %v4725 = vsel %vm1881, %v4723, %v1963
      %4726 = vrot.lane.b32.xlu0 %v4644, 32
      %v4727 = vpop.permute.xlu0 %4726
      %4728 = vrot.lane.b32.xlu0 %v4646, 32
      %v4729 = vpop.permute.xlu0 %4728
      %4730 = vrot.lane.b32.xlu0 %v4648, 32
      %v4731 = vpop.permute.xlu0 %4730
      %4732 = vrot.lane.b32.xlu0 %v4650, 32
      %v4733 = vpop.permute.xlu0 %4732
      %4734 = vrot.lane.b32.xlu0 %v4652, 32
      %v4735 = vpop.permute.xlu0 %4734
      %4736 = vrot.lane.b32.xlu0 %v4654, 32
      %v4737 = vpop.permute.xlu0 %4736
      %4738 = vrot.lane.b32.xlu0 %v4656, 32
      %v4739 = vpop.permute.xlu0 %4738
      %4740 = vrot.lane.b32.xlu0 %v4658, 32
      %v4741 = vpop.permute.xlu0 %4740
      %4742 = vrot.lane.b32.xlu0 %v4660, 32
      %v4743 = vpop.permute.xlu0 %4742
      %4744 = vrot.lane.b32.xlu0 %v4662, 32
      %v4745 = vpop.permute.xlu0 %4744
      %4746 = vrot.lane.b32.xlu0 %v4664, 32
      %v4747 = vpop.permute.xlu0 %4746
      %4748 = vrot.lane.b32.xlu0 %v4666, 32
      %v4749 = vpop.permute.xlu0 %4748
      %4750 = vrot.lane.b32.xlu0 %v4668, 32
      %v4751 = vpop.permute.xlu0 %4750
      %4752 = vrot.lane.b32.xlu0 %v4670, 32
      %v4753 = vpop.permute.xlu0 %4752
      %4754 = vrot.lane.b32.xlu0 %v4672, 32
      %v4755 = vpop.permute.xlu0 %4754
      %4756 = vrot.lane.b32.xlu0 %v4674, 32
      %v4757 = vpop.permute.xlu0 %4756
      %4758 = vrot.lane.b32.xlu0 %v4676, 32
      %v4759 = vpop.permute.xlu0 %4758
      %4760 = vrot.lane.b32.xlu0 %v4678, 32
      %v4761 = vpop.permute.xlu0 %4760
      %4762 = vrot.lane.b32.xlu0 %v4680, 32
      %v4763 = vpop.permute.xlu0 %4762
      %4764 = vrot.lane.b32.xlu0 %v4682, 32
      %v4765 = vpop.permute.xlu0 %4764
      %4766 = vrot.lane.b32.xlu0 %v4684, 32
      %v4767 = vpop.permute.xlu0 %4766
      %4768 = vrot.lane.b32.xlu0 %v4686, 32
      %v4769 = vpop.permute.xlu0 %4768
      %4770 = vrot.lane.b32.xlu0 %v4688, 32
      %v4771 = vpop.permute.xlu0 %4770
      %4772 = vrot.lane.b32.xlu0 %v4690, 32
      %v4773 = vpop.permute.xlu0 %4772
      %4774 = vrot.lane.b32.xlu0 %v4692, 32
      %v4775 = vpop.permute.xlu0 %4774
      %4776 = vrot.lane.b32.xlu0 %v4694, 32
      %v4777 = vpop.permute.xlu0 %4776
      %4778 = vrot.lane.b32.xlu0 %v4696, 32
      %v4779 = vpop.permute.xlu0 %4778
      %4780 = vrot.lane.b32.xlu0 %v4698, 32
      %v4781 = vpop.permute.xlu0 %4780
      %4782 = vrot.lane.b32.xlu0 %v4700, 32
      %v4783 = vpop.permute.xlu0 %4782
      %4784 = vrot.lane.b32.xlu0 %v4702, 32
      %v4785 = vpop.permute.xlu0 %4784
      %4786 = vrot.lane.b32.xlu0 %v4704, 32
      %v4787 = vpop.permute.xlu0 %4786
      %4788 = vrot.lane.b32.xlu0 %v4706, 32
      %v4789 = vpop.permute.xlu0 %4788
      %4790 = vrot.lane.b32.xlu0 %v4708, 32
      %v4791 = vpop.permute.xlu0 %4790
      %4792 = vrot.lane.b32.xlu0 %v4710, 32
      %v4793 = vpop.permute.xlu0 %4792
      %4794 = vrot.lane.b32.xlu0 %v4712, 32
      %v4795 = vpop.permute.xlu0 %4794
      %4796 = vrot.lane.b32.xlu0 %v4714, 32
      %v4797 = vpop.permute.xlu0 %4796
      %4798 = vrot.lane.b32.xlu0 %v4716, 32
      %v4799 = vpop.permute.xlu0 %4798
      %4800 = vrot.lane.b32.xlu0 %v4718, 32
      %v4801 = vpop.permute.xlu0 %4800
      %4802 = vrot.lane.b32.xlu0 %v4720, 32
      %v4803 = vpop.permute.xlu0 %4802
      %4804 = vrot.lane.b32.xlu0 %v4722, 32
      %v4805 = vpop.permute.xlu0 %4804
      %4806 = vrot.lane.b32.xlu0 %v4724, 32
      %v4807 = vpop.permute.xlu0 %4806
      %4808 = vrot.lane.b32.xlu0 %v4725, 32
      %v4809 = vpop.permute.xlu0 %4808
      %4852 = vrot.lane.b32.xlu0 %v4647, 64
      %v4853 = vpop.permute.xlu0 %4852
      %4854 = vrot.lane.b32.xlu0 %v4650, 64
      %v4855 = vpop.permute.xlu0 %4854
      %4856 = vrot.lane.b32.xlu0 %v4652, 64
      %v4857 = vpop.permute.xlu0 %4856
      %4858 = vrot.lane.b32.xlu0 %v4654, 64
      %v4859 = vpop.permute.xlu0 %4858
      %4860 = vrot.lane.b32.xlu0 %v4656, 64
      %v4861 = vpop.permute.xlu0 %4860
      %4862 = vrot.lane.b32.xlu0 %v4658, 64
      %v4863 = vpop.permute.xlu0 %4862
      %4864 = vrot.lane.b32.xlu0 %v4660, 64
      %v4865 = vpop.permute.xlu0 %4864
      %4866 = vrot.lane.b32.xlu0 %v4662, 64
      %v4867 = vpop.permute.xlu0 %4866
      %4868 = vrot.lane.b32.xlu0 %v4664, 64
      %v4869 = vpop.permute.xlu0 %4868
      %4870 = vrot.lane.b32.xlu0 %v4666, 64
      %v4871 = vpop.permute.xlu0 %4870
      %4872 = vrot.lane.b32.xlu0 %v4668, 64
      %v4873 = vpop.permute.xlu0 %4872
      %4874 = vrot.lane.b32.xlu0 %v4670, 64
      %v4875 = vpop.permute.xlu0 %4874
      %4876 = vrot.lane.b32.xlu0 %v4672, 64
      %v4877 = vpop.permute.xlu0 %4876
      %4878 = vrot.lane.b32.xlu0 %v4674, 64
      %v4879 = vpop.permute.xlu0 %4878
      %4880 = vrot.lane.b32.xlu0 %v4676, 64
      %v4881 = vpop.permute.xlu0 %4880
      %4882 = vrot.lane.b32.xlu0 %v4678, 64
      %v4883 = vpop.permute.xlu0 %4882
      %4884 = vrot.lane.b32.xlu0 %v4680, 64
      %v4885 = vpop.permute.xlu0 %4884
      %4886 = vrot.lane.b32.xlu0 %v4682, 64
      %v4887 = vpop.permute.xlu0 %4886
      %4888 = vrot.lane.b32.xlu0 %v4684, 64
      %v4889 = vpop.permute.xlu0 %4888
      %4890 = vrot.lane.b32.xlu0 %v4686, 64
      %v4891 = vpop.permute.xlu0 %4890
      %4892 = vrot.lane.b32.xlu0 %v4688, 64
      %v4893 = vpop.permute.xlu0 %4892
      %4894 = vrot.lane.b32.xlu0 %v4690, 64
      %v4895 = vpop.permute.xlu0 %4894
      %4896 = vrot.lane.b32.xlu0 %v4692, 64
      %v4897 = vpop.permute.xlu0 %4896
      %4898 = vrot.lane.b32.xlu0 %v4694, 64
      %v4899 = vpop.permute.xlu0 %4898
      %4900 = vrot.lane.b32.xlu0 %v4696, 64
      %v4901 = vpop.permute.xlu0 %4900
      %4902 = vrot.lane.b32.xlu0 %v4698, 64
      %v4903 = vpop.permute.xlu0 %4902
      %4904 = vrot.lane.b32.xlu0 %v4700, 64
      %v4905 = vpop.permute.xlu0 %4904
      %4906 = vrot.lane.b32.xlu0 %v4702, 64
      %v4907 = vpop.permute.xlu0 %4906
      %4908 = vrot.lane.b32.xlu0 %v4704, 64
      %v4909 = vpop.permute.xlu0 %4908
      %4910 = vrot.lane.b32.xlu0 %v4706, 64
      %v4911 = vpop.permute.xlu0 %4910
      %4912 = vrot.lane.b32.xlu0 %v4708, 64
      %v4913 = vpop.permute.xlu0 %4912
      %4914 = vrot.lane.b32.xlu0 %v4710, 64
      %v4915 = vpop.permute.xlu0 %4914
      %4916 = vrot.lane.b32.xlu0 %v4712, 64
      %v4917 = vpop.permute.xlu0 %4916
      %4918 = vrot.lane.b32.xlu0 %v4714, 64
      %v4919 = vpop.permute.xlu0 %4918
      %4920 = vrot.lane.b32.xlu0 %v4716, 64
      %v4921 = vpop.permute.xlu0 %4920
      %4922 = vrot.lane.b32.xlu0 %v4718, 64
      %v4923 = vpop.permute.xlu0 %4922
      %4924 = vrot.lane.b32.xlu0 %v4720, 64
      %v4925 = vpop.permute.xlu0 %4924
      %4926 = vrot.lane.b32.xlu0 %v4722, 64
      %v4927 = vpop.permute.xlu0 %4926
      %4928 = vrot.lane.b32.xlu0 %v4724, 64
      %v4929 = vpop.permute.xlu0 %4928
      %4930 = vrot.lane.b32.xlu0 %v4725, 64
      %v4931 = vpop.permute.xlu0 %4930
      %v4972 = vrot.slane %v3915, 5
      %v4973 = vrot.slane %v3916, 5
      %v4974 = vsel %vm575, %v4972, %v4973
      %v4975 = vrot.slane %v3917, 5
      %v4976 = vsel %vm575, %v4973, %v4975
      %v4977 = vrot.slane %v3918, 5
      %v4978 = vsel %vm575, %v4975, %v4977
      %v4979 = vrot.slane %v3919, 5
      %v4980 = vsel %vm575, %v4977, %v4979
      %v4981 = vrot.slane %v3920, 5
      %v4982 = vsel %vm575, %v4979, %v4981
      %v4983 = vrot.slane %v3921, 5
      %v4984 = vsel %vm575, %v4981, %v4983
      %v4985 = vrot.slane %v3922, 5
      %v4986 = vsel %vm575, %v4983, %v4985
      %v4987 = vrot.slane %v3923, 5
      %v4988 = vsel %vm575, %v4985, %v4987
      %v4989 = vrot.slane %v3924, 5
      %v4990 = vsel %vm575, %v4987, %v4989
      %v4991 = vrot.slane %v3925, 5
      %v4992 = vsel %vm575, %v4989, %v4991
      %v4993 = vrot.slane %v3926, 5
      %v4994 = vsel %vm575, %v4991, %v4993
      %v4995 = vrot.slane %v3927, 5
      %v4996 = vsel %vm575, %v4993, %v4995
      %v4997 = vrot.slane %v3928, 5
      %v4998 = vsel %vm575, %v4995, %v4997
      %v4999 = vrot.slane %v3929, 5
      %v5000 = vsel %vm575, %v4997, %v4999
      %v5001 = vrot.slane %v3930, 5
      %v5002 = vsel %vm575, %v4999, %v5001
      %v5003 = vrot.slane %v3931, 5
      %v5004 = vsel %vm575, %v5001, %v5003
      %v5005 = vrot.slane %v3932, 5
      %v5006 = vsel %vm575, %v5003, %v5005
      %v5007 = vrot.slane %v3933, 5
      %v5008 = vsel %vm575, %v5005, %v5007
      %v5009 = vrot.slane %v3934, 5
      %v5010 = vsel %vm575, %v5007, %v5009
      %v5011 = vrot.slane %v3935, 5
      %v5012 = vsel %vm575, %v5009, %v5011
      %v5013 = vrot.slane %v3936, 5
      %v5014 = vsel %vm575, %v5011, %v5013
      %v5015 = vrot.slane %v3937, 5
      %v5016 = vsel %vm575, %v5013, %v5015
      %v5017 = vrot.slane %v3938, 5
      %v5018 = vsel %vm575, %v5015, %v5017
      %v5019 = vrot.slane %v3939, 5
      %v5020 = vsel %vm575, %v5017, %v5019
      %v5021 = vrot.slane %v3940, 5
      %v5022 = vsel %vm575, %v5019, %v5021
      %v5023 = vrot.slane %v3941, 5
      %v5024 = vsel %vm575, %v5021, %v5023
      %v5025 = vrot.slane %v3942, 5
      %v5026 = vsel %vm575, %v5023, %v5025
      %v5027 = vrot.slane %v3943, 5
      %v5028 = vsel %vm575, %v5025, %v5027
      %v5029 = vrot.slane %v3944, 5
      %v5030 = vsel %vm575, %v5027, %v5029
      %v5031 = vrot.slane %v3945, 5
      %v5032 = vsel %vm575, %v5029, %v5031
      %v5033 = vrot.slane %v3946, 5
      %v5034 = vsel %vm575, %v5031, %v5033
      %v5035 = vrot.slane %v3947, 5
      %v5036 = vsel %vm575, %v5033, %v5035
      %v5037 = vrot.slane %v3948, 5
      %v5038 = vsel %vm575, %v5035, %v5037
      %v5039 = vrot.slane %v3949, 5
      %v5040 = vsel %vm575, %v5037, %v5039
      %v5041 = vrot.slane %v3950, 5
      %v5042 = vsel %vm575, %v5039, %v5041
      %v5043 = vrot.slane %v3951, 5
      %v5044 = vsel %vm575, %v5041, %v5043
      %v5045 = vrot.slane %v3952, 5
      %v5046 = vsel %vm575, %v5043, %v5045
      %v5047 = vrot.slane %v3953, 5
      %v5048 = vsel %vm575, %v5045, %v5047
      %v5049 = vsel %vm575, %v5047, %v2292
      %5050 = vrot.lane.b32.xlu0 %v4972, 96
      %v5051 = vpop.permute.xlu0 %5050
      %5052 = vrot.lane.b32.xlu0 %v4974, 96
      %v5053 = vpop.permute.xlu0 %5052
      %5054 = vrot.lane.b32.xlu0 %v4976, 96
      %v5055 = vpop.permute.xlu0 %5054
      %5056 = vrot.lane.b32.xlu0 %v4978, 96
      %v5057 = vpop.permute.xlu0 %5056
      %5058 = vrot.lane.b32.xlu0 %v4980, 96
      %v5059 = vpop.permute.xlu0 %5058
      %5060 = vrot.lane.b32.xlu0 %v4982, 96
      %v5061 = vpop.permute.xlu0 %5060
      %5062 = vrot.lane.b32.xlu0 %v4984, 96
      %v5063 = vpop.permute.xlu0 %5062
      %5064 = vrot.lane.b32.xlu0 %v4986, 96
      %v5065 = vpop.permute.xlu0 %5064
      %5066 = vrot.lane.b32.xlu0 %v4988, 96
      %v5067 = vpop.permute.xlu0 %5066
      %5068 = vrot.lane.b32.xlu0 %v4990, 96
      %v5069 = vpop.permute.xlu0 %5068
      %5070 = vrot.lane.b32.xlu0 %v4992, 96
      %v5071 = vpop.permute.xlu0 %5070
      %5072 = vrot.lane.b32.xlu0 %v4994, 96
      %v5073 = vpop.permute.xlu0 %5072
      %5074 = vrot.lane.b32.xlu0 %v4996, 96
      %v5075 = vpop.permute.xlu0 %5074
      %5076 = vrot.lane.b32.xlu0 %v4998, 96
      %v5077 = vpop.permute.xlu0 %5076
      %5078 = vrot.lane.b32.xlu0 %v5000, 96
      %v5079 = vpop.permute.xlu0 %5078
      %5080 = vrot.lane.b32.xlu0 %v5002, 96
      %v5081 = vpop.permute.xlu0 %5080
      %5082 = vrot.lane.b32.xlu0 %v5004, 96
      %v5083 = vpop.permute.xlu0 %5082
      %5084 = vrot.lane.b32.xlu0 %v5006, 96
      %v5085 = vpop.permute.xlu0 %5084
      %5086 = vrot.lane.b32.xlu0 %v5008, 96
      %v5087 = vpop.permute.xlu0 %5086
      %5088 = vrot.lane.b32.xlu0 %v5010, 96
      %v5089 = vpop.permute.xlu0 %5088
      %5090 = vrot.lane.b32.xlu0 %v5012, 96
      %v5091 = vpop.permute.xlu0 %5090
      %5092 = vrot.lane.b32.xlu0 %v5014, 96
      %v5093 = vpop.permute.xlu0 %5092
      %5094 = vrot.lane.b32.xlu0 %v5016, 96
      %v5095 = vpop.permute.xlu0 %5094
      %5096 = vrot.lane.b32.xlu0 %v5018, 96
      %v5097 = vpop.permute.xlu0 %5096
      %5098 = vrot.lane.b32.xlu0 %v5020, 96
      %v5099 = vpop.permute.xlu0 %5098
      %5100 = vrot.lane.b32.xlu0 %v5022, 96
      %v5101 = vpop.permute.xlu0 %5100
      %5102 = vrot.lane.b32.xlu0 %v5024, 96
      %v5103 = vpop.permute.xlu0 %5102
      %5104 = vrot.lane.b32.xlu0 %v5026, 96
      %v5105 = vpop.permute.xlu0 %5104
      %5106 = vrot.lane.b32.xlu0 %v5028, 96
      %v5107 = vpop.permute.xlu0 %5106
      %5108 = vrot.lane.b32.xlu0 %v5030, 96
      %v5109 = vpop.permute.xlu0 %5108
      %5110 = vrot.lane.b32.xlu0 %v5032, 96
      %v5111 = vpop.permute.xlu0 %5110
      %5112 = vrot.lane.b32.xlu0 %v5034, 96
      %v5113 = vpop.permute.xlu0 %5112
      %5114 = vrot.lane.b32.xlu0 %v5036, 96
      %v5115 = vpop.permute.xlu0 %5114
      %5116 = vrot.lane.b32.xlu0 %v5038, 96
      %v5117 = vpop.permute.xlu0 %5116
      %5118 = vrot.lane.b32.xlu0 %v5040, 96
      %v5119 = vpop.permute.xlu0 %5118
      %5120 = vrot.lane.b32.xlu0 %v5042, 96
      %v5121 = vpop.permute.xlu0 %5120
      %5122 = vrot.lane.b32.xlu0 %v5044, 96
      %v5123 = vpop.permute.xlu0 %5122
      %5124 = vrot.lane.b32.xlu0 %v5046, 96
      %v5125 = vpop.permute.xlu0 %5124
      %5126 = vrot.lane.b32.xlu0 %v5048, 96
      %v5127 = vpop.permute.xlu0 %5126
      %5128 = vrot.lane.b32.xlu0 %v5049, 96
      %v5129 = vpop.permute.xlu0 %5128
      %v5170 = vrot.slane %v3915, 6
      %v5171 = vrot.slane %v3916, 6
      %v5172 = vsel %vm2418, %v5170, %v5171
      %v5173 = vrot.slane %v3917, 6
      %v5174 = vsel %vm2418, %v5171, %v5173
      %v5175 = vrot.slane %v3918, 6
      %v5176 = vsel %vm2418, %v5173, %v5175
      %v5177 = vrot.slane %v3919, 6
      %v5178 = vsel %vm2418, %v5175, %v5177
      %v5179 = vrot.slane %v3920, 6
      %v5180 = vsel %vm2418, %v5177, %v5179
      %v5181 = vrot.slane %v3921, 6
      %v5182 = vsel %vm2418, %v5179, %v5181
      %v5183 = vrot.slane %v3922, 6
      %v5184 = vsel %vm2418, %v5181, %v5183
      %v5185 = vrot.slane %v3923, 6
      %v5186 = vsel %vm2418, %v5183, %v5185
      %v5187 = vrot.slane %v3924, 6
      %v5188 = vsel %vm2418, %v5185, %v5187
      %v5189 = vrot.slane %v3925, 6
      %v5190 = vsel %vm2418, %v5187, %v5189
      %v5191 = vrot.slane %v3926, 6
      %v5192 = vsel %vm2418, %v5189, %v5191
      %v5193 = vrot.slane %v3927, 6
      %v5194 = vsel %vm2418, %v5191, %v5193
      %v5195 = vrot.slane %v3928, 6
      %v5196 = vsel %vm2418, %v5193, %v5195
      %v5197 = vrot.slane %v3929, 6
      %v5198 = vsel %vm2418, %v5195, %v5197
      %v5199 = vrot.slane %v3930, 6
      %v5200 = vsel %vm2418, %v5197, %v5199
      %v5201 = vrot.slane %v3931, 6
      %v5202 = vsel %vm2418, %v5199, %v5201
      %v5203 = vrot.slane %v3932, 6
      %v5204 = vsel %vm2418, %v5201, %v5203
      %v5205 = vrot.slane %v3933, 6
      %v5206 = vsel %vm2418, %v5203, %v5205
      %v5207 = vrot.slane %v3934, 6
      %v5208 = vsel %vm2418, %v5205, %v5207
      %v5209 = vrot.slane %v3935, 6
      %v5210 = vsel %vm2418, %v5207, %v5209
      %v5211 = vrot.slane %v3936, 6
      %v5212 = vsel %vm2418, %v5209, %v5211
      %v5213 = vrot.slane %v3937, 6
      %v5214 = vsel %vm2418, %v5211, %v5213
      %v5215 = vrot.slane %v3938, 6
      %v5216 = vsel %vm2418, %v5213, %v5215
      %v5217 = vrot.slane %v3939, 6
      %v5218 = vsel %vm2418, %v5215, %v5217
      %v5219 = vrot.slane %v3940, 6
      %v5220 = vsel %vm2418, %v5217, %v5219
      %v5221 = vrot.slane %v3941, 6
      %v5222 = vsel %vm2418, %v5219, %v5221
      %v5223 = vrot.slane %v3942, 6
      %v5224 = vsel %vm2418, %v5221, %v5223
      %v5225 = vrot.slane %v3943, 6
      %v5226 = vsel %vm2418, %v5223, %v5225
      %v5227 = vrot.slane %v3944, 6
      %v5228 = vsel %vm2418, %v5225, %v5227
      %v5229 = vrot.slane %v3945, 6
      %v5230 = vsel %vm2418, %v5227, %v5229
      %v5231 = vrot.slane %v3946, 6
      %v5232 = vsel %vm2418, %v5229, %v5231
      %v5233 = vrot.slane %v3947, 6
      %v5234 = vsel %vm2418, %v5231, %v5233
      %v5235 = vrot.slane %v3948, 6
      %v5236 = vsel %vm2418, %v5233, %v5235
      %v5237 = vrot.slane %v3949, 6
      %v5238 = vsel %vm2418, %v5235, %v5237
      %v5239 = vrot.slane %v3950, 6
      %v5240 = vsel %vm2418, %v5237, %v5239
      %v5241 = vrot.slane %v3951, 6
      %v5242 = vsel %vm2418, %v5239, %v5241
      %v5243 = vrot.slane %v3952, 6
      %v5244 = vsel %vm2418, %v5241, %v5243
      %v5245 = vrot.slane %v3953, 6
      %v5246 = vsel %vm2418, %v5243, %v5245
      %v5247 = vsel %vm2418, %v5245, %v2496
      %v5248 = vsel %vm2499, 0.0, %v4072
      %v5249 = vsel %vm2499, %v3913, %v4074
      %v5250 = vsel %vm2499, %v3914, %v4076
      %v5251 = vsel %vm2499, %v3915, %v4078
      %v5252 = vsel %vm2499, %v3916, %v4080
      %v5253 = vsel %vm2499, %v3917, %v4082
      %v5254 = vsel %vm2499, %v3918, %v4084
      %v5255 = vsel %vm2499, %v3919, %v4086
      %v5256 = vsel %vm2499, %v3920, %v4088
      %v5257 = vsel %vm2499, %v3921, %v4090
      %v5258 = vsel %vm2499, %v3922, %v4092
      %v5259 = vsel %vm2499, %v3923, %v4094
      %v5260 = vsel %vm2499, %v3924, %v4096
      %v5261 = vsel %vm2499, %v3925, %v4098
      %v5262 = vsel %vm2499, %v3926, %v4100
      %v5263 = vsel %vm2499, %v3927, %v4102
      %v5264 = vsel %vm2499, %v3928, %v4104
      %v5265 = vsel %vm2499, %v3929, %v4106
      %v5266 = vsel %vm2499, %v3930, %v4108
      %v5267 = vsel %vm2499, %v3931, %v4110
      %v5268 = vsel %vm2499, %v3932, %v4112
      %v5269 = vsel %vm2499, %v3933, %v4114
      %v5270 = vsel %vm2499, %v3934, %v4116
      %v5271 = vsel %vm2499, %v3935, %v4118
      %v5272 = vsel %vm2499, %v3936, %v4120
      %v5273 = vsel %vm2499, %v3937, %v4122
      %v5274 = vsel %vm2499, %v3938, %v4124
      %v5275 = vsel %vm2499, %v3939, %v4126
      %v5276 = vsel %vm2499, %v3940, %v4128
      %v5277 = vsel %vm2499, %v3941, %v4130
      %v5278 = vsel %vm2499, %v3942, %v4132
      %v5279 = vsel %vm2499, %v3943, %v4134
      %v5280 = vsel %vm2499, %v3944, %v4136
      %v5281 = vsel %vm2499, %v3945, %v4138
      %v5282 = vsel %vm2499, %v3946, %v4140
      %v5283 = vsel %vm2499, %v3947, %v4142
      %v5284 = vsel %vm2499, %v3948, %v4144
      %v5285 = vsel %vm2499, %v3949, %v4146
      %v5286 = vsel %vm2499, %v3950, %v4148
      %v5287 = vsel %vm2499, %v3951, %v4150
      %v5288 = vsel %vm2541, %v5248, %v4270
      %v5289 = vsel %vm2541, %v5249, %v4272
      %v5290 = vsel %vm2541, %v5250, %v4274
      %v5291 = vsel %vm2541, %v5251, %v4276
      %v5292 = vsel %vm2541, %v5252, %v4278
      %v5293 = vsel %vm2541, %v5253, %v4280
      %v5294 = vsel %vm2541, %v5254, %v4282
      %v5295 = vsel %vm2541, %v5255, %v4284
      %v5296 = vsel %vm2541, %v5256, %v4286
      %v5297 = vsel %vm2541, %v5257, %v4288
      %v5298 = vsel %vm2541, %v5258, %v4290
      %v5299 = vsel %vm2541, %v5259, %v4292
      %v5300 = vsel %vm2541, %v5260, %v4294
      %v5301 = vsel %vm2541, %v5261, %v4296
      %v5302 = vsel %vm2541, %v5262, %v4298
      %v5303 = vsel %vm2541, %v5263, %v4300
      %v5304 = vsel %vm2541, %v5264, %v4302
      %v5305 = vsel %vm2541, %v5265, %v4304
      %v5306 = vsel %vm2541, %v5266, %v4306
      %v5307 = vsel %vm2541, %v5267, %v4308
      %v5308 = vsel %vm2541, %v5268, %v4310
      %v5309 = vsel %vm2541, %v5269, %v4312
      %v5310 = vsel %vm2541, %v5270, %v4314
      %v5311 = vsel %vm2541, %v5271, %v4316
      %v5312 = vsel %vm2541, %v5272, %v4318
      %v5313 = vsel %vm2541, %v5273, %v4320
      %v5314 = vsel %vm2541, %v5274, %v4322
      %v5315 = vsel %vm2541, %v5275, %v4324
      %v5316 = vsel %vm2541, %v5276, %v4326
      %v5317 = vsel %vm2541, %v5277, %v4328
      %v5318 = vsel %vm2541, %v5278, %v4330
      %v5319 = vsel %vm2541, %v5279, %v4332
      %v5320 = vsel %vm2541, %v5280, %v4334
      %v5321 = vsel %vm2541, %v5281, %v4336
      %v5322 = vsel %vm2541, %v5282, %v4338
      %v5323 = vsel %vm2541, %v5283, %v4340
      %v5324 = vsel %vm2541, %v5284, %v4342
      %v5325 = vsel %vm2541, %v5285, %v4344
      %v5326 = vsel %vm2541, %v5286, %v4346
      %v5327 = vsel %vm2541, %v5287, %v4348
      %v5328 = vsel %vm2583, %v2542, %v4396
      %v5329 = vsel %vm2583, %v2542, %v4398
      %v5330 = vsel %vm2583, %v5288, %v4400
      %v5331 = vsel %vm2583, %v5289, %v4402
      %v5332 = vsel %vm2583, %v5290, %v4404
      %v5333 = vsel %vm2583, %v5291, %v4406
      %v5334 = vsel %vm2583, %v5292, %v4408
      %v5335 = vsel %vm2583, %v5293, %v4410
      %v5336 = vsel %vm2583, %v5294, %v4412
      %v5337 = vsel %vm2583, %v5295, %v4414
      %v5338 = vsel %vm2583, %v5296, %v4416
      %v5339 = vsel %vm2583, %v5297, %v4418
      %v5340 = vsel %vm2583, %v5298, %v4420
      %v5341 = vsel %vm2583, %v5299, %v4422
      %v5342 = vsel %vm2583, %v5300, %v4424
      %v5343 = vsel %vm2583, %v5301, %v4426
      %v5344 = vsel %vm2583, %v5302, %v4428
      %v5345 = vsel %vm2583, %v5303, %v4430
      %v5346 = vsel %vm2583, %v5304, %v4432
      %v5347 = vsel %vm2583, %v5305, %v4434
      %v5348 = vsel %vm2583, %v5306, %v4436
      %v5349 = vsel %vm2583, %v5307, %v4438
      %v5350 = vsel %vm2583, %v5308, %v4440
      %v5351 = vsel %vm2583, %v5309, %v4442
      %v5352 = vsel %vm2583, %v5310, %v4444
      %v5353 = vsel %vm2583, %v5311, %v4446
      %v5354 = vsel %vm2583, %v5312, %v4448
      %v5355 = vsel %vm2583, %v5313, %v4450
      %v5356 = vsel %vm2583, %v5314, %v4452
      %v5357 = vsel %vm2583, %v5315, %v4454
      %v5358 = vsel %vm2583, %v5316, %v4456
      %v5359 = vsel %vm2583, %v5317, %v4458
      %v5360 = vsel %vm2583, %v5318, %v4460
      %v5361 = vsel %vm2583, %v5319, %v4462
      %v5362 = vsel %vm2583, %v5320, %v4464
      %v5363 = vsel %vm2583, %v5321, %v4466
      %v5364 = vsel %vm2583, %v5322, %v4468
      %v5365 = vsel %vm2583, %v5323, %v4470
      %v5366 = vsel %vm2583, %v5324, %v4472
      %v5367 = vsel %vm2583, %v5325, %v4474
      %v5368 = vsel %vm2583, %v5326, %v4476
      %v5369 = vsel %vm2583, %v5327, %v4478
      %v5370 = vsel %vm2499, %v4521, %v4727
      %v5371 = vsel %vm2499, %v4523, %v4729
      %v5372 = vsel %vm2499, %v4525, %v4731
      %v5373 = vsel %vm2499, %v4527, %v4733
      %v5374 = vsel %vm2499, %v4529, %v4735
      %v5375 = vsel %vm2499, %v4531, %v4737
      %v5376 = vsel %vm2499, %v4533, %v4739
      %v5377 = vsel %vm2499, %v4535, %v4741
      %v5378 = vsel %vm2499, %v4537, %v4743
      %v5379 = vsel %vm2499, %v4539, %v4745
      %v5380 = vsel %vm2499, %v4541, %v4747
      %v5381 = vsel %vm2499, %v4543, %v4749
      %v5382 = vsel %vm2499, %v4545, %v4751
      %v5383 = vsel %vm2499, %v4547, %v4753
      %v5384 = vsel %vm2499, %v4549, %v4755
      %v5385 = vsel %vm2499, %v4551, %v4757
      %v5386 = vsel %vm2499, %v4553, %v4759
      %v5387 = vsel %vm2499, %v4555, %v4761
      %v5388 = vsel %vm2499, %v4557, %v4763
      %v5389 = vsel %vm2499, %v4559, %v4765
      %v5390 = vsel %vm2499, %v4561, %v4767
      %v5391 = vsel %vm2499, %v4563, %v4769
      %v5392 = vsel %vm2499, %v4565, %v4771
      %v5393 = vsel %vm2499, %v4567, %v4773
      %v5394 = vsel %vm2499, %v4569, %v4775
      %v5395 = vsel %vm2499, %v4571, %v4777
      %v5396 = vsel %vm2499, %v4573, %v4779
      %v5397 = vsel %vm2499, %v4575, %v4781
      %v5398 = vsel %vm2499, %v4577, %v4783
      %v5399 = vsel %vm2499, %v4579, %v4785
      %v5400 = vsel %vm2499, %v4581, %v4787
      %v5401 = vsel %vm2499, %v4583, %v4789
      %v5402 = vsel %vm2499, %v4585, %v4791
      %v5403 = vsel %vm2499, %v4587, %v4793
      %v5404 = vsel %vm2499, %v4589, %v4795
      %v5405 = vsel %vm2499, %v4591, %v4797
      %v5406 = vsel %vm2499, %v4593, %v4799
      %v5407 = vsel %vm2499, %v4595, %v4801
      %v5408 = vsel %vm2499, %v4597, %v4803
      %v5409 = vsel %vm2499, %v4599, %v4805
      %v5410 = vsel %vm2499, %v4601, %v4807
      %v5411 = vsel %vm2499, %v4600, %v4809
      %v5412 = vsel %vm2541, %v5370, %v4853
      %v5413 = vsel %vm2541, %v5371, %v4855
      %v5414 = vsel %vm2541, %v5372, %v4857
      %v5415 = vsel %vm2541, %v5373, %v4859
      %v5416 = vsel %vm2541, %v5374, %v4861
      %v5417 = vsel %vm2541, %v5375, %v4863
      %v5418 = vsel %vm2541, %v5376, %v4865
      %v5419 = vsel %vm2541, %v5377, %v4867
      %v5420 = vsel %vm2541, %v5378, %v4869
      %v5421 = vsel %vm2541, %v5379, %v4871
      %v5422 = vsel %vm2541, %v5380, %v4873
      %v5423 = vsel %vm2541, %v5381, %v4875
      %v5424 = vsel %vm2541, %v5382, %v4877
      %v5425 = vsel %vm2541, %v5383, %v4879
      %v5426 = vsel %vm2541, %v5384, %v4881
      %v5427 = vsel %vm2541, %v5385, %v4883
      %v5428 = vsel %vm2541, %v5386, %v4885
      %v5429 = vsel %vm2541, %v5387, %v4887
      %v5430 = vsel %vm2541, %v5388, %v4889
      %v5431 = vsel %vm2541, %v5389, %v4891
      %v5432 = vsel %vm2541, %v5390, %v4893
      %v5433 = vsel %vm2541, %v5391, %v4895
      %v5434 = vsel %vm2541, %v5392, %v4897
      %v5435 = vsel %vm2541, %v5393, %v4899
      %v5436 = vsel %vm2541, %v5394, %v4901
      %v5437 = vsel %vm2541, %v5395, %v4903
      %v5438 = vsel %vm2541, %v5396, %v4905
      %v5439 = vsel %vm2541, %v5397, %v4907
      %v5440 = vsel %vm2541, %v5398, %v4909
      %v5441 = vsel %vm2541, %v5399, %v4911
      %v5442 = vsel %vm2541, %v5400, %v4913
      %v5443 = vsel %vm2541, %v5401, %v4915
      %v5444 = vsel %vm2541, %v5402, %v4917
      %v5445 = vsel %vm2541, %v5403, %v4919
      %v5446 = vsel %vm2541, %v5404, %v4921
      %v5447 = vsel %vm2541, %v5405, %v4923
      %v5448 = vsel %vm2541, %v5406, %v4925
      %v5449 = vsel %vm2541, %v5407, %v4927
      %v5450 = vsel %vm2541, %v5408, %v4929
      %v5451 = vsel %vm2541, %v5409, %v4931
      %v5452 = vsel %vm2541, %v5410, %v2173
      %v5453 = vsel %vm2541, %v5411, %v2173
      %v5454 = vsel %vm2583, %v5412, %v5051
      %v5455 = vsel %vm2583, %v5413, %v5053
      %v5456 = vsel %vm2583, %v5414, %v5055
      %v5457 = vsel %vm2583, %v5415, %v5057
      %v5458 = vsel %vm2583, %v5416, %v5059
      %v5459 = vsel %vm2583, %v5417, %v5061
      %v5460 = vsel %vm2583, %v5418, %v5063
      %v5461 = vsel %vm2583, %v5419, %v5065
      %v5462 = vsel %vm2583, %v5420, %v5067
      %v5463 = vsel %vm2583, %v5421, %v5069
      %v5464 = vsel %vm2583, %v5422, %v5071
      %v5465 = vsel %vm2583, %v5423, %v5073
      %v5466 = vsel %vm2583, %v5424, %v5075
      %v5467 = vsel %vm2583, %v5425, %v5077
      %v5468 = vsel %vm2583, %v5426, %v5079
      %v5469 = vsel %vm2583, %v5427, %v5081
      %v5470 = vsel %vm2583, %v5428, %v5083
      %v5471 = vsel %vm2583, %v5429, %v5085
      %v5472 = vsel %vm2583, %v5430, %v5087
      %v5473 = vsel %vm2583, %v5431, %v5089
      %v5474 = vsel %vm2583, %v5432, %v5091
      %v5475 = vsel %vm2583, %v5433, %v5093
      %v5476 = vsel %vm2583, %v5434, %v5095
      %v5477 = vsel %vm2583, %v5435, %v5097
      %v5478 = vsel %vm2583, %v5436, %v5099
      %v5479 = vsel %vm2583, %v5437, %v5101
      %v5480 = vsel %vm2583, %v5438, %v5103
      %v5481 = vsel %vm2583, %v5439, %v5105
      %v5482 = vsel %vm2583, %v5440, %v5107
      %v5483 = vsel %vm2583, %v5441, %v5109
      %v5484 = vsel %vm2583, %v5442, %v5111
      %v5485 = vsel %vm2583, %v5443, %v5113
      %v5486 = vsel %vm2583, %v5444, %v5115
      %v5487 = vsel %vm2583, %v5445, %v5117
      %v5488 = vsel %vm2583, %v5446, %v5119
      %v5489 = vsel %vm2583, %v5447, %v5121
      %v5490 = vsel %vm2583, %v5448, %v5123
      %v5491 = vsel %vm2583, %v5449, %v5125
      %v5492 = vsel %vm2583, %v5450, %v5127
      %v5493 = vsel %vm2583, %v5451, %v5129
      %v5494 = vsel %vm2583, %v5452, %v2376
      %v5495 = vsel %vm2583, %v5453, %v2376
      %v5496 = vld [vmem:[%s5] sm:$0xff]
      %v5497 = vld [vmem:[%s5 + $0x8] sm:$0xff]
      %v5498 = vld [vmem:[%s5 + $0x10] sm:$0xff]
      %v5499 = vld [vmem:[%s5 + $0x18] sm:$0xff]
      %v5500 = vld [vmem:[%s5 + $0x20] sm:$0xff]
      %v5501 = vld [vmem:[%s5 + $0x28] sm:$0xff]
      %v5502 = vld [vmem:[%s5 + $0x30] sm:$0xff]
      %v5503 = vld [vmem:[%s5 + $0x38] sm:$0xff]
      %v5504 = vld [vmem:[%s5 + $0x40] sm:$0xff]
      %v5505 = vld [vmem:[%s5 + $0x48] sm:$0xff]
      %v5506 = vld [vmem:[%s5 + $0x50] sm:$0xff]
      %v5507 = vld [vmem:[%s5 + $0x58] sm:$0xff]
      %v5508 = vld [vmem:[%s5 + $0x60] sm:$0xff]
      %v5509 = vld [vmem:[%s5 + $0x68] sm:$0xff]
      %v5510 = vld [vmem:[%s5 + $0x70] sm:$0xff]
      %v5511 = vld [vmem:[%s5 + $0x78] sm:$0xff]
      %v5512 = vld [vmem:[%s5 + $0x80] sm:$0xff]
      %v5513 = vld [vmem:[%s5 + $0x88] sm:$0xff]
      %v5514 = vld [vmem:[%s5 + $0x90] sm:$0xff]
      %v5515 = vld [vmem:[%s5 + $0x98] sm:$0xff]
      %v5516 = vld [vmem:[%s5 + $0xa0] sm:$0xff]
      %v5517 = vld [vmem:[%s5 + $0xa8] sm:$0xff]
      %v5518 = vld [vmem:[%s5 + $0xb0] sm:$0xff]
      %v5519 = vld [vmem:[%s5 + $0xb8] sm:$0xff]
      %v5520 = vld [vmem:[%s5 + $0xc0] sm:$0xff]
      %v5521 = vld [vmem:[%s5 + $0xc8] sm:$0xff]
      %v5522 = vld [vmem:[%s5 + $0xd0] sm:$0xff]
      %v5523 = vld [vmem:[%s5 + $0xd8] sm:$0xff]
      %v5524 = vld [vmem:[%s5 + $0xe0] sm:$0xff]
      %v5525 = vld [vmem:[%s5 + $0xe8] sm:$0xff]
      %v5526 = vld [vmem:[%s5 + $0xf0] sm:$0xff]
      %v5527 = vld [vmem:[%s5 + $0xf8] sm:$0xff]
      %v5528 = vld [vmem:[%s5 + $0x100] sm:$0xff]
      %v5529 = vld [vmem:[%s5 + $0x108] sm:$0xff]
      %v5530 = vld [vmem:[%s5 + $0x110] sm:$0xff]
      %v5531 = vld [vmem:[%s5 + $0x118] sm:$0xff]
      %v5532 = vld [vmem:[%s6] sm:$0x1]
      %v5534 = vlaneseq
      %v5535 = vshrl.u32 %v5534, 7
      %v5536 = vsub.s32 0, %v5535
      %v5537 = vrot.slane %v5532, %v5536
      %v5623 = vrot.slane %v5328, 5
      %v5624 = vrot.slane %v5329, 5
      %v5625 = vsel %vm575, %v5623, %v5624
      %v5626 = vrot.slane %v5454, 5
      %v5627 = vrot.slane %v5455, 5
      %v5628 = vsel %vm575, %v5626, %v5627
      %v5629 = vrot.slane %v5170, 5
      %v5630 = vrot.slane %v5172, 5
      %v5631 = vsel %vm575, %v5629, %v5630
      %v5632 = vrot.slane %v5330, 5
      %v5633 = vsel %vm575, %v5624, %v5632
      %v5634 = vrot.slane %v5456, 5
      %v5635 = vsel %vm575, %v5627, %v5634
      %v5636 = vrot.slane %v5174, 5
      %v5637 = vsel %vm575, %v5630, %v5636
      %v5638 = vrot.slane %v5331, 5
      %v5639 = vsel %vm575, %v5632, %v5638
      %v5640 = vrot.slane %v5457, 5
      %v5641 = vsel %vm575, %v5634, %v5640
      %v5642 = vrot.slane %v5176, 5
      %v5643 = vsel %vm575, %v5636, %v5642
      %v5644 = vrot.slane %v5332, 5
      %v5645 = vsel %vm575, %v5638, %v5644
      %v5646 = vrot.slane %v5458, 5
      %v5647 = vsel %vm575, %v5640, %v5646
      %v5648 = vrot.slane %v5178, 5
      %v5649 = vsel %vm575, %v5642, %v5648
      %v5650 = vrot.slane %v5333, 5
      %v5651 = vsel %vm575, %v5644, %v5650
      %v5652 = vrot.slane %v5459, 5
      %v5653 = vsel %vm575, %v5646, %v5652
      %v5654 = vrot.slane %v5180, 5
      %v5655 = vsel %vm575, %v5648, %v5654
      %v5656 = vrot.slane %v5334, 5
      %v5657 = vsel %vm575, %v5650, %v5656
      %v5658 = vrot.slane %v5460, 5
      %v5659 = vsel %vm575, %v5652, %v5658
      %v5660 = vrot.slane %v5182, 5
      %v5661 = vsel %vm575, %v5654, %v5660
      %v5662 = vrot.slane %v5335, 5
      %v5663 = vsel %vm575, %v5656, %v5662
      %v5664 = vrot.slane %v5461, 5
      %v5665 = vsel %vm575, %v5658, %v5664
      %v5666 = vrot.slane %v5184, 5
      %v5667 = vsel %vm575, %v5660, %v5666
      %v5668 = vrot.slane %v5336, 5
      %v5669 = vsel %vm575, %v5662, %v5668
      %v5670 = vrot.slane %v5462, 5
      %v5671 = vsel %vm575, %v5664, %v5670
      %v5672 = vrot.slane %v5186, 5
      %v5673 = vsel %vm575, %v5666, %v5672
      %v5674 = vrot.slane %v5337, 5
      %v5675 = vsel %vm575, %v5668, %v5674
      %v5676 = vrot.slane %v5463, 5
      %v5677 = vsel %vm575, %v5670, %v5676
      %v5678 = vrot.slane %v5188, 5
      %v5679 = vsel %vm575, %v5672, %v5678
      %v5680 = vrot.slane %v5338, 5
      %v5681 = vsel %vm575, %v5674, %v5680
      %v5682 = vrot.slane %v5464, 5
      %v5683 = vsel %vm575, %v5676, %v5682
      %v5684 = vrot.slane %v5190, 5
      %v5685 = vsel %vm575, %v5678, %v5684
      %v5686 = vrot.slane %v5339, 5
      %v5687 = vsel %vm575, %v5680, %v5686
      %v5688 = vrot.slane %v5465, 5
      %v5689 = vsel %vm575, %v5682, %v5688
      %v5690 = vrot.slane %v5192, 5
      %v5691 = vsel %vm575, %v5684, %v5690
      %v5692 = vrot.slane %v5340, 5
      %v5693 = vsel %vm575, %v5686, %v5692
      %v5694 = vrot.slane %v5466, 5
      %v5695 = vsel %vm575, %v5688, %v5694
      %v5696 = vrot.slane %v5194, 5
      %v5697 = vsel %vm575, %v5690, %v5696
      %v5698 = vrot.slane %v5341, 5
      %v5699 = vsel %vm575, %v5692, %v5698
      %v5700 = vrot.slane %v5467, 5
      %v5701 = vsel %vm575, %v5694, %v5700
      %v5702 = vrot.slane %v5196, 5
      %v5703 = vsel %vm575, %v5696, %v5702
      %v5704 = vrot.slane %v5342, 5
      %v5705 = vsel %vm575, %v5698, %v5704
      %v5706 = vrot.slane %v5468, 5
      %v5707 = vsel %vm575, %v5700, %v5706
      %v5708 = vrot.slane %v5198, 5
      %v5709 = vsel %vm575, %v5702, %v5708
      %v5710 = vrot.slane %v5343, 5
      %v5711 = vsel %vm575, %v5704, %v5710
      %v5712 = vrot.slane %v5469, 5
      %v5713 = vsel %vm575, %v5706, %v5712
      %v5714 = vrot.slane %v5200, 5
      %v5715 = vsel %vm575, %v5708, %v5714
      %v5716 = vrot.slane %v5344, 5
      %v5717 = vsel %vm575, %v5710, %v5716
      %v5718 = vrot.slane %v5470, 5
      %v5719 = vsel %vm575, %v5712, %v5718
      %v5720 = vrot.slane %v5202, 5
      %v5721 = vsel %vm575, %v5714, %v5720
      %v5722 = vrot.slane %v5345, 5
      %v5723 = vsel %vm575, %v5716, %v5722
      %v5724 = vrot.slane %v5471, 5
      %v5725 = vsel %vm575, %v5718, %v5724
      %v5726 = vrot.slane %v5204, 5
      %v5727 = vsel %vm575, %v5720, %v5726
      %v5728 = vrot.slane %v5346, 5
      %v5729 = vsel %vm575, %v5722, %v5728
      %v5730 = vrot.slane %v5472, 5
      %v5731 = vsel %vm575, %v5724, %v5730
      %v5732 = vrot.slane %v5206, 5
      %v5733 = vsel %vm575, %v5726, %v5732
      %v5734 = vrot.slane %v5347, 5
      %v5735 = vsel %vm575, %v5728, %v5734
      %v5736 = vrot.slane %v5473, 5
      %v5737 = vsel %vm575, %v5730, %v5736
      %v5738 = vrot.slane %v5208, 5
      %v5739 = vsel %vm575, %v5732, %v5738
      %v5740 = vrot.slane %v5348, 5
      %v5741 = vsel %vm575, %v5734, %v5740
      %v5742 = vrot.slane %v5474, 5
      %v5743 = vsel %vm575, %v5736, %v5742
      %v5744 = vrot.slane %v5210, 5
      %v5745 = vsel %vm575, %v5738, %v5744
      %v5746 = vrot.slane %v5349, 5
      %v5747 = vsel %vm575, %v5740, %v5746
      %v5748 = vrot.slane %v5475, 5
      %v5749 = vsel %vm575, %v5742, %v5748
      %v5750 = vrot.slane %v5212, 5
      %v5751 = vsel %vm575, %v5744, %v5750
      %v5752 = vrot.slane %v5350, 5
      %v5753 = vsel %vm575, %v5746, %v5752
      %v5754 = vrot.slane %v5476, 5
      %v5755 = vsel %vm575, %v5748, %v5754
      %v5756 = vrot.slane %v5214, 5
      %v5757 = vsel %vm575, %v5750, %v5756
      %v5758 = vrot.slane %v5351, 5
      %v5759 = vsel %vm575, %v5752, %v5758
      %v5760 = vrot.slane %v5477, 5
      %v5761 = vsel %vm575, %v5754, %v5760
      %v5762 = vrot.slane %v5216, 5
      %v5763 = vsel %vm575, %v5756, %v5762
      %v5764 = vrot.slane %v5352, 5
      %v5765 = vsel %vm575, %v5758, %v5764
      %v5766 = vrot.slane %v5478, 5
      %v5767 = vsel %vm575, %v5760, %v5766
      %v5768 = vrot.slane %v5218, 5
      %v5769 = vsel %vm575, %v5762, %v5768
      %v5770 = vrot.slane %v5353, 5
      %v5771 = vsel %vm575, %v5764, %v5770
      %v5772 = vrot.slane %v5479, 5
      %v5773 = vsel %vm575, %v5766, %v5772
      %v5774 = vrot.slane %v5220, 5
      %v5775 = vsel %vm575, %v5768, %v5774
      %v5776 = vrot.slane %v5354, 5
      %v5777 = vsel %vm575, %v5770, %v5776
      %v5778 = vrot.slane %v5480, 5
      %v5779 = vsel %vm575, %v5772, %v5778
      %v5780 = vrot.slane %v5222, 5
      %v5781 = vsel %vm575, %v5774, %v5780
      %v5782 = vrot.slane %v5355, 5
      %v5783 = vsel %vm575, %v5776, %v5782
      %v5784 = vrot.slane %v5481, 5
      %v5785 = vsel %vm575, %v5778, %v5784
      %v5786 = vrot.slane %v5224, 5
      %v5787 = vsel %vm575, %v5780, %v5786
      %v5788 = vrot.slane %v5356, 5
      %v5789 = vsel %vm575, %v5782, %v5788
      %v5790 = vrot.slane %v5482, 5
      %v5791 = vsel %vm575, %v5784, %v5790
      %v5792 = vrot.slane %v5226, 5
      %v5793 = vsel %vm575, %v5786, %v5792
      %v5794 = vrot.slane %v5357, 5
      %v5795 = vsel %vm575, %v5788, %v5794
      %v5796 = vrot.slane %v5483, 5
      %v5797 = vsel %vm575, %v5790, %v5796
      %v5798 = vrot.slane %v5228, 5
      %v5799 = vsel %vm575, %v5792, %v5798
      %v5800 = vrot.slane %v5358, 5
      %v5801 = vsel %vm575, %v5794, %v5800
      %v5802 = vrot.slane %v5484, 5
      %v5803 = vsel %vm575, %v5796, %v5802
      %v5804 = vrot.slane %v5230, 5
      %v5805 = vsel %vm575, %v5798, %v5804
      %v5806 = vrot.slane %v5359, 5
      %v5807 = vsel %vm575, %v5800, %v5806
      %v5808 = vrot.slane %v5485, 5
      %v5809 = vsel %vm575, %v5802, %v5808
      %v5810 = vrot.slane %v5232, 5
      %v5811 = vsel %vm575, %v5804, %v5810
      %v5812 = vrot.slane %v5360, 5
      %v5813 = vsel %vm575, %v5806, %v5812
      %v5814 = vrot.slane %v5486, 5
      %v5815 = vsel %vm575, %v5808, %v5814
      %v5816 = vrot.slane %v5234, 5
      %v5817 = vsel %vm575, %v5810, %v5816
      %v5818 = vrot.slane %v5361, 5
      %v5819 = vsel %vm575, %v5812, %v5818
      %v5820 = vrot.slane %v5487, 5
      %v5821 = vsel %vm575, %v5814, %v5820
      %v5822 = vrot.slane %v5236, 5
      %v5823 = vsel %vm575, %v5816, %v5822
      %v5824 = vrot.slane %v5362, 5
      %v5825 = vsel %vm575, %v5818, %v5824
      %v5826 = vrot.slane %v5488, 5
      %v5827 = vsel %vm575, %v5820, %v5826
      %v5828 = vrot.slane %v5238, 5
      %v5829 = vsel %vm575, %v5822, %v5828
      %v5830 = vrot.slane %v5363, 5
      %v5831 = vsel %vm575, %v5824, %v5830
      %v5832 = vrot.slane %v5489, 5
      %v5833 = vsel %vm575, %v5826, %v5832
      %v5834 = vrot.slane %v5240, 5
      %v5835 = vsel %vm575, %v5828, %v5834
      %v5836 = vrot.slane %v5364, 5
      %v5837 = vsel %vm575, %v5830, %v5836
      %v5838 = vrot.slane %v5490, 5
      %v5839 = vsel %vm575, %v5832, %v5838
      %v5840 = vrot.slane %v5242, 5
      %v5841 = vsel %vm575, %v5834, %v5840
      %v5842 = vrot.slane %v5365, 5
      %v5843 = vsel %vm575, %v5836, %v5842
      %v5844 = vrot.slane %v5491, 5
      %v5845 = vsel %vm575, %v5838, %v5844
      %v5846 = vrot.slane %v5244, 5
      %v5847 = vsel %vm575, %v5840, %v5846
      %v5848 = vrot.slane %v5366, 5
      %v5849 = vsel %vm575, %v5842, %v5848
      %v5850 = vrot.slane %v5492, 5
      %v5851 = vsel %vm575, %v5844, %v5850
      %v5852 = vrot.slane %v5246, 5
      %v5853 = vsel %vm575, %v5846, %v5852
      %v5854 = vrot.slane %v5367, 5
      %v5855 = vsel %vm575, %v5848, %v5854
      %v5856 = vrot.slane %v5493, 5
      %v5857 = vsel %vm575, %v5850, %v5856
      %v5858 = vrot.slane %v5247, 5
      %v5859 = vsel %vm575, %v5852, %v5858
      %v5860 = vrot.slane %v5368, 5
      %v5861 = vsel %vm575, %v5854, %v5860
      %v5862 = vrot.slane %v5494, 5
      %v5863 = vsel %vm575, %v5856, %v5862
      %v5864 = vsel %vm575, %v5858, %v3120
      %v5865 = vrot.slane %v5369, 5
      %v5866 = vsel %vm575, %v5860, %v5865
      %v5867 = vrot.slane %v5495, 5
      %v5868 = vsel %vm575, %v5862, %v5867
      %v5951 = vsel %vm2499, %v5631, 0
      %v5953 = vsel %vm2499, %v5637, 0
      %v5955 = vsel %vm2499, %v5643, 0
      %v5957 = vsel %vm2499, %v5649, 0
      %v5959 = vsel %vm2499, %v5655, 0
      %v5961 = vsel %vm2499, %v5661, 0
      %v5963 = vsel %vm2499, %v5667, 0
      %v5965 = vsel %vm2499, %v5673, 0
      %v5967 = vsel %vm2499, %v5679, 0
      %v5969 = vsel %vm2499, %v5685, 0
      %v5971 = vsel %vm2499, %v5691, 0
      %v5973 = vsel %vm2499, %v5697, 0
      %v5975 = vsel %vm2499, %v5703, 0
      %v5977 = vsel %vm2499, %v5709, 0
      %v5979 = vsel %vm2499, %v5715, 0
      %v5981 = vsel %vm2499, %v5721, 0
      %v5983 = vsel %vm2499, %v5727, 0
      %v5985 = vsel %vm2499, %v5733, 0
      %v5987 = vsel %vm2499, %v5739, 0
      %v5989 = vsel %vm2499, %v5745, 0
      %v5991 = vsel %vm2499, %v5751, 0
      %v5993 = vsel %vm2499, %v5757, 0
      %v5995 = vsel %vm2499, %v5763, 0
      %v5997 = vsel %vm2499, %v5769, 0
      %v5999 = vsel %vm2499, %v5775, 0
      %v6001 = vsel %vm2499, %v5781, 0
      %v6003 = vsel %vm2499, %v5787, 0
      %v6005 = vsel %vm2499, %v5793, 0
      %v6007 = vsel %vm2499, %v5799, 0
      %v6009 = vsel %vm2499, %v5805, 0
      %v6011 = vsel %vm2499, %v5811, 0
      %v6013 = vsel %vm2499, %v5817, 0
      %v6015 = vsel %vm2499, %v5823, 0
      %v6017 = vsel %vm2499, %v5829, 0
      %v6019 = vsel %vm2499, %v5835, 0
      %v6021 = vsel %vm2499, %v5841, 0
      %v6023 = vsel %vm2499, %v5847, 0
      %v6025 = vsel %vm2499, %v5853, 0
      %v6027 = vsel %vm2499, %v5859, 0
      %v6029 = vsel %vm2499, %v5864, 0
      %6031 = vmatprep.subr.mxu0 0.0
      %6032 = vmatpush1.msra.mxu0 %v5511
      %6033 = vmatprep.subr.mxu0 0.0
      %6034 = vmatpush1.msra.mxu0 %v5510
      %6035 = vmatprep.subr.mxu0 0.0
      %6036 = vmatpush1.msra.mxu0 %v5509
      %6037 = vmatprep.subr.mxu0 0.0
      %6038 = vmatpush1.msra.mxu0 %v5508
      %6039 = vmatprep.subr.mxu0 0.0
      %6040 = vmatpush1.msra.mxu0 %v5507
      %6041 = vmatprep.subr.mxu0 0.0
      %6042 = vmatpush1.msra.mxu0 %v5506
      %6043 = vmatprep.subr.mxu0 0.0
      %6044 = vmatpush1.msra.mxu0 %v5505
      %6045 = vmatprep.subr.mxu0 0.0
      %6046 = vmatpush1.msra.mxu0 %v5504
      %6047 = vmatprep.subr.mxu0 0.0
      %6048 = vmatpush1.msra.mxu0 %v5503
      %6049 = vmatprep.subr.mxu0 0.0
      %6050 = vmatpush1.msra.mxu0 %v5502
      %6051 = vmatprep.subr.mxu0 0.0
      %6052 = vmatpush1.msra.mxu0 %v5501
      %6053 = vmatprep.subr.mxu0 0.0
      %6054 = vmatpush1.msra.mxu0 %v5500
      %6055 = vmatprep.subr.mxu0 0.0
      %6056 = vmatpush1.msra.mxu0 %v5499
      %6057 = vmatprep.subr.mxu0 0.0
      %6058 = vmatpush1.msra.mxu0 %v5498
      %6059 = vmatprep.subr.mxu0 0.0
      %6060 = vmatpush1.msra.mxu0 %v5497
      %6061 = vmatprep.subr.mxu0 0.0
      %6062 = vmatpush1.msra.mxu0 %v5496
      %6063 = vmatprep.subr.mxu0 0.0
      %6064 = vmatpush2.msra.mxu0 %v5527
      %6065 = vmatprep.subr.mxu0 0.0
      %6066 = vmatpush2.msra.mxu0 %v5526
      %6067 = vmatprep.subr.mxu0 0.0
      %6068 = vmatpush2.msra.mxu0 %v5525
      %6069 = vmatprep.subr.mxu0 0.0
      %6070 = vmatpush2.msra.mxu0 %v5524
      %6071 = vmatprep.subr.mxu0 0.0
      %6072 = vmatpush2.msra.mxu0 %v5523
      %6073 = vmatprep.subr.mxu0 0.0
      %6074 = vmatpush2.msra.mxu0 %v5522
      %6075 = vmatprep.subr.mxu0 0.0
      %6076 = vmatpush2.msra.mxu0 %v5521
      %6077 = vmatprep.subr.mxu0 0.0
      %6078 = vmatpush2.msra.mxu0 %v5520
      %6079 = vmatprep.subr.mxu0 0.0
      %6080 = vmatpush2.msra.mxu0 %v5519
      %6081 = vmatprep.subr.mxu0 0.0
      %6082 = vmatpush2.msra.mxu0 %v5518
      %6083 = vmatprep.subr.mxu0 0.0
      %6084 = vmatpush2.msra.mxu0 %v5517
      %6085 = vmatprep.subr.mxu0 0.0
      %6086 = vmatpush2.msra.mxu0 %v5516
      %6087 = vmatprep.subr.mxu0 0.0
      %6088 = vmatpush2.msra.mxu0 %v5515
      %6089 = vmatprep.subr.mxu0 0.0
      %6090 = vmatpush2.msra.mxu0 %v5514
      %6091 = vmatprep.subr.mxu0 0.0
      %6092 = vmatpush2.msra.mxu0 %v5513
      %6093 = vmatprep.subr.mxu0 0.0
      %6094 = vmatpush2.msra.mxu0 %v5512
      %6095 = vmatprep.mubr.f32.mxu0 %v5628
      %6096 = vmatmul.mubr.f32.gmra.mxu0 %v5625
      %v6097 = vpop.f32.mrf.mxu0
      %v6098 = vadd.f32 %v5537, %v6097
      %v6099 = vpop.f32.mrf.mxu0
      %6100 = vmatprep.mubr.f32.mxu0 %v5635
      %6101 = vmatmul.mubr.f32.gmra.mxu0 %v5633
      %v6102 = vpop.f32.mrf.mxu0
      %v6103 = vadd.f32 %v5537, %v6102
      %v6104 = vpop.f32.mrf.mxu0
      %6105 = vmatprep.mubr.f32.mxu0 %v5641
      %6106 = vmatmul.mubr.f32.gmra.mxu0 %v5639
      %v6107 = vpop.f32.mrf.mxu0
      %v6108 = vadd.f32 %v5537, %v6107
      %v6109 = vpop.f32.mrf.mxu0
      %6110 = vmatprep.mubr.f32.mxu0 %v5647
      %6111 = vmatmul.mubr.f32.gmra.mxu0 %v5645
      %v6112 = vpop.f32.mrf.mxu0
      %v6113 = vadd.f32 %v5537, %v6112
      %v6114 = vpop.f32.mrf.mxu0
      %6115 = vmatprep.mubr.f32.mxu0 %v5653
      %6116 = vmatmul.mubr.f32.gmra.mxu0 %v5651
      %v6117 = vpop.f32.mrf.mxu0
      %v6118 = vadd.f32 %v5537, %v6117
      %v6119 = vpop.f32.mrf.mxu0
      %6120 = vmatprep.mubr.f32.mxu0 %v5659
      %6121 = vmatmul.mubr.f32.gmra.mxu0 %v5657
      %v6122 = vpop.f32.mrf.mxu0
      %v6123 = vadd.f32 %v5537, %v6122
      %v6124 = vpop.f32.mrf.mxu0
      %6125 = vmatprep.mubr.f32.mxu0 %v5665
      %6126 = vmatmul.mubr.f32.gmra.mxu0 %v5663
      %v6127 = vpop.f32.mrf.mxu0
      %v6128 = vadd.f32 %v5537, %v6127
      %v6129 = vpop.f32.mrf.mxu0
      %6130 = vmatprep.mubr.f32.mxu0 %v5671
      %6131 = vmatmul.mubr.f32.gmra.mxu0 %v5669
      %v6132 = vpop.f32.mrf.mxu0
      %v6133 = vadd.f32 %v5537, %v6132
      %v6134 = vpop.f32.mrf.mxu0
      %6135 = vmatprep.mubr.f32.mxu0 %v5677
      %6136 = vmatmul.mubr.f32.gmra.mxu0 %v5675
      %v6137 = vpop.f32.mrf.mxu0
      %v6138 = vadd.f32 %v5537, %v6137
      %v6139 = vpop.f32.mrf.mxu0
      %6140 = vmatprep.mubr.f32.mxu0 %v5683
      %6141 = vmatmul.mubr.f32.gmra.mxu0 %v5681
      %v6142 = vpop.f32.mrf.mxu0
      %v6143 = vadd.f32 %v5537, %v6142
      %v6144 = vpop.f32.mrf.mxu0
      %6145 = vmatprep.mubr.f32.mxu0 %v5689
      %6146 = vmatmul.mubr.f32.gmra.mxu0 %v5687
      %v6147 = vpop.f32.mrf.mxu0
      %v6148 = vadd.f32 %v5537, %v6147
      %v6149 = vpop.f32.mrf.mxu0
      %6150 = vmatprep.mubr.f32.mxu0 %v5695
      %6151 = vmatmul.mubr.f32.gmra.mxu0 %v5693
      %v6152 = vpop.f32.mrf.mxu0
      %v6153 = vadd.f32 %v5537, %v6152
      %v6154 = vpop.f32.mrf.mxu0
      %6155 = vmatprep.mubr.f32.mxu0 %v5701
      %6156 = vmatmul.mubr.f32.gmra.mxu0 %v5699
      %v6157 = vpop.f32.mrf.mxu0
      %v6158 = vadd.f32 %v5537, %v6157
      %v6159 = vpop.f32.mrf.mxu0
      %6160 = vmatprep.mubr.f32.mxu0 %v5707
      %6161 = vmatmul.mubr.f32.gmra.mxu0 %v5705
      %v6162 = vpop.f32.mrf.mxu0
      %v6163 = vadd.f32 %v5537, %v6162
      %v6164 = vpop.f32.mrf.mxu0
      %6165 = vmatprep.mubr.f32.mxu0 %v5713
      %6166 = vmatmul.mubr.f32.gmra.mxu0 %v5711
      %v6167 = vpop.f32.mrf.mxu0
      %v6168 = vadd.f32 %v5537, %v6167
      %v6169 = vpop.f32.mrf.mxu0
      %6170 = vmatprep.mubr.f32.mxu0 %v5719
      %6171 = vmatmul.mubr.f32.gmra.mxu0 %v5717
      %v6172 = vpop.f32.mrf.mxu0
      %v6173 = vadd.f32 %v5537, %v6172
      %v6174 = vpop.f32.mrf.mxu0
      %6175 = vmatprep.mubr.f32.mxu0 %v5725
      %6176 = vmatmul.mubr.f32.gmra.mxu0 %v5723
      %v6177 = vpop.f32.mrf.mxu0
      %v6178 = vadd.f32 %v5537, %v6177
      %v6179 = vpop.f32.mrf.mxu0
      %6180 = vmatprep.mubr.f32.mxu0 %v5731
      %6181 = vmatmul.mubr.f32.gmra.mxu0 %v5729
      %v6182 = vpop.f32.mrf.mxu0
      %v6183 = vadd.f32 %v5537, %v6182
      %v6184 = vpop.f32.mrf.mxu0
      %6185 = vmatprep.mubr.f32.mxu0 %v5737
      %6186 = vmatmul.mubr.f32.gmra.mxu0 %v5735
      %v6187 = vpop.f32.mrf.mxu0
      %v6188 = vadd.f32 %v5537, %v6187
      %v6189 = vpop.f32.mrf.mxu0
      %6190 = vmatprep.mubr.f32.mxu0 %v5743
      %6191 = vmatmul.mubr.f32.gmra.mxu0 %v5741
      %v6192 = vpop.f32.mrf.mxu0
      %v6193 = vadd.f32 %v5537, %v6192
      %v6194 = vpop.f32.mrf.mxu0
      %6195 = vmatprep.mubr.f32.mxu0 %v5749
      %6196 = vmatmul.mubr.f32.gmra.mxu0 %v5747
      %v6197 = vpop.f32.mrf.mxu0
      %v6198 = vadd.f32 %v5537, %v6197
      %v6199 = vpop.f32.mrf.mxu0
      %6200 = vmatprep.mubr.f32.mxu0 %v5755
      %6201 = vmatmul.mubr.f32.gmra.mxu0 %v5753
      %v6202 = vpop.f32.mrf.mxu0
      %v6203 = vadd.f32 %v5537, %v6202
      %v6204 = vpop.f32.mrf.mxu0
      %6205 = vmatprep.mubr.f32.mxu0 %v5761
      %6206 = vmatmul.mubr.f32.gmra.mxu0 %v5759
      %v6207 = vpop.f32.mrf.mxu0
      %v6208 = vadd.f32 %v5537, %v6207
      %v6209 = vpop.f32.mrf.mxu0
      %6210 = vmatprep.mubr.f32.mxu0 %v5767
      %6211 = vmatmul.mubr.f32.gmra.mxu0 %v5765
      %v6212 = vpop.f32.mrf.mxu0
      %v6213 = vadd.f32 %v5537, %v6212
      %v6214 = vpop.f32.mrf.mxu0
      %6215 = vmatprep.mubr.f32.mxu0 %v5773
      %6216 = vmatmul.mubr.f32.gmra.mxu0 %v5771
      %v6217 = vpop.f32.mrf.mxu0
      %v6218 = vadd.f32 %v5537, %v6217
      %v6219 = vpop.f32.mrf.mxu0
      %6220 = vmatprep.mubr.f32.mxu0 %v5779
      %6221 = vmatmul.mubr.f32.gmra.mxu0 %v5777
      %v6222 = vpop.f32.mrf.mxu0
      %v6223 = vadd.f32 %v5537, %v6222
      %v6224 = vpop.f32.mrf.mxu0
      %6225 = vmatprep.mubr.f32.mxu0 %v5785
      %6226 = vmatmul.mubr.f32.gmra.mxu0 %v5783
      %v6227 = vpop.f32.mrf.mxu0
      %v6228 = vadd.f32 %v5537, %v6227
      %v6229 = vpop.f32.mrf.mxu0
      %6230 = vmatprep.mubr.f32.mxu0 %v5791
      %6231 = vmatmul.mubr.f32.gmra.mxu0 %v5789
      %v6232 = vpop.f32.mrf.mxu0
      %v6233 = vadd.f32 %v5537, %v6232
      %v6234 = vpop.f32.mrf.mxu0
      %6235 = vmatprep.mubr.f32.mxu0 %v5797
      %6236 = vmatmul.mubr.f32.gmra.mxu0 %v5795
      %v6237 = vpop.f32.mrf.mxu0
      %v6238 = vadd.f32 %v5537, %v6237
      %v6239 = vpop.f32.mrf.mxu0
      %6240 = vmatprep.mubr.f32.mxu0 %v5803
      %6241 = vmatmul.mubr.f32.gmra.mxu0 %v5801
      %v6242 = vpop.f32.mrf.mxu0
      %v6243 = vadd.f32 %v5537, %v6242
      %v6244 = vpop.f32.mrf.mxu0
      %6245 = vmatprep.mubr.f32.mxu0 %v5809
      %6246 = vmatmul.mubr.f32.gmra.mxu0 %v5807
      %v6247 = vpop.f32.mrf.mxu0
      %v6248 = vadd.f32 %v5537, %v6247
      %v6249 = vpop.f32.mrf.mxu0
      %6250 = vmatprep.mubr.f32.mxu0 %v5815
      %6251 = vmatmul.mubr.f32.gmra.mxu0 %v5813
      %v6252 = vpop.f32.mrf.mxu0
      %v6253 = vadd.f32 %v5537, %v6252
      %v6254 = vpop.f32.mrf.mxu0
      %6255 = vmatprep.mubr.f32.mxu0 %v5821
      %6256 = vmatmul.mubr.f32.gmra.mxu0 %v5819
      %v6257 = vpop.f32.mrf.mxu0
      %v6258 = vadd.f32 %v5537, %v6257
      %v6259 = vpop.f32.mrf.mxu0
      %6260 = vmatprep.mubr.f32.mxu0 %v5827
      %6261 = vmatmul.mubr.f32.gmra.mxu0 %v5825
      %v6262 = vpop.f32.mrf.mxu0
      %v6263 = vadd.f32 %v5537, %v6262
      %v6264 = vpop.f32.mrf.mxu0
      %6265 = vmatprep.mubr.f32.mxu0 %v5833
      %6266 = vmatmul.mubr.f32.gmra.mxu0 %v5831
      %v6267 = vpop.f32.mrf.mxu0
      %v6268 = vadd.f32 %v5537, %v6267
      %v6269 = vpop.f32.mrf.mxu0
      %6270 = vmatprep.mubr.f32.mxu0 %v5839
      %6271 = vmatmul.mubr.f32.gmra.mxu0 %v5837
      %v6272 = vpop.f32.mrf.mxu0
      %v6273 = vadd.f32 %v5537, %v6272
      %v6274 = vpop.f32.mrf.mxu0
      %6275 = vmatprep.mubr.f32.mxu0 %v5845
      %6276 = vmatmul.mubr.f32.gmra.mxu0 %v5843
      %v6277 = vpop.f32.mrf.mxu0
      %v6278 = vadd.f32 %v5537, %v6277
      %v6279 = vpop.f32.mrf.mxu0
      %6280 = vmatprep.mubr.f32.mxu0 %v5851
      %6281 = vmatmul.mubr.f32.gmra.mxu0 %v5849
      %v6282 = vpop.f32.mrf.mxu0
      %v6283 = vadd.f32 %v5537, %v6282
      %v6284 = vpop.f32.mrf.mxu0
      %6285 = vmatprep.mubr.f32.mxu0 %v5857
      %6286 = vmatmul.mubr.f32.gmra.mxu0 %v5855
      %v6287 = vpop.f32.mrf.mxu0
      %v6288 = vadd.f32 %v5537, %v6287
      %v6289 = vpop.f32.mrf.mxu0
      %6290 = vmatprep.mubr.f32.mxu0 %v5863
      %6291 = vmatmul.mubr.f32.gmra.mxu0 %v5861
      %v6292 = vpop.f32.mrf.mxu0
      %v6293 = vadd.f32 %v5537, %v6292
      %v6294 = vpop.f32.mrf.mxu0
      %6295 = vmatprep.mubr.f32.mxu0 %v5868
      %6296 = vmatmul.mubr.f32.gmra.mxu0 %v5866
      %v6297 = vpop.f32.mrf.mxu0
      %v6298 = vadd.f32 %v5537, %v6297
      %v6299 = vpop.f32.mrf.mxu0
      %6300 = vdwg.mxu0
      %6301 = vmatprep.subr.mxu0 0.0
      %6302 = vmatpush1.msra.mxu0 0.0
      %6303 = vmatprep.subr.mxu0 0.0
      %6304 = vmatpush1.msra.mxu0 0.0
      %6305 = vmatprep.subr.mxu0 0.0
      %6306 = vmatpush1.msra.mxu0 0.0
      %6307 = vmatprep.subr.mxu0 0.0
      %6308 = vmatpush1.msra.mxu0 0.0
      %6309 = vmatprep.subr.mxu0 0.0
      %6310 = vmatpush1.msra.mxu0 0.0
      %6311 = vmatprep.subr.mxu0 0.0
      %6312 = vmatpush1.msra.mxu0 0.0
      %6313 = vmatprep.subr.mxu0 0.0
      %6314 = vmatpush1.msra.mxu0 0.0
      %6315 = vmatprep.subr.mxu0 0.0
      %6316 = vmatpush1.msra.mxu0 0.0
      %6317 = vmatprep.subr.mxu0 0.0
      %6318 = vmatpush1.msra.mxu0 0.0
      %6319 = vmatprep.subr.mxu0 0.0
      %6320 = vmatpush1.msra.mxu0 0.0
      %6321 = vmatprep.subr.mxu0 0.0
      %6322 = vmatpush1.msra.mxu0 0.0
      %6323 = vmatprep.subr.mxu0 0.0
      %6324 = vmatpush1.msra.mxu0 0.0
      %6325 = vmatprep.subr.mxu0 0.0
      %6326 = vmatpush1.msra.mxu0 %v5531
      %6327 = vmatprep.subr.mxu0 0.0
      %6328 = vmatpush1.msra.mxu0 %v5530
      %6329 = vmatprep.subr.mxu0 0.0
      %6330 = vmatpush1.msra.mxu0 %v5529
      %6331 = vmatprep.subr.mxu0 0.0
      %6332 = vmatpush1.msra.mxu0 %v5528
      %6333 = vmatprep.subr.mxu0 0.0
      %6334 = vmatpush2.msra.mxu0 0.0
      %6335 = vmatprep.subr.mxu0 0.0
      %6336 = vmatpush2.msra.mxu0 0.0
      %6337 = vmatprep.subr.mxu0 0.0
      %6338 = vmatpush2.msra.mxu0 0.0
      %6339 = vmatprep.subr.mxu0 0.0
      %6340 = vmatpush2.msra.mxu0 0.0
      %6341 = vmatprep.subr.mxu0 0.0
      %6342 = vmatpush2.msra.mxu0 0.0
      %6343 = vmatprep.subr.mxu0 0.0
      %6344 = vmatpush2.msra.mxu0 0.0
      %6345 = vmatprep.subr.mxu0 0.0
      %6346 = vmatpush2.msra.mxu0 0.0
      %6347 = vmatprep.subr.mxu0 0.0
      %6348 = vmatpush2.msra.mxu0 0.0
      %6349 = vmatprep.subr.mxu0 0.0
      %6350 = vmatpush2.msra.mxu0 0.0
      %6351 = vmatprep.subr.mxu0 0.0
      %6352 = vmatpush2.msra.mxu0 0.0
      %6353 = vmatprep.subr.mxu0 0.0
      %6354 = vmatpush2.msra.mxu0 0.0
      %6355 = vmatprep.subr.mxu0 0.0
      %6356 = vmatpush2.msra.mxu0 0.0
      %6357 = vmatprep.subr.mxu0 0.0
      %6358 = vmatpush2.msra.mxu0 0.0
      %6359 = vmatprep.subr.mxu0 0.0
      %6360 = vmatpush2.msra.mxu0 0.0
      %6361 = vmatprep.subr.mxu0 0.0
      %6362 = vmatpush2.msra.mxu0 0.0
      %6363 = vmatprep.subr.mxu0 0.0
      %6364 = vmatpush2.msra.mxu0 0.0
      %6365 = vmatprep.mubr.f32.mxu0 0.0
      %6366 = vmatmul.mubr.f32.gmra.mxu0 %v5951
      %v6367 = vpop.f32.mrf.mxu0
      %v6368 = vadd.f32 %v6098, %v6367
      %v6369 = vpop.f32.mrf.mxu0
      %6370 = vmatprep.mubr.f32.mxu0 0.0
      %6371 = vmatmul.mubr.f32.gmra.mxu0 %v5953
      %v6372 = vpop.f32.mrf.mxu0
      %v6373 = vadd.f32 %v6103, %v6372
      %v6374 = vpop.f32.mrf.mxu0
      %6375 = vmatprep.mubr.f32.mxu0 0.0
      %6376 = vmatmul.mubr.f32.gmra.mxu0 %v5955
      %v6377 = vpop.f32.mrf.mxu0
      %v6378 = vadd.f32 %v6108, %v6377
      %v6379 = vpop.f32.mrf.mxu0
      %6380 = vmatprep.mubr.f32.mxu0 0.0
      %6381 = vmatmul.mubr.f32.gmra.mxu0 %v5957
      %v6382 = vpop.f32.mrf.mxu0
      %v6383 = vadd.f32 %v6113, %v6382
      %v6384 = vpop.f32.mrf.mxu0
      %6385 = vmatprep.mubr.f32.mxu0 0.0
      %6386 = vmatmul.mubr.f32.gmra.mxu0 %v5959
      %v6387 = vpop.f32.mrf.mxu0
      %v6388 = vadd.f32 %v6118, %v6387
      %v6389 = vpop.f32.mrf.mxu0
      %6390 = vmatprep.mubr.f32.mxu0 0.0
      %6391 = vmatmul.mubr.f32.gmra.mxu0 %v5961
      %v6392 = vpop.f32.mrf.mxu0
      %v6393 = vadd.f32 %v6123, %v6392
      %v6394 = vpop.f32.mrf.mxu0
      %6395 = vmatprep.mubr.f32.mxu0 0.0
      %6396 = vmatmul.mubr.f32.gmra.mxu0 %v5963
      %v6397 = vpop.f32.mrf.mxu0
      %v6398 = vadd.f32 %v6128, %v6397
      %v6399 = vpop.f32.mrf.mxu0
      %6400 = vmatprep.mubr.f32.mxu0 0.0
      %6401 = vmatmul.mubr.f32.gmra.mxu0 %v5965
      %v6402 = vpop.f32.mrf.mxu0
      %v6403 = vadd.f32 %v6133, %v6402
      %v6404 = vpop.f32.mrf.mxu0
      %6405 = vmatprep.mubr.f32.mxu0 0.0
      %6406 = vmatmul.mubr.f32.gmra.mxu0 %v5967
      %v6407 = vpop.f32.mrf.mxu0
      %v6408 = vadd.f32 %v6138, %v6407
      %v6409 = vpop.f32.mrf.mxu0
      %6410 = vmatprep.mubr.f32.mxu0 0.0
      %6411 = vmatmul.mubr.f32.gmra.mxu0 %v5969
      %v6412 = vpop.f32.mrf.mxu0
      %v6413 = vadd.f32 %v6143, %v6412
      %v6414 = vpop.f32.mrf.mxu0
      %6415 = vmatprep.mubr.f32.mxu0 0.0
      %6416 = vmatmul.mubr.f32.gmra.mxu0 %v5971
      %v6417 = vpop.f32.mrf.mxu0
      %v6418 = vadd.f32 %v6148, %v6417
      %v6419 = vpop.f32.mrf.mxu0
      %6420 = vmatprep.mubr.f32.mxu0 0.0
      %6421 = vmatmul.mubr.f32.gmra.mxu0 %v5973
      %v6422 = vpop.f32.mrf.mxu0
      %v6423 = vadd.f32 %v6153, %v6422
      %v6424 = vpop.f32.mrf.mxu0
      %6425 = vmatprep.mubr.f32.mxu0 0.0
      %6426 = vmatmul.mubr.f32.gmra.mxu0 %v5975
      %v6427 = vpop.f32.mrf.mxu0
      %v6428 = vadd.f32 %v6158, %v6427
      %v6429 = vpop.f32.mrf.mxu0
      %6430 = vmatprep.mubr.f32.mxu0 0.0
      %6431 = vmatmul.mubr.f32.gmra.mxu0 %v5977
      %v6432 = vpop.f32.mrf.mxu0
      %v6433 = vadd.f32 %v6163, %v6432
      %v6434 = vpop.f32.mrf.mxu0
      %6435 = vmatprep.mubr.f32.mxu0 0.0
      %6436 = vmatmul.mubr.f32.gmra.mxu0 %v5979
      %v6437 = vpop.f32.mrf.mxu0
      %v6438 = vadd.f32 %v6168, %v6437
      %v6439 = vpop.f32.mrf.mxu0
      %6440 = vmatprep.mubr.f32.mxu0 0.0
      %6441 = vmatmul.mubr.f32.gmra.mxu0 %v5981
      %v6442 = vpop.f32.mrf.mxu0
      %v6443 = vadd.f32 %v6173, %v6442
      %v6444 = vpop.f32.mrf.mxu0
      %6445 = vmatprep.mubr.f32.mxu0 0.0
      %6446 = vmatmul.mubr.f32.gmra.mxu0 %v5983
      %v6447 = vpop.f32.mrf.mxu0
      %v6448 = vadd.f32 %v6178, %v6447
      %v6449 = vpop.f32.mrf.mxu0
      %6450 = vmatprep.mubr.f32.mxu0 0.0
      %6451 = vmatmul.mubr.f32.gmra.mxu0 %v5985
      %v6452 = vpop.f32.mrf.mxu0
      %v6453 = vadd.f32 %v6183, %v6452
      %v6454 = vpop.f32.mrf.mxu0
      %6455 = vmatprep.mubr.f32.mxu0 0.0
      %6456 = vmatmul.mubr.f32.gmra.mxu0 %v5987
      %v6457 = vpop.f32.mrf.mxu0
      %v6458 = vadd.f32 %v6188, %v6457
      %v6459 = vpop.f32.mrf.mxu0
      %6460 = vmatprep.mubr.f32.mxu0 0.0
      %6461 = vmatmul.mubr.f32.gmra.mxu0 %v5989
      %v6462 = vpop.f32.mrf.mxu0
      %v6463 = vadd.f32 %v6193, %v6462
      %v6464 = vpop.f32.mrf.mxu0
      %6465 = vmatprep.mubr.f32.mxu0 0.0
      %6466 = vmatmul.mubr.f32.gmra.mxu0 %v5991
      %v6467 = vpop.f32.mrf.mxu0
      %v6468 = vadd.f32 %v6198, %v6467
      %v6469 = vpop.f32.mrf.mxu0
      %6470 = vmatprep.mubr.f32.mxu0 0.0
      %6471 = vmatmul.mubr.f32.gmra.mxu0 %v5993
      %v6472 = vpop.f32.mrf.mxu0
      %v6473 = vadd.f32 %v6203, %v6472
      %v6474 = vpop.f32.mrf.mxu0
      %6475 = vmatprep.mubr.f32.mxu0 0.0
      %6476 = vmatmul.mubr.f32.gmra.mxu0 %v5995
      %v6477 = vpop.f32.mrf.mxu0
      %v6478 = vadd.f32 %v6208, %v6477
      %v6479 = vpop.f32.mrf.mxu0
      %6480 = vmatprep.mubr.f32.mxu0 0.0
      %6481 = vmatmul.mubr.f32.gmra.mxu0 %v5997
      %v6482 = vpop.f32.mrf.mxu0
      %v6483 = vadd.f32 %v6213, %v6482
      %v6484 = vpop.f32.mrf.mxu0
      %6485 = vmatprep.mubr.f32.mxu0 0.0
      %6486 = vmatmul.mubr.f32.gmra.mxu0 %v5999
      %v6487 = vpop.f32.mrf.mxu0
      %v6488 = vadd.f32 %v6218, %v6487
      %v6489 = vpop.f32.mrf.mxu0
      %6490 = vmatprep.mubr.f32.mxu0 0.0
      %6491 = vmatmul.mubr.f32.gmra.mxu0 %v6001
      %v6492 = vpop.f32.mrf.mxu0
      %v6493 = vadd.f32 %v6223, %v6492
      %v6494 = vpop.f32.mrf.mxu0
      %6495 = vmatprep.mubr.f32.mxu0 0.0
      %6496 = vmatmul.mubr.f32.gmra.mxu0 %v6003
      %v6497 = vpop.f32.mrf.mxu0
      %v6498 = vadd.f32 %v6228, %v6497
      %v6499 = vpop.f32.mrf.mxu0
      %6500 = vmatprep.mubr.f32.mxu0 0.0
      %6501 = vmatmul.mubr.f32.gmra.mxu0 %v6005
      %v6502 = vpop.f32.mrf.mxu0
      %v6503 = vadd.f32 %v6233, %v6502
      %v6504 = vpop.f32.mrf.mxu0
      %6505 = vmatprep.mubr.f32.mxu0 0.0
      %6506 = vmatmul.mubr.f32.gmra.mxu0 %v6007
      %v6507 = vpop.f32.mrf.mxu0
      %v6508 = vadd.f32 %v6238, %v6507
      %v6509 = vpop.f32.mrf.mxu0
      %6510 = vmatprep.mubr.f32.mxu0 0.0
      %6511 = vmatmul.mubr.f32.gmra.mxu0 %v6009
      %v6512 = vpop.f32.mrf.mxu0
      %v6513 = vadd.f32 %v6243, %v6512
      %v6514 = vpop.f32.mrf.mxu0
      %6515 = vmatprep.mubr.f32.mxu0 0.0
      %6516 = vmatmul.mubr.f32.gmra.mxu0 %v6011
      %v6517 = vpop.f32.mrf.mxu0
      %v6518 = vadd.f32 %v6248, %v6517
      %v6519 = vpop.f32.mrf.mxu0
      %6520 = vmatprep.mubr.f32.mxu0 0.0
      %6521 = vmatmul.mubr.f32.gmra.mxu0 %v6013
      %v6522 = vpop.f32.mrf.mxu0
      %v6523 = vadd.f32 %v6253, %v6522
      %v6524 = vpop.f32.mrf.mxu0
      %6525 = vmatprep.mubr.f32.mxu0 0.0
      %6526 = vmatmul.mubr.f32.gmra.mxu0 %v6015
      %v6527 = vpop.f32.mrf.mxu0
      %v6528 = vadd.f32 %v6258, %v6527
      %v6529 = vpop.f32.mrf.mxu0
      %6530 = vmatprep.mubr.f32.mxu0 0.0
      %6531 = vmatmul.mubr.f32.gmra.mxu0 %v6017
      %v6532 = vpop.f32.mrf.mxu0
      %v6533 = vadd.f32 %v6263, %v6532
      %v6534 = vpop.f32.mrf.mxu0
      %6535 = vmatprep.mubr.f32.mxu0 0.0
      %6536 = vmatmul.mubr.f32.gmra.mxu0 %v6019
      %v6537 = vpop.f32.mrf.mxu0
      %v6538 = vadd.f32 %v6268, %v6537
      %v6539 = vpop.f32.mrf.mxu0
      %6540 = vmatprep.mubr.f32.mxu0 0.0
      %6541 = vmatmul.mubr.f32.gmra.mxu0 %v6021
      %v6542 = vpop.f32.mrf.mxu0
      %v6543 = vadd.f32 %v6273, %v6542
      %v6544 = vpop.f32.mrf.mxu0
      %6545 = vmatprep.mubr.f32.mxu0 0.0
      %6546 = vmatmul.mubr.f32.gmra.mxu0 %v6023
      %v6547 = vpop.f32.mrf.mxu0
      %v6548 = vadd.f32 %v6278, %v6547
      %v6549 = vpop.f32.mrf.mxu0
      %6550 = vmatprep.mubr.f32.mxu0 0.0
      %6551 = vmatmul.mubr.f32.gmra.mxu0 %v6025
      %v6552 = vpop.f32.mrf.mxu0
      %v6553 = vadd.f32 %v6283, %v6552
      %v6554 = vpop.f32.mrf.mxu0
      %6555 = vmatprep.mubr.f32.mxu0 0.0
      %6556 = vmatmul.mubr.f32.gmra.mxu0 %v6027
      %v6557 = vpop.f32.mrf.mxu0
      %v6558 = vadd.f32 %v6288, %v6557
      %v6559 = vpop.f32.mrf.mxu0
      %6560 = vmatprep.mubr.f32.mxu0 0.0
      %6561 = vmatmul.mubr.f32.gmra.mxu0 %v6029
      %v6562 = vpop.f32.mrf.mxu0
      %v6563 = vadd.f32 %v6293, %v6562
      %v6564 = vpop.f32.mrf.mxu0
      %6565 = vmatprep.mubr.f32.mxu0 0.0
      %6566 = vmatmul.mubr.f32.gmra.mxu0 %v3289
      %v6567 = vpop.f32.mrf.mxu0
      %v6568 = vadd.f32 %v6298, %v6567
      %v6569 = vpop.f32.mrf.mxu0
      %6570 = vdwg.mxu0
      %v6571 = vmul.f32 %v6368, 0.01
      %v6572 = vmul.f32 %v6373, 0.01
      %v6573 = vmul.f32 %v6378, 0.01
      %v6574 = vmul.f32 %v6383, 0.01
      %v6575 = vmul.f32 %v6388, 0.01
      %v6576 = vmul.f32 %v6393, 0.01
      %v6577 = vmul.f32 %v6398, 0.01
      %v6578 = vmul.f32 %v6403, 0.01
      %v6579 = vmul.f32 %v6408, 0.01
      %v6580 = vmul.f32 %v6413, 0.01
      %v6581 = vmul.f32 %v6418, 0.01
      %v6582 = vmul.f32 %v6423, 0.01
      %v6583 = vmul.f32 %v6428, 0.01
      %v6584 = vmul.f32 %v6433, 0.01
      %v6585 = vmul.f32 %v6438, 0.01
      %v6586 = vmul.f32 %v6443, 0.01
      %v6587 = vmul.f32 %v6448, 0.01
      %v6588 = vmul.f32 %v6453, 0.01
      %v6589 = vmul.f32 %v6458, 0.01
      %v6590 = vmul.f32 %v6463, 0.01
      %v6591 = vmul.f32 %v6468, 0.01
      %v6592 = vmul.f32 %v6473, 0.01
      %v6593 = vmul.f32 %v6478, 0.01
      %v6594 = vmul.f32 %v6483, 0.01
      %v6595 = vmul.f32 %v6488, 0.01
      %v6596 = vmul.f32 %v6493, 0.01
      %v6597 = vmul.f32 %v6498, 0.01
      %v6598 = vmul.f32 %v6503, 0.01
      %v6599 = vmul.f32 %v6508, 0.01
      %v6600 = vmul.f32 %v6513, 0.01
      %v6601 = vmul.f32 %v6518, 0.01
      %v6602 = vmul.f32 %v6523, 0.01
      %v6603 = vmul.f32 %v6528, 0.01
      %v6604 = vmul.f32 %v6533, 0.01
      %v6605 = vmul.f32 %v6538, 0.01
      %v6606 = vmul.f32 %v6543, 0.01
      %v6607 = vmul.f32 %v6548, 0.01
      %v6608 = vmul.f32 %v6553, 0.01
      %v6609 = vmul.f32 %v6558, 0.01
      %v6610 = vmul.f32 %v6563, 0.01
      %v6611 = vmul.f32 %v6568, 0.01
      %v6612 = vmax.f32 %v6368, %v6571
      %v6613 = vmax.f32 %v6373, %v6572
      %v6614 = vmax.f32 %v6378, %v6573
      %v6615 = vmax.f32 %v6383, %v6574
      %v6616 = vmax.f32 %v6388, %v6575
      %v6617 = vmax.f32 %v6393, %v6576
      %v6618 = vmax.f32 %v6398, %v6577
      %v6619 = vmax.f32 %v6403, %v6578
      %v6620 = vmax.f32 %v6408, %v6579
      %v6621 = vmax.f32 %v6413, %v6580
      %v6622 = vmax.f32 %v6418, %v6581
      %v6623 = vmax.f32 %v6423, %v6582
      %v6624 = vmax.f32 %v6428, %v6583
      %v6625 = vmax.f32 %v6433, %v6584
      %v6626 = vmax.f32 %v6438, %v6585
      %v6627 = vmax.f32 %v6443, %v6586
      %v6628 = vmax.f32 %v6448, %v6587
      %v6629 = vmax.f32 %v6453, %v6588
      %v6630 = vmax.f32 %v6458, %v6589
      %v6631 = vmax.f32 %v6463, %v6590
      %v6632 = vmax.f32 %v6468, %v6591
      %v6633 = vmax.f32 %v6473, %v6592
      %v6634 = vmax.f32 %v6478, %v6593
      %v6635 = vmax.f32 %v6483, %v6594
      %v6636 = vmax.f32 %v6488, %v6595
      %v6637 = vmax.f32 %v6493, %v6596
      %v6638 = vmax.f32 %v6498, %v6597
      %v6639 = vmax.f32 %v6503, %v6598
      %v6640 = vmax.f32 %v6508, %v6599
      %v6641 = vmax.f32 %v6513, %v6600
      %v6642 = vmax.f32 %v6518, %v6601
      %v6643 = vmax.f32 %v6523, %v6602
      %v6644 = vmax.f32 %v6528, %v6603
      %v6645 = vmax.f32 %v6533, %v6604
      %v6646 = vmax.f32 %v6538, %v6605
      %v6647 = vmax.f32 %v6543, %v6606
      %v6648 = vmax.f32 %v6548, %v6607
      %v6649 = vmax.f32 %v6553, %v6608
      %v6650 = vmax.f32 %v6558, %v6609
      %v6651 = vmax.f32 %v6563, %v6610
      %v6652 = vmax.f32 %v6568, %v6611
      %v6653 = vmul.f32 %v6612, %v934
      %v6654 = vmul.f32 %v6613, %v939
      %v6655 = vmul.f32 %v6614, %v944
      %v6656 = vmul.f32 %v6615, %v949
      %v6657 = vmul.f32 %v6616, %v954
      %v6658 = vmul.f32 %v6617, %v959
      %v6659 = vmul.f32 %v6618, %v964
      %v6660 = vmul.f32 %v6619, %v969
      %v6661 = vmul.f32 %v6620, %v974
      %v6662 = vmul.f32 %v6621, %v979
      %v6663 = vmul.f32 %v6622, %v984
      %v6664 = vmul.f32 %v6623, %v989
      %v6665 = vmul.f32 %v6624, %v994
      %v6666 = vmul.f32 %v6625, %v999
      %v6667 = vmul.f32 %v6626, %v1004
      %v6668 = vmul.f32 %v6627, %v1009
      %v6669 = vmul.f32 %v6628, %v1014
      %v6670 = vmul.f32 %v6629, %v1019
      %v6671 = vmul.f32 %v6630, %v1024
      %v6672 = vmul.f32 %v6631, %v1029
      %v6673 = vmul.f32 %v6632, %v1034
      %v6674 = vmul.f32 %v6633, %v1039
      %v6675 = vmul.f32 %v6634, %v1044
      %v6676 = vmul.f32 %v6635, %v1049
      %v6677 = vmul.f32 %v6636, %v1054
      %v6678 = vmul.f32 %v6637, %v1059
      %v6679 = vmul.f32 %v6638, %v1064
      %v6680 = vmul.f32 %v6639, %v1069
      %v6681 = vmul.f32 %v6640, %v1074
      %v6682 = vmul.f32 %v6641, %v1079
      %v6683 = vmul.f32 %v6642, %v1084
      %v6684 = vmul.f32 %v6643, %v1089
      %v6685 = vmul.f32 %v6644, %v1094
      %v6686 = vmul.f32 %v6645, %v1099
      %v6687 = vmul.f32 %v6646, %v1104
      %v6688 = vmul.f32 %v6647, %v1109
      %v6689 = vmul.f32 %v6648, %v1114
      %v6690 = vmul.f32 %v6649, %v1119
      %v6691 = vmul.f32 %v6650, %v1124
      %v6692 = vmul.f32 %v6651, %v1129
      %v6693 = vmul.f32 %v6652, %v1134
      %v6694 = vld [vmem:[%s7] sm:$0xff]
      %v6695 = vld [vmem:[%s7 + $0x8] sm:$0xff]
      %v6696 = vld [vmem:[%s7 + $0x10] sm:$0xff]
      %v6697 = vld [vmem:[%s7 + $0x18] sm:$0xff]
      %v6698 = vld [vmem:[%s7 + $0x20] sm:$0xff]
      %v6699 = vld [vmem:[%s7 + $0x28] sm:$0xff]
      %v6700 = vld [vmem:[%s7 + $0x30] sm:$0xff]
      %v6701 = vld [vmem:[%s7 + $0x38] sm:$0xff]
      %v6702 = vld [vmem:[%s7 + $0x40] sm:$0xff]
      %v6703 = vld [vmem:[%s7 + $0x48] sm:$0xff]
      %v6704 = vld [vmem:[%s7 + $0x50] sm:$0xff]
      %v6705 = vld [vmem:[%s7 + $0x58] sm:$0xff]
      %v6706 = vld [vmem:[%s7 + $0x60] sm:$0xff]
      %v6707 = vld [vmem:[%s7 + $0x68] sm:$0xff]
      %v6708 = vld [vmem:[%s7 + $0x70] sm:$0xff]
      %v6709 = vld [vmem:[%s7 + $0x78] sm:$0xff]
      %v6710 = vld [vmem:[%s7 + $0x80] sm:$0xff]
      %v6711 = vld [vmem:[%s7 + $0x88] sm:$0xff]
      %v6712 = vld [vmem:[%s7 + $0x90] sm:$0xff]
      %v6713 = vld [vmem:[%s7 + $0x98] sm:$0xff]
      %v6714 = vld [vmem:[%s7 + $0xa0] sm:$0xff]
      %v6715 = vld [vmem:[%s7 + $0xa8] sm:$0xff]
      %v6716 = vld [vmem:[%s7 + $0xb0] sm:$0xff]
      %v6717 = vld [vmem:[%s7 + $0xb8] sm:$0xff]
      %v6718 = vld [vmem:[%s7 + $0xc0] sm:$0xff]
      %v6719 = vld [vmem:[%s7 + $0xc8] sm:$0xff]
      %v6720 = vld [vmem:[%s7 + $0xd0] sm:$0xff]
      %v6721 = vld [vmem:[%s7 + $0xd8] sm:$0xff]
      %v6722 = vld [vmem:[%s7 + $0xe0] sm:$0xff]
      %v6723 = vld [vmem:[%s7 + $0xe8] sm:$0xff]
      %v6724 = vld [vmem:[%s7 + $0xf0] sm:$0xff]
      %v6725 = vld [vmem:[%s7 + $0xf8] sm:$0xff]
      %v6726 = vld [vmem:[%s7 + $0x100] sm:$0xff]
      %v6727 = vld [vmem:[%s7 + $0x108] sm:$0xff]
      %v6728 = vld [vmem:[%s7 + $0x110] sm:$0xff]
      %v6729 = vld [vmem:[%s7 + $0x118] sm:$0xff]
      %v6730 = vld [vmem:[%s7 + $0x120] sm:$0xff]
      %v6731 = vld [vmem:[%s7 + $0x128] sm:$0xff]
      %v6732 = vld [vmem:[%s7 + $0x130] sm:$0xff]
      %v6733 = vld [vmem:[%s7 + $0x138] sm:$0xff]
      %v6734 = vld [vmem:[%s7 + $0x140] sm:$0xff]
      %v6735 = vmul.f32 %v6653, %v6694
      %v6736 = vmul.f32 %v6654, %v6695
      %v6737 = vmul.f32 %v6655, %v6696
      %v6738 = vmul.f32 %v6656, %v6697
      %v6739 = vmul.f32 %v6657, %v6698
      %v6740 = vmul.f32 %v6658, %v6699
      %v6741 = vmul.f32 %v6659, %v6700
      %v6742 = vmul.f32 %v6660, %v6701
      %v6743 = vmul.f32 %v6661, %v6702
      %v6744 = vmul.f32 %v6662, %v6703
      %v6745 = vmul.f32 %v6663, %v6704
      %v6746 = vmul.f32 %v6664, %v6705
      %v6747 = vmul.f32 %v6665, %v6706
      %v6748 = vmul.f32 %v6666, %v6707
      %v6749 = vmul.f32 %v6667, %v6708
      %v6750 = vmul.f32 %v6668, %v6709
      %v6751 = vmul.f32 %v6669, %v6710
      %v6752 = vmul.f32 %v6670, %v6711
      %v6753 = vmul.f32 %v6671, %v6712
      %v6754 = vmul.f32 %v6672, %v6713
      %v6755 = vmul.f32 %v6673, %v6714
      %v6756 = vmul.f32 %v6674, %v6715
      %v6757 = vmul.f32 %v6675, %v6716
      %v6758 = vmul.f32 %v6676, %v6717
      %v6759 = vmul.f32 %v6677, %v6718
      %v6760 = vmul.f32 %v6678, %v6719
      %v6761 = vmul.f32 %v6679, %v6720
      %v6762 = vmul.f32 %v6680, %v6721
      %v6763 = vmul.f32 %v6681, %v6722
      %v6764 = vmul.f32 %v6682, %v6723
      %v6765 = vmul.f32 %v6683, %v6724
      %v6766 = vmul.f32 %v6684, %v6725
      %v6767 = vmul.f32 %v6685, %v6726
      %v6768 = vmul.f32 %v6686, %v6727
      %v6769 = vmul.f32 %v6687, %v6728
      %v6770 = vmul.f32 %v6688, %v6729
      %v6771 = vmul.f32 %v6689, %v6730
      %v6772 = vmul.f32 %v6690, %v6731
      %v6773 = vmul.f32 %v6691, %v6732
      %v6774 = vmul.f32 %v6692, %v6733
      %v6775 = vmul.f32 %v6693, %v6734
      %v6776 = vsel %vm2499, %v6735, 0.0
      %v6777 = vsel %vm2499, %v6736, 0.0
      %v6778 = vadd.f32 %v6776, %v6777
      %v6779 = vsel %vm2499, %v6737, 0.0
      %v6780 = vadd.f32 %v6778, %v6779
      %v6781 = vsel %vm2499, %v6738, 0.0
      %v6782 = vadd.f32 %v6780, %v6781
      %v6783 = vsel %vm2499, %v6739, 0.0
      %v6784 = vadd.f32 %v6782, %v6783
      %v6785 = vsel %vm2499, %v6740, 0.0
      %v6786 = vadd.f32 %v6784, %v6785
      %v6787 = vsel %vm2499, %v6741, 0.0
      %v6788 = vadd.f32 %v6786, %v6787
      %v6789 = vsel %vm2499, %v6742, 0.0
      %v6790 = vadd.f32 %v6788, %v6789
      %v6791 = vsel %vm2499, %v6743, 0.0
      %v6792 = vadd.f32 %v6790, %v6791
      %v6793 = vsel %vm2499, %v6744, 0.0
      %v6794 = vadd.f32 %v6792, %v6793
      %v6795 = vsel %vm2499, %v6745, 0.0
      %v6796 = vadd.f32 %v6794, %v6795
      %v6797 = vsel %vm2499, %v6746, 0.0
      %v6798 = vadd.f32 %v6796, %v6797
      %v6799 = vsel %vm2499, %v6747, 0.0
      %v6800 = vadd.f32 %v6798, %v6799
      %v6801 = vsel %vm2499, %v6748, 0.0
      %v6802 = vadd.f32 %v6800, %v6801
      %v6803 = vsel %vm2499, %v6749, 0.0
      %v6804 = vadd.f32 %v6802, %v6803
      %v6805 = vsel %vm2499, %v6750, 0.0
      %v6806 = vadd.f32 %v6804, %v6805
      %v6807 = vsel %vm2499, %v6751, 0.0
      %v6808 = vadd.f32 %v6806, %v6807
      %v6809 = vsel %vm2499, %v6752, 0.0
      %v6810 = vadd.f32 %v6808, %v6809
      %v6811 = vsel %vm2499, %v6753, 0.0
      %v6812 = vadd.f32 %v6810, %v6811
      %v6813 = vsel %vm2499, %v6754, 0.0
      %v6814 = vadd.f32 %v6812, %v6813
      %v6815 = vsel %vm2499, %v6755, 0.0
      %v6816 = vadd.f32 %v6814, %v6815
      %v6817 = vsel %vm2499, %v6756, 0.0
      %v6818 = vadd.f32 %v6816, %v6817
      %v6819 = vsel %vm2499, %v6757, 0.0
      %v6820 = vadd.f32 %v6818, %v6819
      %v6821 = vsel %vm2499, %v6758, 0.0
      %v6822 = vadd.f32 %v6820, %v6821
      %v6823 = vsel %vm2499, %v6759, 0.0
      %v6824 = vadd.f32 %v6822, %v6823
      %v6825 = vsel %vm2499, %v6760, 0.0
      %v6826 = vadd.f32 %v6824, %v6825
      %v6827 = vsel %vm2499, %v6761, 0.0
      %v6828 = vadd.f32 %v6826, %v6827
      %v6829 = vsel %vm2499, %v6762, 0.0
      %v6830 = vadd.f32 %v6828, %v6829
      %v6831 = vsel %vm2499, %v6763, 0.0
      %v6832 = vadd.f32 %v6830, %v6831
      %v6833 = vsel %vm2499, %v6764, 0.0
      %v6834 = vadd.f32 %v6832, %v6833
      %v6835 = vsel %vm2499, %v6765, 0.0
      %v6836 = vadd.f32 %v6834, %v6835
      %v6837 = vsel %vm2499, %v6766, 0.0
      %v6838 = vadd.f32 %v6836, %v6837
      %v6839 = vsel %vm2499, %v6767, 0.0
      %v6840 = vadd.f32 %v6838, %v6839
      %v6841 = vsel %vm2499, %v6768, 0.0
      %v6842 = vadd.f32 %v6840, %v6841
      %v6843 = vsel %vm2499, %v6769, 0.0
      %v6844 = vadd.f32 %v6842, %v6843
      %v6845 = vsel %vm2499, %v6770, 0.0
      %v6846 = vadd.f32 %v6844, %v6845
      %v6847 = vsel %vm2499, %v6771, 0.0
      %v6848 = vadd.f32 %v6846, %v6847
      %v6849 = vsel %vm2499, %v6772, 0.0
      %v6850 = vadd.f32 %v6848, %v6849
      %v6851 = vsel %vm2499, %v6773, 0.0
      %v6852 = vadd.f32 %v6850, %v6851
      %v6853 = vsel %vm2499, %v6774, 0.0
      %v6854 = vadd.f32 %v6852, %v6853
      %v6855 = vsel %vm2499, %v6775, 0.0
      %v6856 = vadd.f32 %v6854, %v6855
      %v6857 = vrot.slane %v6856, 4
      %v6858 = vadd.f32 %v6856, %v6857
      %v6859 = vrot.slane %v6858, 2
      %v6860 = vadd.f32 %v6858, %v6859
      %v6861 = vrot.slane %v6860, 1
      %v6862 = vadd.f32 %v6860, %v6861
      %v6863 = vsel %vm2499, %v6862, 0.0
      %6864 = vadd.xlane.f32.xlu0 %v6863
      %v6865 = vpop.xlane.xlu0 %6864
      %v6866 = vld [vmem:[#allocation2] sm:$0x1]
      %v6867 = vadd.f32 %v6865, %v6866
      %vm6868 = vcmask 0
      %6869 = vst.msk [vmem:[%s357] sm:$0x1] %vm6868, %v6867
      %p6870 = scmp.lt.s32.totalorder %s23, 1
      %s6871 = scalar_select %p6870, %s23, 1
      %s6872 = scalar_lea.vmem %s10, %s6871
      // Predicated region
      $region61: #{_lambda_.1} parent=59 // pred_check
        %p6873 = pneg %p256
      $region62: #{_lambda_.1} parent=59 // pred_check_branch
        %6875 = sbr.rel (%p6873) target = $region64
      $region63: #{_lambda_.1} parent=59 // pred_region
        _
      $region64: #{_lambda_.1} parent=59 // pred_fallthru
        _
    $region60: #{_lambda_.1} parent=5 // pred_fallthru
      _
    %p6876 = scmp.le.s32.totalorder 2, %s18
    // Predicated region
    $region65: #{_lambda_.1} parent=5 // pred_check
      %p6877 = pneg %p6876
    $region66: #{_lambda_.1} parent=5 // pred_check_branch
      %6879 = sbr.rel (%p6877) target = $region68
    $region67: #{_lambda_.1} parent=5 // pred_region
      %s6880 = ssub.s32 %s18, 2
      // Predicated region
      $region69: #{_lambda_.1} parent=67 // pred_check
        %p6881 = pneg %p262
      $region70: #{_lambda_.1} parent=67 // pred_check_branch
        %6883 = sbr.rel (%p6881) target = $region72
      $region71: #{_lambda_.1} parent=67 // pred_region
        %p6884 = scmp.lt.s32.totalorder %s24, 1
        %s6885 = scalar_select %p6884, %s24, 1
        %s6886 = scalar_lea.vmem %s10, %s6885
      $region72: #{_lambda_.1} parent=67 // pred_fallthru
        _
    $region68: #{_lambda_.1} parent=5 // pred_fallthru
      _
  $region6: #{_lambda_.1} parent=0 // loop_footer
    %s22 = sadd.s32 1, %s18
  $region7: #{_lambda_.1} parent=0 // loop_footer_branch
    %17 = sbr.rel target = $region3
  $region8: #{_lambda_.1} parent=0 // loop_exit
    _

</llo_original>
